<compile_context>
chip_gen: v7x
topology: tpu7x:2x2x1
jax: 0.10.0
libtpu: 0.0.40
codegen_flags: <defaults>
</compile_context>

<pallas_src>
import jax
import jax.numpy as jnp
from jax.experimental import pallas as pl
from jax.experimental.pallas import tpu as pltpu

_SUBLANE = 8
_LANE = 128


def _round_up(x, m):
    return (x + m - 1) // m * m


def _pick_vocab_tile(v_pad):
    for tv in (1024, 512, 256, 128):
        if v_pad % tv == 0:
            return tv
    return v_pad


# ----------------------------------------------------------------------------
# Kernel 1: fused stacked-LSTM recurrence (gridless, fully VMEM-resident).
# ----------------------------------------------------------------------------
def _make_lstm_stack_kernel(n_layers, T, B_pad, H_pad):
    def kernel(*refs):
        x_ref = refs[0]                                       # (T*B_pad, I_pad)
        layer_refs = [(refs[1 + 3 * i], refs[2 + 3 * i], refs[3 + 3 * i])
                      for i in range(n_layers)]
        base = 1 + 3 * n_layers
        h0_ref, c0_ref = refs[base], refs[base + 1]
        y_ref, hf_ref, cf_ref = refs[base + 2], refs[base + 3], refs[base + 4]
        gx_sc = refs[base + 5]                                # (T*B_pad, 4*H_pad)

        h = h0_ref[...]                                       # (B_pad, H_pad)
        c = c0_ref[...]

        for li, (wih_ref, whh_ref, b_ref) in enumerate(layer_refs):
            if li > 0:
                # PyTorch: only layer 0 receives (last_h, last_c).
                h = jnp.zeros((B_pad, H_pad), jnp.float32)
                c = jnp.zeros((B_pad, H_pad), jnp.float32)

            src_ref = x_ref if li == 0 else y_ref
            # Hoisted input projection over ALL timesteps -> VMEM scratch
            # (one big MXU matmul per layer; only h @ W_hh^T stays per step).
            gx_sc[...] = (
                jnp.dot(src_ref[...], wih_ref[...],
                        preferred_element_type=jnp.float32) + b_ref[...])

            def step(t, carry, whh_ref=whh_ref):
                h, c = carry
                off = pl.multiple_of(t * B_pad, _SUBLANE)
                g = gx_sc[pl.ds(off, B_pad), :] + jnp.dot(
                    h, whh_ref[...], preferred_element_type=jnp.float32)
                # Gate blocks are 128-lane aligned (H_pad multiple of 128).
                i_g = jax.nn.sigmoid(g[:, 0 * H_pad:1 * H_pad])
                f_g = jax.nn.sigmoid(g[:, 1 * H_pad:2 * H_pad])
                g_g = jnp.tanh(g[:, 2 * H_pad:3 * H_pad])
                o_g = jax.nn.sigmoid(g[:, 3 * H_pad:4 * H_pad])
                c = f_g * c + i_g * g_g
                h = o_g * jnp.tanh(c)
                y_ref[pl.ds(off, B_pad), :] = h               # aligned (8,128) store
                return (h, c)

            h, c = jax.lax.fori_loop(0, T, step, (h, c), unroll=True)

        # Final states written exactly once (last layer's h, c).
        hf_ref[...] = h
        cf_ref[...] = c

    return kernel


# ----------------------------------------------------------------------------
# Kernel 2: final Linear, tiled over vocab lanes (parallel grid).
# ----------------------------------------------------------------------------
def _fc_tile_kernel(y_ref, w_ref, b_ref, o_ref):
    o_ref[...] = (jnp.dot(y_ref[...], w_ref[...],
                          preferred_element_type=jnp.float32) + b_ref[...])


# ----------------------------------------------------------------------------
# One-time parameter preprocessing (hoisted out of the per-step forward).
# ----------------------------------------------------------------------------
def preprocess_params(params):
    H = params["layers"][0]["w_hh"].shape[-1]
    V = params["fc_w"].shape[0]
    H_pad = _round_up(H, _LANE)
    V_pad = _round_up(V, _LANE)

    layers = []
    for i, lp in enumerate(params["layers"]):
        in_dim = lp["w_ih"].shape[1]
        I_pad = _round_up(in_dim, _LANE) if i == 0 else H_pad

        wih_t = jnp.transpose(lp["w_ih"]).astype(jnp.float32)   # (in_dim, 4H)
        whh_t = jnp.transpose(lp["w_hh"]).astype(jnp.float32)   # (H, 4H)
        b = (lp["b_ih"] + lp["b_hh"]).astype(jnp.float32)       # (4H,)

        # Place each gate into its own 128-lane-aligned slot; padding stays 0,
        # which keeps padded hidden lanes exactly 0 through the recurrence.
        wih_p = jnp.zeros((I_pad, 4 * H_pad), jnp.float32)
        whh_p = jnp.zeros((H_pad, 4 * H_pad), jnp.float32)
        b_p = jnp.zeros((1, 4 * H_pad), jnp.float32)
        for g in range(4):
            wih_p = wih_p.at[:in_dim, g * H_pad:g * H_pad + H].set(
                wih_t[:, g * H:(g + 1) * H])
            whh_p = whh_p.at[:H, g * H_pad:g * H_pad + H].set(
                whh_t[:, g * H:(g + 1) * H])
            b_p = b_p.at[0, g * H_pad:g * H_pad + H].set(b[g * H:(g + 1) * H])
        layers.append((wih_p, whh_p, b_p))

    fc_wT = jnp.zeros((H_pad, V_pad), jnp.float32).at[:H, :V].set(
        jnp.transpose(params["fc_w"]).astype(jnp.float32))
    fc_b = jnp.zeros((1, V_pad), jnp.float32).at[0, :V].set(
        params["fc_b"].astype(jnp.float32))

    return {"embedding": params["embedding"].astype(jnp.float32),
            "layers": layers, "fc_wT": fc_wT, "fc_b": fc_b,
            "H": H, "H_pad": H_pad, "V": V, "V_pad": V_pad}


# ----------------------------------------------------------------------------
# Decoder forward (mirrors the PyTorch module's forward).
# ----------------------------------------------------------------------------
def decoder_forward(x_tokens, context, last_h, last_c, prep):
    # Embedding gather + concat + time-major transpose are wrapper glue.
    # TODO(synk): embedding gather could be moved in-kernel via scalar-prefetched
    # token ids + DMA gather; not worth it at these sizes.
    emb = prep["embedding"][x_tokens]                               # (B, T, E)
    out = jnp.concatenate([context.astype(jnp.float32), emb], axis=-1)
    B, T, I0 = out.shape
    H, H_pad = prep["H"], prep["H_pad"]
    V, V_pad = prep["V"], prep["V_pad"]
    n_layers = len(prep["layers"])
    B_pad = _round_up(B, _SUBLANE)
    I_pad = prep["layers"][0][0].shape[0]

    # Time-major, padded to (8,128)-aligned blocks: row index = t*B_pad + b.
    x_tm = jnp.transpose(out, (1, 0, 2))                            # (T, B, I0)
    x_tm = jnp.pad(x_tm, ((0, 0), (0, B_pad - B), (0, I_pad - I0)))
    x_flat = x_tm.reshape(T * B_pad, I_pad)

    h0 = jnp.zeros((B_pad, H_pad), jnp.float32).at[:B, :H].set(
        last_h[0].astype(jnp.float32))
    c0 = jnp.zeros((B_pad, H_pad), jnp.float32).at[:B, :H].set(
        last_c[0].astype(jnp.float32))

    layer_flat = [a for lyr in prep["layers"] for a in lyr]
    lstm_inputs = [x_flat] + layer_flat + [h0, c0]

    vmem_spec = pl.BlockSpec(memory_space=pltpu.MemorySpace.VMEM)
    resident = 4 * (sum(int(a.size) for a in lstm_inputs)
                    + T * B_pad * H_pad + 2 * B_pad * H_pad          # outputs
                    + T * B_pad * 4 * H_pad)                         # gx scratch
    lstm_vmem = int(min(max(2 * resident + (1 << 20), 8 << 20), 32 << 20))

    y, h_f, c_f = pl.pallas_call(
        _make_lstm_stack_kernel(n_layers, T, B_pad, H_pad),
        out_shape=(
            jax.ShapeDtypeStruct((T * B_pad, H_pad), jnp.float32),
            jax.ShapeDtypeStruct((B_pad, H_pad), jnp.float32),
            jax.ShapeDtypeStruct((B_pad, H_pad), jnp.float32),
        ),
        in_specs=[vmem_spec] * len(lstm_inputs),
        out_specs=(vmem_spec, vmem_spec, vmem_spec),
        scratch_shapes=[pltpu.VMEM((T * B_pad, 4 * H_pad), jnp.float32)],
        compiler_params=pltpu.CompilerParams(vmem_limit_bytes=lstm_vmem),
    )(*lstm_inputs)

    # Final Linear: tiled over vocab lanes, parallel grid (megacore on v7x,
    # pipelined weight/logit DMA everywhere).
    TV = _pick_vocab_tile(V_pad)
    TM = T * B_pad
    fc_resident = 4 * (TM * H_pad + 2 * (H_pad * TV + TV + TM * TV))
    fc_vmem = int(min(max(2 * fc_resident + (1 << 20), 8 << 20), 32 << 20))

    logits_flat = pl.pallas_call(
        _fc_tile_kernel,
        out_shape=jax.ShapeDtypeStruct((TM, V_pad), jnp.float32),
        grid=(V_pad // TV,),
        in_specs=[
            pl.BlockSpec((TM, H_pad), lambda j: (0, 0)),
            pl.BlockSpec((H_pad, TV), lambda j: (0, j)),
            pl.BlockSpec((1, TV), lambda j: (0, j)),
        ],
        out_specs=pl.BlockSpec((TM, TV), lambda j: (0, j)),
        compiler_params=pltpu.CompilerParams(
            dimension_semantics=("parallel",),
            vmem_limit_bytes=fc_vmem),
    )(y, prep["fc_wT"], prep["fc_b"])

    logits = jnp.transpose(
        logits_flat.reshape(T, B_pad, V_pad)[:, :B, :V], (1, 0, 2))
    return logits, h_f[None, :B, :H], c_f[None, :B, :H]


# ----------------------------------------------------------------------------
# Pure-JAX reference (for correctness check).
# ----------------------------------------------------------------------------
def _lstm_ref(x, w_ih, w_hh, b_ih, b_hh, h0, c0):
    H = h0.shape[-1]

    def step(carry, x_t):
        h, c = carry
        g = x_t @ w_ih.T + b_ih + h @ w_hh.T + b_hh
        i = jax.nn.sigmoid(g[:, :H])
        f = jax.nn.sigmoid(g[:, H:2 * H])
        gg = jnp.tanh(g[:, 2 * H:3 * H])
        o = jax.nn.sigmoid(g[:, 3 * H:])
        c = f * c + i * gg
        h = o * jnp.tanh(c)
        return (h, c), h

    (h, c), ys = jax.lax.scan(step, (h0, c0), jnp.transpose(x, (1, 0, 2)))
    return jnp.transpose(ys, (1, 0, 2)), h, c


def _decoder_ref(x_tokens, context, last_h, last_c, params):
    out = jnp.concatenate([context, params["embedding"][x_tokens]], axis=-1)
    B = x_tokens.shape[0]
    H = params["layers"][0]["w_hh"].shape[-1]
    for i, lp in enumerate(params["layers"]):
        if i == 0:
            h0, c0 = last_h[0], last_c[0]
        else:
            h0 = jnp.zeros((B, H), jnp.float32)
            c0 = jnp.zeros((B, H), jnp.float32)
        out, h, c = _lstm_ref(out, lp["w_ih"], lp["w_hh"],
                              lp["b_ih"], lp["b_hh"], h0, c0)
    logits = out @ params["fc_w"].T + params["fc_b"]
    return logits, h[None], c[None]


# ----------------------------------------------------------------------------
if __name__ == "__main__":
    VOCAB, EMB, ENC_H, HID, NLAYERS = 64, 32, 32, 32, 2
    B, T = 2, 8

    key = jax.random.PRNGKey(0)
    keys = jax.random.split(key, 16)
    k = iter(keys)

    scale = 1.0 / jnp.sqrt(HID)
    params = {
        "embedding": jax.random.normal(next(k), (VOCAB, EMB), jnp.float32),
        "layers": [],
        "fc_w": jax.random.uniform(next(k), (VOCAB, HID), jnp.float32,
                                   -scale, scale),
        "fc_b": jax.random.uniform(next(k), (VOCAB,), jnp.float32,
                                   -scale, scale),
    }
    for i in range(NLAYERS):
        in_dim = EMB + ENC_H if i == 0 else HID
        params["layers"].append({
            "w_ih": jax.random.uniform(next(k), (4 * HID, in_dim), jnp.float32,
                                       -scale, scale),
            "w_hh": jax.random.uniform(next(k), (4 * HID, HID), jnp.float32,
                                       -scale, scale),
            "b_ih": jax.random.uniform(next(k), (4 * HID,), jnp.float32,
                                       -scale, scale),
            "b_hh": jax.random.uniform(next(k), (4 * HID,), jnp.float32,
                                       -scale, scale),
        })

    x = jax.random.randint(next(k), (B, T), 0, VOCAB, dtype=jnp.int32)
    context = jax.random.normal(next(k), (B, T, ENC_H), jnp.float32)
    last_h = jax.random.normal(next(k), (1, B, HID), jnp.float32)
    last_c = jax.random.normal(next(k), (1, B, HID), jnp.float32)

    prep = preprocess_params(params)                 # one-time weight glue
    logits, h, c = decoder_forward(x, context, last_h, last_c, prep)
    jax.block_until_ready((logits, h, c))

    ref_logits, ref_h, ref_c = _decoder_ref(x, context, last_h, last_c, params)
    assert logits.shape == (B, T, VOCAB)
    assert h.shape == (1, B, HID) and c.shape == (1, B, HID)
    assert jnp.allclose(logits, ref_logits, atol=2e-2, rtol=2e-2)
    assert jnp.allclose(h, ref_h, atol=2e-2, rtol=2e-2)
    assert jnp.allclose(c, ref_c, atol=2e-2, rtol=2e-2)

    print("KERNEL_OK")
</pallas_src>

<mosaic_0001>
module attributes {stable_mosaic.version = 11 : i64} {
  func.func @kernel(%arg0: memref<64x128xf32, #tpu.memory_space<vmem>>, %arg1: memref<128x512xf32, #tpu.memory_space<vmem>>, %arg2: memref<128x512xf32, #tpu.memory_space<vmem>>, %arg3: memref<1x512xf32, #tpu.memory_space<vmem>>, %arg4: memref<128x512xf32, #tpu.memory_space<vmem>>, %arg5: memref<128x512xf32, #tpu.memory_space<vmem>>, %arg6: memref<1x512xf32, #tpu.memory_space<vmem>>, %arg7: memref<8x128xf32, #tpu.memory_space<vmem>>, %arg8: memref<8x128xf32, #tpu.memory_space<vmem>>, %arg9: memref<64x128xf32, #tpu.memory_space<vmem>>, %arg10: memref<8x128xf32, #tpu.memory_space<vmem>>, %arg11: memref<8x128xf32, #tpu.memory_space<vmem>>, %arg12: memref<64x512xf32, #tpu.memory_space<vmem>>) attributes {dimension_semantics = [], scalar_prefetch = 0 : i64, scratch_operands = 1 : i64, tpu.core_type = #tpu.core_type<tc>} {
    %c0 = arith.constant 0 : index
    %c0_0 = arith.constant 0 : index
    %0 = vector.load %arg7[%c0, %c0_0] : memref<8x128xf32, #tpu.memory_space<vmem>>, vector<8x128xf32>
    %c0_1 = arith.constant 0 : index
    %c0_2 = arith.constant 0 : index
    %1 = vector.load %arg8[%c0_1, %c0_2] : memref<8x128xf32, #tpu.memory_space<vmem>>, vector<8x128xf32>
    %c0_3 = arith.constant 0 : index
    %c0_4 = arith.constant 0 : index
    %2 = vector.load %arg0[%c0_3, %c0_4] : memref<64x128xf32, #tpu.memory_space<vmem>>, vector<64x128xf32>
    %c0_5 = arith.constant 0 : index
    %c0_6 = arith.constant 0 : index
    %3 = vector.load %arg1[%c0_5, %c0_6] : memref<128x512xf32, #tpu.memory_space<vmem>>, vector<128x512xf32>
    %cst = arith.constant dense<0.000000e+00> : vector<64x512xf32>
    %4 = tpu.matmul %2, %3, %cst {dimension_numbers = #tpu.dot_dimension_numbers<[1], [0], [0], [1], [0, 0, 1, 1], [], []>} : vector<64x128xf32>, vector<128x512xf32>, vector<64x512xf32> -> vector<64x512xf32>
    %c0_7 = arith.constant 0 : index
    %c0_8 = arith.constant 0 : index
    %5 = vector.load %arg3[%c0_7, %c0_8] : memref<1x512xf32, #tpu.memory_space<vmem>>, vector<1x512xf32>
    %6 = vector.broadcast %5 : vector<1x512xf32> to vector<64x512xf32>
    %7 = arith.addf %4, %6 : vector<64x512xf32>
    %c0_9 = arith.constant 0 : index
    %c0_10 = arith.constant 0 : index
    %8 = vector.load %arg12[%c0_9, %c0_10] : memref<64x512xf32, #tpu.memory_space<vmem>>, vector<64x512xf32>
    tpu.vector_store %arg12[%c0_9, %c0_10], %7 {strides = array<i32>} : memref<64x512xf32, #tpu.memory_space<vmem>>, vector<64x512xf32>,
    %c0_i32 = arith.constant 0 : i32
    %c8_i32 = arith.constant 8 : i32
    %9 = arith.muli %c0_i32, %c8_i32 : i32
    %10 = tpu.assume_multiple %9, 8 : i32
    %11 = arith.index_cast %10 : i32 to index
    %c0_11 = arith.constant 0 : index
    %12 = vector.load %arg12[%11, %c0_11] : memref<64x512xf32, #tpu.memory_space<vmem>>, vector<8x512xf32>
    %c0_12 = arith.constant 0 : index
    %c0_13 = arith.constant 0 : index
    %13 = vector.load %arg2[%c0_12, %c0_13] : memref<128x512xf32, #tpu.memory_space<vmem>>, vector<128x512xf32>
    %cst_14 = arith.constant dense<0.000000e+00> : vector<8x512xf32>
    %14 = tpu.matmul %0, %13, %cst_14 {dimension_numbers = #tpu.dot_dimension_numbers<[1], [0], [0], [1], [0, 0, 1, 1], [], []>} : vector<8x128xf32>, vector<128x512xf32>, vector<8x512xf32> -> vector<8x512xf32>
    %15 = arith.addf %12, %14 : vector<8x512xf32>
    %16 = vector.extract_strided_slice %15 {offsets = [0, 0], sizes = [8, 128], strides = [1, 1]} : vector<8x512xf32> to vector<8x128xf32>
    %17 = arith.negf %16 : vector<8x128xf32>
    %18 = math.exp %17 : vector<8x128xf32>
    %cst_15 = arith.constant 1.000000e+00 : f32
    %19 = vector.broadcast %cst_15 : f32 to vector<8x128xf32>
    %20 = arith.addf %19, %18 : vector<8x128xf32>
    %21 = arith.divf %19, %20 : vector<8x128xf32>
    %22 = vector.extract_strided_slice %15 {offsets = [0, 128], sizes = [8, 128], strides = [1, 1]} : vector<8x512xf32> to vector<8x128xf32>
    %23 = arith.negf %22 : vector<8x128xf32>
    %24 = math.exp %23 : vector<8x128xf32>
    %cst_16 = arith.constant 1.000000e+00 : f32
    %25 = vector.broadcast %cst_16 : f32 to vector<8x128xf32>
    %26 = arith.addf %25, %24 : vector<8x128xf32>
    %27 = arith.divf %25, %26 : vector<8x128xf32>
    %28 = vector.extract_strided_slice %15 {offsets = [0, 256], sizes = [8, 128], strides = [1, 1]} : vector<8x512xf32> to vector<8x128xf32>
    %29 = math.tanh %28 : vector<8x128xf32>
    %30 = vector.extract_strided_slice %15 {offsets = [0, 384], sizes = [8, 128], strides = [1, 1]} : vector<8x512xf32> to vector<8x128xf32>
    %31 = arith.negf %30 : vector<8x128xf32>
    %32 = math.exp %31 : vector<8x128xf32>
    %cst_17 = arith.constant 1.000000e+00 : f32
    %33 = vector.broadcast %cst_17 : f32 to vector<8x128xf32>
    %34 = arith.addf %33, %32 : vector<8x128xf32>
    %35 = arith.divf %33, %34 : vector<8x128xf32>
    %36 = arith.mulf %27, %1 : vector<8x128xf32>
    %37 = arith.mulf %21, %29 : vector<8x128xf32>
    %38 = arith.addf %36, %37 : vector<8x128xf32>
    %39 = math.tanh %38 : vector<8x128xf32>
    %40 = arith.mulf %35, %39 : vector<8x128xf32>
    %41 = arith.index_cast %10 : i32 to index
    %c0_18 = arith.constant 0 : index
    %42 = vector.load %arg9[%41, %c0_18] : memref<64x128xf32, #tpu.memory_space<vmem>>, vector<8x128xf32>
    tpu.vector_store %arg9[%41, %c0_18], %40 {strides = array<i32>} : memref<64x128xf32, #tpu.memory_space<vmem>>, vector<8x128xf32>,
    %c1_i32 = arith.constant 1 : i32
    %c8_i32_19 = arith.constant 8 : i32
    %43 = arith.muli %c1_i32, %c8_i32_19 : i32
    %44 = tpu.assume_multiple %43, 8 : i32
    %45 = arith.index_cast %44 : i32 to index
    %c0_20 = arith.constant 0 : index
    %46 = vector.load %arg12[%45, %c0_20] : memref<64x512xf32, #tpu.memory_space<vmem>>, vector<8x512xf32>
    %c0_21 = arith.constant 0 : index
    %c0_22 = arith.constant 0 : index
    %47 = vector.load %arg2[%c0_21, %c0_22] : memref<128x512xf32, #tpu.memory_space<vmem>>, vector<128x512xf32>
    %cst_23 = arith.constant dense<0.000000e+00> : vector<8x512xf32>
    %48 = tpu.matmul %40, %47, %cst_23 {dimension_numbers = #tpu.dot_dimension_numbers<[1], [0], [0], [1], [0, 0, 1, 1], [], []>} : vector<8x128xf32>, vector<128x512xf32>, vector<8x512xf32> -> vector<8x512xf32>
    %49 = arith.addf %46, %48 : vector<8x512xf32>
    %50 = vector.extract_strided_slice %49 {offsets = [0, 0], sizes = [8, 128], strides = [1, 1]} : vector<8x512xf32> to vector<8x128xf32>
    %51 = arith.negf %50 : vector<8x128xf32>
    %52 = math.exp %51 : vector<8x128xf32>
    %cst_24 = arith.constant 1.000000e+00 : f32
    %53 = vector.broadcast %cst_24 : f32 to vector<8x128xf32>
    %54 = arith.addf %53, %52 : vector<8x128xf32>
    %55 = arith.divf %53, %54 : vector<8x128xf32>
    %56 = vector.extract_strided_slice %49 {offsets = [0, 128], sizes = [8, 128], strides = [1, 1]} : vector<8x512xf32> to vector<8x128xf32>
    %57 = arith.negf %56 : vector<8x128xf32>
    %58 = math.exp %57 : vector<8x128xf32>
    %cst_25 = arith.constant 1.000000e+00 : f32
    %59 = vector.broadcast %cst_25 : f32 to vector<8x128xf32>
    %60 = arith.addf %59, %58 : vector<8x128xf32>
    %61 = arith.divf %59, %60 : vector<8x128xf32>
    %62 = vector.extract_strided_slice %49 {offsets = [0, 256], sizes = [8, 128], strides = [1, 1]} : vector<8x512xf32> to vector<8x128xf32>
    %63 = math.tanh %62 : vector<8x128xf32>
    %64 = vector.extract_strided_slice %49 {offsets = [0, 384], sizes = [8, 128], strides = [1, 1]} : vector<8x512xf32> to vector<8x128xf32>
    %65 = arith.negf %64 : vector<8x128xf32>
    %66 = math.exp %65 : vector<8x128xf32>
    %cst_26 = arith.constant 1.000000e+00 : f32
    %67 = vector.broadcast %cst_26 : f32 to vector<8x128xf32>
    %68 = arith.addf %67, %66 : vector<8x128xf32>
    %69 = arith.divf %67, %68 : vector<8x128xf32>
    %70 = arith.mulf %61, %38 : vector<8x128xf32>
    %71 = arith.mulf %55, %63 : vector<8x128xf32>
    %72 = arith.addf %70, %71 : vector<8x128xf32>
    %73 = math.tanh %72 : vector<8x128xf32>
    %74 = arith.mulf %69, %73 : vector<8x128xf32>
    %75 = arith.index_cast %44 : i32 to index
    %c0_27 = arith.constant 0 : index
    %76 = vector.load %arg9[%75, %c0_27] : memref<64x128xf32, #tpu.memory_space<vmem>>, vector<8x128xf32>
    tpu.vector_store %arg9[%75, %c0_27], %74 {strides = array<i32>} : memref<64x128xf32, #tpu.memory_space<vmem>>, vector<8x128xf32>,
    %c2_i32 = arith.constant 2 : i32
    %c8_i32_28 = arith.constant 8 : i32
    %77 = arith.muli %c2_i32, %c8_i32_28 : i32
    %78 = tpu.assume_multiple %77, 8 : i32
    %79 = arith.index_cast %78 : i32 to index
    %c0_29 = arith.constant 0 : index
    %80 = vector.load %arg12[%79, %c0_29] : memref<64x512xf32, #tpu.memory_space<vmem>>, vector<8x512xf32>
    %c0_30 = arith.constant 0 : index
    %c0_31 = arith.constant 0 : index
    %81 = vector.load %arg2[%c0_30, %c0_31] : memref<128x512xf32, #tpu.memory_space<vmem>>, vector<128x512xf32>
    %cst_32 = arith.constant dense<0.000000e+00> : vector<8x512xf32>
    %82 = tpu.matmul %74, %81, %cst_32 {dimension_numbers = #tpu.dot_dimension_numbers<[1], [0], [0], [1], [0, 0, 1, 1], [], []>} : vector<8x128xf32>, vector<128x512xf32>, vector<8x512xf32> -> vector<8x512xf32>
    %83 = arith.addf %80, %82 : vector<8x512xf32>
    %84 = vector.extract_strided_slice %83 {offsets = [0, 0], sizes = [8, 128], strides = [1, 1]} : vector<8x512xf32> to vector<8x128xf32>
    %85 = arith.negf %84 : vector<8x128xf32>
    %86 = math.exp %85 : vector<8x128xf32>
    %cst_33 = arith.constant 1.000000e+00 : f32
    %87 = vector.broadcast %cst_33 : f32 to vector<8x128xf32>
    %88 = arith.addf %87, %86 : vector<8x128xf32>
    %89 = arith.divf %87, %88 : vector<8x128xf32>
    %90 = vector.extract_strided_slice %83 {offsets = [0, 128], sizes = [8, 128], strides = [1, 1]} : vector<8x512xf32> to vector<8x128xf32>
    %91 = arith.negf %90 : vector<8x128xf32>
    %92 = math.exp %91 : vector<8x128xf32>
    %cst_34 = arith.constant 1.000000e+00 : f32
    %93 = vector.broadcast %cst_34 : f32 to vector<8x128xf32>
    %94 = arith.addf %93, %92 : vector<8x128xf32>
    %95 = arith.divf %93, %94 : vector<8x128xf32>
    %96 = vector.extract_strided_slice %83 {offsets = [0, 256], sizes = [8, 128], strides = [1, 1]} : vector<8x512xf32> to vector<8x128xf32>
    %97 = math.tanh %96 : vector<8x128xf32>
    %98 = vector.extract_strided_slice %83 {offsets = [0, 384], sizes = [8, 128], strides = [1, 1]} : vector<8x512xf32> to vector<8x128xf32>
    %99 = arith.negf %98 : vector<8x128xf32>
    %100 = math.exp %99 : vector<8x128xf32>
    %cst_35 = arith.constant 1.000000e+00 : f32
    %101 = vector.broadcast %cst_35 : f32 to vector<8x128xf32>
    %102 = arith.addf %101, %100 : vector<8x128xf32>
    %103 = arith.divf %101, %102 : vector<8x128xf32>
    %104 = arith.mulf %95, %72 : vector<8x128xf32>
    %105 = arith.mulf %89, %97 : vector<8x128xf32>
    %106 = arith.addf %104, %105 : vector<8x128xf32>
    %107 = math.tanh %106 : vector<8x128xf32>
    %108 = arith.mulf %103, %107 : vector<8x128xf32>
    %109 = arith.index_cast %78 : i32 to index
    %c0_36 = arith.constant 0 : index
    %110 = vector.load %arg9[%109, %c0_36] : memref<64x128xf32, #tpu.memory_space<vmem>>, vector<8x128xf32>
    tpu.vector_store %arg9[%109, %c0_36], %108 {strides = array<i32>} : memref<64x128xf32, #tpu.memory_space<vmem>>, vector<8x128xf32>,
    %c3_i32 = arith.constant 3 : i32
    %c8_i32_37 = arith.constant 8 : i32
    %111 = arith.muli %c3_i32, %c8_i32_37 : i32
    %112 = tpu.assume_multiple %111, 8 : i32
    %113 = arith.index_cast %112 : i32 to index
    %c0_38 = arith.constant 0 : index
    %114 = vector.load %arg12[%113, %c0_38] : memref<64x512xf32, #tpu.memory_space<vmem>>, vector<8x512xf32>
    %c0_39 = arith.constant 0 : index
    %c0_40 = arith.constant 0 : index
    %115 = vector.load %arg2[%c0_39, %c0_40] : memref<128x512xf32, #tpu.memory_space<vmem>>, vector<128x512xf32>
    %cst_41 = arith.constant dense<0.000000e+00> : vector<8x512xf32>
    %116 = tpu.matmul %108, %115, %cst_41 {dimension_numbers = #tpu.dot_dimension_numbers<[1], [0], [0], [1], [0, 0, 1, 1], [], []>} : vector<8x128xf32>, vector<128x512xf32>, vector<8x512xf32> -> vector<8x512xf32>
    %117 = arith.addf %114, %116 : vector<8x512xf32>
    %118 = vector.extract_strided_slice %117 {offsets = [0, 0], sizes = [8, 128], strides = [1, 1]} : vector<8x512xf32> to vector<8x128xf32>
    %119 = arith.negf %118 : vector<8x128xf32>
    %120 = math.exp %119 : vector<8x128xf32>
    %cst_42 = arith.constant 1.000000e+00 : f32
    %121 = vector.broadcast %cst_42 : f32 to vector<8x128xf32>
    %122 = arith.addf %121, %120 : vector<8x128xf32>
    %123 = arith.divf %121, %122 : vector<8x128xf32>
    %124 = vector.extract_strided_slice %117 {offsets = [0, 128], sizes = [8, 128], strides = [1, 1]} : vector<8x512xf32> to vector<8x128xf32>
    %125 = arith.negf %124 : vector<8x128xf32>
    %126 = math.exp %125 : vector<8x128xf32>
    %cst_43 = arith.constant 1.000000e+00 : f32
    %127 = vector.broadcast %cst_43 : f32 to vector<8x128xf32>
    %128 = arith.addf %127, %126 : vector<8x128xf32>
    %129 = arith.divf %127, %128 : vector<8x128xf32>
    %130 = vector.extract_strided_slice %117 {offsets = [0, 256], sizes = [8, 128], strides = [1, 1]} : vector<8x512xf32> to vector<8x128xf32>
    %131 = math.tanh %130 : vector<8x128xf32>
    %132 = vector.extract_strided_slice %117 {offsets = [0, 384], sizes = [8, 128], strides = [1, 1]} : vector<8x512xf32> to vector<8x128xf32>
    %133 = arith.negf %132 : vector<8x128xf32>
    %134 = math.exp %133 : vector<8x128xf32>
    %cst_44 = arith.constant 1.000000e+00 : f32
    %135 = vector.broadcast %cst_44 : f32 to vector<8x128xf32>
    %136 = arith.addf %135, %134 : vector<8x128xf32>
    %137 = arith.divf %135, %136 : vector<8x128xf32>
    %138 = arith.mulf %129, %106 : vector<8x128xf32>
    %139 = arith.mulf %123, %131 : vector<8x128xf32>
    %140 = arith.addf %138, %139 : vector<8x128xf32>
    %141 = math.tanh %140 : vector<8x128xf32>
    %142 = arith.mulf %137, %141 : vector<8x128xf32>
    %143 = arith.index_cast %112 : i32 to index
    %c0_45 = arith.constant 0 : index
    %144 = vector.load %arg9[%143, %c0_45] : memref<64x128xf32, #tpu.memory_space<vmem>>, vector<8x128xf32>
    tpu.vector_store %arg9[%143, %c0_45], %142 {strides = array<i32>} : memref<64x128xf32, #tpu.memory_space<vmem>>, vector<8x128xf32>,
    %c4_i32 = arith.constant 4 : i32
    %c8_i32_46 = arith.constant 8 : i32
    %145 = arith.muli %c4_i32, %c8_i32_46 : i32
    %146 = tpu.assume_multiple %145, 8 : i32
    %147 = arith.index_cast %146 : i32 to index
    %c0_47 = arith.constant 0 : index
    %148 = vector.load %arg12[%147, %c0_47] : memref<64x512xf32, #tpu.memory_space<vmem>>, vector<8x512xf32>
    %c0_48 = arith.constant 0 : index
    %c0_49 = arith.constant 0 : index
    %149 = vector.load %arg2[%c0_48, %c0_49] : memref<128x512xf32, #tpu.memory_space<vmem>>, vector<128x512xf32>
    %cst_50 = arith.constant dense<0.000000e+00> : vector<8x512xf32>
    %150 = tpu.matmul %142, %149, %cst_50 {dimension_numbers = #tpu.dot_dimension_numbers<[1], [0], [0], [1], [0, 0, 1, 1], [], []>} : vector<8x128xf32>, vector<128x512xf32>, vector<8x512xf32> -> vector<8x512xf32>
    %151 = arith.addf %148, %150 : vector<8x512xf32>
    %152 = vector.extract_strided_slice %151 {offsets = [0, 0], sizes = [8, 128], strides = [1, 1]} : vector<8x512xf32> to vector<8x128xf32>
    %153 = arith.negf %152 : vector<8x128xf32>
    %154 = math.exp %153 : vector<8x128xf32>
    %cst_51 = arith.constant 1.000000e+00 : f32
    %155 = vector.broadcast %cst_51 : f32 to vector<8x128xf32>
    %156 = arith.addf %155, %154 : vector<8x128xf32>
    %157 = arith.divf %155, %156 : vector<8x128xf32>
    %158 = vector.extract_strided_slice %151 {offsets = [0, 128], sizes = [8, 128], strides = [1, 1]} : vector<8x512xf32> to vector<8x128xf32>
    %159 = arith.negf %158 : vector<8x128xf32>
    %160 = math.exp %159 : vector<8x128xf32>
    %cst_52 = arith.constant 1.000000e+00 : f32
    %161 = vector.broadcast %cst_52 : f32 to vector<8x128xf32>
    %162 = arith.addf %161, %160 : vector<8x128xf32>
    %163 = arith.divf %161, %162 : vector<8x128xf32>
    %164 = vector.extract_strided_slice %151 {offsets = [0, 256], sizes = [8, 128], strides = [1, 1]} : vector<8x512xf32> to vector<8x128xf32>
    %165 = math.tanh %164 : vector<8x128xf32>
    %166 = vector.extract_strided_slice %151 {offsets = [0, 384], sizes = [8, 128], strides = [1, 1]} : vector<8x512xf32> to vector<8x128xf32>
    %167 = arith.negf %166 : vector<8x128xf32>
    %168 = math.exp %167 : vector<8x128xf32>
    %cst_53 = arith.constant 1.000000e+00 : f32
    %169 = vector.broadcast %cst_53 : f32 to vector<8x128xf32>
    %170 = arith.addf %169, %168 : vector<8x128xf32>
    %171 = arith.divf %169, %170 : vector<8x128xf32>
    %172 = arith.mulf %163, %140 : vector<8x128xf32>
    %173 = arith.mulf %157, %165 : vector<8x128xf32>
    %174 = arith.addf %172, %173 : vector<8x128xf32>
    %175 = math.tanh %174 : vector<8x128xf32>
    %176 = arith.mulf %171, %175 : vector<8x128xf32>
    %177 = arith.index_cast %146 : i32 to index
    %c0_54 = arith.constant 0 : index
    %178 = vector.load %arg9[%177, %c0_54] : memref<64x128xf32, #tpu.memory_space<vmem>>, vector<8x128xf32>
    tpu.vector_store %arg9[%177, %c0_54], %176 {strides = array<i32>} : memref<64x128xf32, #tpu.memory_space<vmem>>, vector<8x128xf32>,
    %c5_i32 = arith.constant 5 : i32
    %c8_i32_55 = arith.constant 8 : i32
    %179 = arith.muli %c5_i32, %c8_i32_55 : i32
    %180 = tpu.assume_multiple %179, 8 : i32
    %181 = arith.index_cast %180 : i32 to index
    %c0_56 = arith.constant 0 : index
    %182 = vector.load %arg12[%181, %c0_56] : memref<64x512xf32, #tpu.memory_space<vmem>>, vector<8x512xf32>
    %c0_57 = arith.constant 0 : index
    %c0_58 = arith.constant 0 : index
    %183 = vector.load %arg2[%c0_57, %c0_58] : memref<128x512xf32, #tpu.memory_space<vmem>>, vector<128x512xf32>
    %cst_59 = arith.constant dense<0.000000e+00> : vector<8x512xf32>
    %184 = tpu.matmul %176, %183, %cst_59 {dimension_numbers = #tpu.dot_dimension_numbers<[1], [0], [0], [1], [0, 0, 1, 1], [], []>} : vector<8x128xf32>, vector<128x512xf32>, vector<8x512xf32> -> vector<8x512xf32>
    %185 = arith.addf %182, %184 : vector<8x512xf32>
    %186 = vector.extract_strided_slice %185 {offsets = [0, 0], sizes = [8, 128], strides = [1, 1]} : vector<8x512xf32> to vector<8x128xf32>
    %187 = arith.negf %186 : vector<8x128xf32>
    %188 = math.exp %187 : vector<8x128xf32>
    %cst_60 = arith.constant 1.000000e+00 : f32
    %189 = vector.broadcast %cst_60 : f32 to vector<8x128xf32>
    %190 = arith.addf %189, %188 : vector<8x128xf32>
    %191 = arith.divf %189, %190 : vector<8x128xf32>
    %192 = vector.extract_strided_slice %185 {offsets = [0, 128], sizes = [8, 128], strides = [1, 1]} : vector<8x512xf32> to vector<8x128xf32>
    %193 = arith.negf %192 : vector<8x128xf32>
    %194 = math.exp %193 : vector<8x128xf32>
    %cst_61 = arith.constant 1.000000e+00 : f32
    %195 = vector.broadcast %cst_61 : f32 to vector<8x128xf32>
    %196 = arith.addf %195, %194 : vector<8x128xf32>
    %197 = arith.divf %195, %196 : vector<8x128xf32>
    %198 = vector.extract_strided_slice %185 {offsets = [0, 256], sizes = [8, 128], strides = [1, 1]} : vector<8x512xf32> to vector<8x128xf32>
    %199 = math.tanh %198 : vector<8x128xf32>
    %200 = vector.extract_strided_slice %185 {offsets = [0, 384], sizes = [8, 128], strides = [1, 1]} : vector<8x512xf32> to vector<8x128xf32>
    %201 = arith.negf %200 : vector<8x128xf32>
    %202 = math.exp %201 : vector<8x128xf32>
    %cst_62 = arith.constant 1.000000e+00 : f32
    %203 = vector.broadcast %cst_62 : f32 to vector<8x128xf32>
    %204 = arith.addf %203, %202 : vector<8x128xf32>
    %205 = arith.divf %203, %204 : vector<8x128xf32>
    %206 = arith.mulf %197, %174 : vector<8x128xf32>
    %207 = arith.mulf %191, %199 : vector<8x128xf32>
    %208 = arith.addf %206, %207 : vector<8x128xf32>
    %209 = math.tanh %208 : vector<8x128xf32>
    %210 = arith.mulf %205, %209 : vector<8x128xf32>
    %211 = arith.index_cast %180 : i32 to index
    %c0_63 = arith.constant 0 : index
    %212 = vector.load %arg9[%211, %c0_63] : memref<64x128xf32, #tpu.memory_space<vmem>>, vector<8x128xf32>
    tpu.vector_store %arg9[%211, %c0_63], %210 {strides = array<i32>} : memref<64x128xf32, #tpu.memory_space<vmem>>, vector<8x128xf32>,
    %c6_i32 = arith.constant 6 : i32
    %c8_i32_64 = arith.constant 8 : i32
    %213 = arith.muli %c6_i32, %c8_i32_64 : i32
    %214 = tpu.assume_multiple %213, 8 : i32
    %215 = arith.index_cast %214 : i32 to index
    %c0_65 = arith.constant 0 : index
    %216 = vector.load %arg12[%215, %c0_65] : memref<64x512xf32, #tpu.memory_space<vmem>>, vector<8x512xf32>
    %c0_66 = arith.constant 0 : index
    %c0_67 = arith.constant 0 : index
    %217 = vector.load %arg2[%c0_66, %c0_67] : memref<128x512xf32, #tpu.memory_space<vmem>>, vector<128x512xf32>
    %cst_68 = arith.constant dense<0.000000e+00> : vector<8x512xf32>
    %218 = tpu.matmul %210, %217, %cst_68 {dimension_numbers = #tpu.dot_dimension_numbers<[1], [0], [0], [1], [0, 0, 1, 1], [], []>} : vector<8x128xf32>, vector<128x512xf32>, vector<8x512xf32> -> vector<8x512xf32>
    %219 = arith.addf %216, %218 : vector<8x512xf32>
    %220 = vector.extract_strided_slice %219 {offsets = [0, 0], sizes = [8, 128], strides = [1, 1]} : vector<8x512xf32> to vector<8x128xf32>
    %221 = arith.negf %220 : vector<8x128xf32>
    %222 = math.exp %221 : vector<8x128xf32>
    %cst_69 = arith.constant 1.000000e+00 : f32
    %223 = vector.broadcast %cst_69 : f32 to vector<8x128xf32>
    %224 = arith.addf %223, %222 : vector<8x128xf32>
    %225 = arith.divf %223, %224 : vector<8x128xf32>
    %226 = vector.extract_strided_slice %219 {offsets = [0, 128], sizes = [8, 128], strides = [1, 1]} : vector<8x512xf32> to vector<8x128xf32>
    %227 = arith.negf %226 : vector<8x128xf32>
    %228 = math.exp %227 : vector<8x128xf32>
    %cst_70 = arith.constant 1.000000e+00 : f32
    %229 = vector.broadcast %cst_70 : f32 to vector<8x128xf32>
    %230 = arith.addf %229, %228 : vector<8x128xf32>
    %231 = arith.divf %229, %230 : vector<8x128xf32>
    %232 = vector.extract_strided_slice %219 {offsets = [0, 256], sizes = [8, 128], strides = [1, 1]} : vector<8x512xf32> to vector<8x128xf32>
    %233 = math.tanh %232 : vector<8x128xf32>
    %234 = vector.extract_strided_slice %219 {offsets = [0, 384], sizes = [8, 128], strides = [1, 1]} : vector<8x512xf32> to vector<8x128xf32>
    %235 = arith.negf %234 : vector<8x128xf32>
    %236 = math.exp %235 : vector<8x128xf32>
    %cst_71 = arith.constant 1.000000e+00 : f32
    %237 = vector.broadcast %cst_71 : f32 to vector<8x128xf32>
    %238 = arith.addf %237, %236 : vector<8x128xf32>
    %239 = arith.divf %237, %238 : vector<8x128xf32>
    %240 = arith.mulf %231, %208 : vector<8x128xf32>
    %241 = arith.mulf %225, %233 : vector<8x128xf32>
    %242 = arith.addf %240, %241 : vector<8x128xf32>
    %243 = math.tanh %242 : vector<8x128xf32>
    %244 = arith.mulf %239, %243 : vector<8x128xf32>
    %245 = arith.index_cast %214 : i32 to index
    %c0_72 = arith.constant 0 : index
    %246 = vector.load %arg9[%245, %c0_72] : memref<64x128xf32, #tpu.memory_space<vmem>>, vector<8x128xf32>
    tpu.vector_store %arg9[%245, %c0_72], %244 {strides = array<i32>} : memref<64x128xf32, #tpu.memory_space<vmem>>, vector<8x128xf32>,
    %c7_i32 = arith.constant 7 : i32
    %c8_i32_73 = arith.constant 8 : i32
    %247 = arith.muli %c7_i32, %c8_i32_73 : i32
    %248 = tpu.assume_multiple %247, 8 : i32
    %249 = arith.index_cast %248 : i32 to index
    %c0_74 = arith.constant 0 : index
    %250 = vector.load %arg12[%249, %c0_74] : memref<64x512xf32, #tpu.memory_space<vmem>>, vector<8x512xf32>
    %c0_75 = arith.constant 0 : index
    %c0_76 = arith.constant 0 : index
    %251 = vector.load %arg2[%c0_75, %c0_76] : memref<128x512xf32, #tpu.memory_space<vmem>>, vector<128x512xf32>
    %cst_77 = arith.constant dense<0.000000e+00> : vector<8x512xf32>
    %252 = tpu.matmul %244, %251, %cst_77 {dimension_numbers = #tpu.dot_dimension_numbers<[1], [0], [0], [1], [0, 0, 1, 1], [], []>} : vector<8x128xf32>, vector<128x512xf32>, vector<8x512xf32> -> vector<8x512xf32>
    %253 = arith.addf %250, %252 : vector<8x512xf32>
    %254 = vector.extract_strided_slice %253 {offsets = [0, 0], sizes = [8, 128], strides = [1, 1]} : vector<8x512xf32> to vector<8x128xf32>
    %255 = arith.negf %254 : vector<8x128xf32>
    %256 = math.exp %255 : vector<8x128xf32>
    %cst_78 = arith.constant 1.000000e+00 : f32
    %257 = vector.broadcast %cst_78 : f32 to vector<8x128xf32>
    %258 = arith.addf %257, %256 : vector<8x128xf32>
    %259 = arith.divf %257, %258 : vector<8x128xf32>
    %260 = vector.extract_strided_slice %253 {offsets = [0, 128], sizes = [8, 128], strides = [1, 1]} : vector<8x512xf32> to vector<8x128xf32>
    %261 = arith.negf %260 : vector<8x128xf32>
    %262 = math.exp %261 : vector<8x128xf32>
    %cst_79 = arith.constant 1.000000e+00 : f32
    %263 = vector.broadcast %cst_79 : f32 to vector<8x128xf32>
    %264 = arith.addf %263, %262 : vector<8x128xf32>
    %265 = arith.divf %263, %264 : vector<8x128xf32>
    %266 = vector.extract_strided_slice %253 {offsets = [0, 256], sizes = [8, 128], strides = [1, 1]} : vector<8x512xf32> to vector<8x128xf32>
    %267 = math.tanh %266 : vector<8x128xf32>
    %268 = vector.extract_strided_slice %253 {offsets = [0, 384], sizes = [8, 128], strides = [1, 1]} : vector<8x512xf32> to vector<8x128xf32>
    %269 = arith.negf %268 : vector<8x128xf32>
    %270 = math.exp %269 : vector<8x128xf32>
    %cst_80 = arith.constant 1.000000e+00 : f32
    %271 = vector.broadcast %cst_80 : f32 to vector<8x128xf32>
    %272 = arith.addf %271, %270 : vector<8x128xf32>
    %273 = arith.divf %271, %272 : vector<8x128xf32>
    %274 = arith.mulf %265, %242 : vector<8x128xf32>
    %275 = arith.mulf %259, %267 : vector<8x128xf32>
    %276 = arith.addf %274, %275 : vector<8x128xf32>
    %277 = math.tanh %276 : vector<8x128xf32>
    %278 = arith.mulf %273, %277 : vector<8x128xf32>
    %279 = arith.index_cast %248 : i32 to index
    %c0_81 = arith.constant 0 : index
    %280 = vector.load %arg9[%279, %c0_81] : memref<64x128xf32, #tpu.memory_space<vmem>>, vector<8x128xf32>
    tpu.vector_store %arg9[%279, %c0_81], %278 {strides = array<i32>} : memref<64x128xf32, #tpu.memory_space<vmem>>, vector<8x128xf32>,
    %c8_i32_82 = arith.constant 8 : i32
    %cst_83 = arith.constant 0.000000e+00 : f32
    %281 = vector.broadcast %cst_83 : f32 to vector<8x128xf32>
    %cst_84 = arith.constant 0.000000e+00 : f32
    %282 = vector.broadcast %cst_84 : f32 to vector<8x128xf32>
    %c0_85 = arith.constant 0 : index
    %c0_86 = arith.constant 0 : index
    %283 = vector.load %arg9[%c0_85, %c0_86] : memref<64x128xf32, #tpu.memory_space<vmem>>, vector<64x128xf32>
    %c0_87 = arith.constant 0 : index
    %c0_88 = arith.constant 0 : index
    %284 = vector.load %arg4[%c0_87, %c0_88] : memref<128x512xf32, #tpu.memory_space<vmem>>, vector<128x512xf32>
    %cst_89 = arith.constant dense<0.000000e+00> : vector<64x512xf32>
    %285 = tpu.matmul %283, %284, %cst_89 {dimension_numbers = #tpu.dot_dimension_numbers<[1], [0], [0], [1], [0, 0, 1, 1], [], []>} : vector<64x128xf32>, vector<128x512xf32>, vector<64x512xf32> -> vector<64x512xf32>
    %c0_90 = arith.constant 0 : index
    %c0_91 = arith.constant 0 : index
    %286 = vector.load %arg6[%c0_90, %c0_91] : memref<1x512xf32, #tpu.memory_space<vmem>>, vector<1x512xf32>
    %287 = vector.broadcast %286 : vector<1x512xf32> to vector<64x512xf32>
    %288 = arith.addf %285, %287 : vector<64x512xf32>
    %c0_92 = arith.constant 0 : index
    %c0_93 = arith.constant 0 : index
    %289 = vector.load %arg12[%c0_92, %c0_93] : memref<64x512xf32, #tpu.memory_space<vmem>>, vector<64x512xf32>
    tpu.vector_store %arg12[%c0_92, %c0_93], %288 {strides = array<i32>} : memref<64x512xf32, #tpu.memory_space<vmem>>, vector<64x512xf32>,
    %c0_i32_94 = arith.constant 0 : i32
    %c8_i32_95 = arith.constant 8 : i32
    %290 = arith.muli %c0_i32_94, %c8_i32_95 : i32
    %291 = tpu.assume_multiple %290, 8 : i32
    %292 = arith.index_cast %291 : i32 to index
    %c0_96 = arith.constant 0 : index
    %293 = vector.load %arg12[%292, %c0_96] : memref<64x512xf32, #tpu.memory_space<vmem>>, vector<8x512xf32>
    %c0_97 = arith.constant 0 : index
    %c0_98 = arith.constant 0 : index
    %294 = vector.load %arg5[%c0_97, %c0_98] : memref<128x512xf32, #tpu.memory_space<vmem>>, vector<128x512xf32>
    %cst_99 = arith.constant dense<0.000000e+00> : vector<8x512xf32>
    %295 = tpu.matmul %281, %294, %cst_99 {dimension_numbers = #tpu.dot_dimension_numbers<[1], [0], [0], [1], [0, 0, 1, 1], [], []>} : vector<8x128xf32>, vector<128x512xf32>, vector<8x512xf32> -> vector<8x512xf32>
    %296 = arith.addf %293, %295 : vector<8x512xf32>
    %297 = vector.extract_strided_slice %296 {offsets = [0, 0], sizes = [8, 128], strides = [1, 1]} : vector<8x512xf32> to vector<8x128xf32>
    %298 = arith.negf %297 : vector<8x128xf32>
    %299 = math.exp %298 : vector<8x128xf32>
    %cst_100 = arith.constant 1.000000e+00 : f32
    %300 = vector.broadcast %cst_100 : f32 to vector<8x128xf32>
    %301 = arith.addf %300, %299 : vector<8x128xf32>
    %302 = arith.divf %300, %301 : vector<8x128xf32>
    %303 = vector.extract_strided_slice %296 {offsets = [0, 128], sizes = [8, 128], strides = [1, 1]} : vector<8x512xf32> to vector<8x128xf32>
    %304 = arith.negf %303 : vector<8x128xf32>
    %305 = math.exp %304 : vector<8x128xf32>
    %cst_101 = arith.constant 1.000000e+00 : f32
    %306 = vector.broadcast %cst_101 : f32 to vector<8x128xf32>
    %307 = arith.addf %306, %305 : vector<8x128xf32>
    %308 = arith.divf %306, %307 : vector<8x128xf32>
    %309 = vector.extract_strided_slice %296 {offsets = [0, 256], sizes = [8, 128], strides = [1, 1]} : vector<8x512xf32> to vector<8x128xf32>
    %310 = math.tanh %309 : vector<8x128xf32>
    %311 = vector.extract_strided_slice %296 {offsets = [0, 384], sizes = [8, 128], strides = [1, 1]} : vector<8x512xf32> to vector<8x128xf32>
    %312 = arith.negf %311 : vector<8x128xf32>
    %313 = math.exp %312 : vector<8x128xf32>
    %cst_102 = arith.constant 1.000000e+00 : f32
    %314 = vector.broadcast %cst_102 : f32 to vector<8x128xf32>
    %315 = arith.addf %314, %313 : vector<8x128xf32>
    %316 = arith.divf %314, %315 : vector<8x128xf32>
    %317 = arith.mulf %308, %282 : vector<8x128xf32>
    %318 = arith.mulf %302, %310 : vector<8x128xf32>
    %319 = arith.addf %317, %318 : vector<8x128xf32>
    %320 = math.tanh %319 : vector<8x128xf32>
    %321 = arith.mulf %316, %320 : vector<8x128xf32>
    %322 = arith.index_cast %291 : i32 to index
    %c0_103 = arith.constant 0 : index
    %323 = vector.load %arg9[%322, %c0_103] : memref<64x128xf32, #tpu.memory_space<vmem>>, vector<8x128xf32>
    tpu.vector_store %arg9[%322, %c0_103], %321 {strides = array<i32>} : memref<64x128xf32, #tpu.memory_space<vmem>>, vector<8x128xf32>,
    %c1_i32_104 = arith.constant 1 : i32
    %c8_i32_105 = arith.constant 8 : i32
    %324 = arith.muli %c1_i32_104, %c8_i32_105 : i32
    %325 = tpu.assume_multiple %324, 8 : i32
    %326 = arith.index_cast %325 : i32 to index
    %c0_106 = arith.constant 0 : index
    %327 = vector.load %arg12[%326, %c0_106] : memref<64x512xf32, #tpu.memory_space<vmem>>, vector<8x512xf32>
    %c0_107 = arith.constant 0 : index
    %c0_108 = arith.constant 0 : index
    %328 = vector.load %arg5[%c0_107, %c0_108] : memref<128x512xf32, #tpu.memory_space<vmem>>, vector<128x512xf32>
    %cst_109 = arith.constant dense<0.000000e+00> : vector<8x512xf32>
    %329 = tpu.matmul %321, %328, %cst_109 {dimension_numbers = #tpu.dot_dimension_numbers<[1], [0], [0], [1], [0, 0, 1, 1], [], []>} : vector<8x128xf32>, vector<128x512xf32>, vector<8x512xf32> -> vector<8x512xf32>
    %330 = arith.addf %327, %329 : vector<8x512xf32>
    %331 = vector.extract_strided_slice %330 {offsets = [0, 0], sizes = [8, 128], strides = [1, 1]} : vector<8x512xf32> to vector<8x128xf32>
    %332 = arith.negf %331 : vector<8x128xf32>
    %333 = math.exp %332 : vector<8x128xf32>
    %cst_110 = arith.constant 1.000000e+00 : f32
    %334 = vector.broadcast %cst_110 : f32 to vector<8x128xf32>
    %335 = arith.addf %334, %333 : vector<8x128xf32>
    %336 = arith.divf %334, %335 : vector<8x128xf32>
    %337 = vector.extract_strided_slice %330 {offsets = [0, 128], sizes = [8, 128], strides = [1, 1]} : vector<8x512xf32> to vector<8x128xf32>
    %338 = arith.negf %337 : vector<8x128xf32>
    %339 = math.exp %338 : vector<8x128xf32>
    %cst_111 = arith.constant 1.000000e+00 : f32
    %340 = vector.broadcast %cst_111 : f32 to vector<8x128xf32>
    %341 = arith.addf %340, %339 : vector<8x128xf32>
    %342 = arith.divf %340, %341 : vector<8x128xf32>
    %343 = vector.extract_strided_slice %330 {offsets = [0, 256], sizes = [8, 128], strides = [1, 1]} : vector<8x512xf32> to vector<8x128xf32>
    %344 = math.tanh %343 : vector<8x128xf32>
    %345 = vector.extract_strided_slice %330 {offsets = [0, 384], sizes = [8, 128], strides = [1, 1]} : vector<8x512xf32> to vector<8x128xf32>
    %346 = arith.negf %345 : vector<8x128xf32>
    %347 = math.exp %346 : vector<8x128xf32>
    %cst_112 = arith.constant 1.000000e+00 : f32
    %348 = vector.broadcast %cst_112 : f32 to vector<8x128xf32>
    %349 = arith.addf %348, %347 : vector<8x128xf32>
    %350 = arith.divf %348, %349 : vector<8x128xf32>
    %351 = arith.mulf %342, %319 : vector<8x128xf32>
    %352 = arith.mulf %336, %344 : vector<8x128xf32>
    %353 = arith.addf %351, %352 : vector<8x128xf32>
    %354 = math.tanh %353 : vector<8x128xf32>
    %355 = arith.mulf %350, %354 : vector<8x128xf32>
    %356 = arith.index_cast %325 : i32 to index
    %c0_113 = arith.constant 0 : index
    %357 = vector.load %arg9[%356, %c0_113] : memref<64x128xf32, #tpu.memory_space<vmem>>, vector<8x128xf32>
    tpu.vector_store %arg9[%356, %c0_113], %355 {strides = array<i32>} : memref<64x128xf32, #tpu.memory_space<vmem>>, vector<8x128xf32>,
    %c2_i32_114 = arith.constant 2 : i32
    %c8_i32_115 = arith.constant 8 : i32
    %358 = arith.muli %c2_i32_114, %c8_i32_115 : i32
    %359 = tpu.assume_multiple %358, 8 : i32
    %360 = arith.index_cast %359 : i32 to index
    %c0_116 = arith.constant 0 : index
    %361 = vector.load %arg12[%360, %c0_116] : memref<64x512xf32, #tpu.memory_space<vmem>>, vector<8x512xf32>
    %c0_117 = arith.constant 0 : index
    %c0_118 = arith.constant 0 : index
    %362 = vector.load %arg5[%c0_117, %c0_118] : memref<128x512xf32, #tpu.memory_space<vmem>>, vector<128x512xf32>
    %cst_119 = arith.constant dense<0.000000e+00> : vector<8x512xf32>
    %363 = tpu.matmul %355, %362, %cst_119 {dimension_numbers = #tpu.dot_dimension_numbers<[1], [0], [0], [1], [0, 0, 1, 1], [], []>} : vector<8x128xf32>, vector<128x512xf32>, vector<8x512xf32> -> vector<8x512xf32>
    %364 = arith.addf %361, %363 : vector<8x512xf32>
    %365 = vector.extract_strided_slice %364 {offsets = [0, 0], sizes = [8, 128], strides = [1, 1]} : vector<8x512xf32> to vector<8x128xf32>
    %366 = arith.negf %365 : vector<8x128xf32>
    %367 = math.exp %366 : vector<8x128xf32>
    %cst_120 = arith.constant 1.000000e+00 : f32
    %368 = vector.broadcast %cst_120 : f32 to vector<8x128xf32>
    %369 = arith.addf %368, %367 : vector<8x128xf32>
    %370 = arith.divf %368, %369 : vector<8x128xf32>
    %371 = vector.extract_strided_slice %364 {offsets = [0, 128], sizes = [8, 128], strides = [1, 1]} : vector<8x512xf32> to vector<8x128xf32>
    %372 = arith.negf %371 : vector<8x128xf32>
    %373 = math.exp %372 : vector<8x128xf32>
    %cst_121 = arith.constant 1.000000e+00 : f32
    %374 = vector.broadcast %cst_121 : f32 to vector<8x128xf32>
    %375 = arith.addf %374, %373 : vector<8x128xf32>
    %376 = arith.divf %374, %375 : vector<8x128xf32>
    %377 = vector.extract_strided_slice %364 {offsets = [0, 256], sizes = [8, 128], strides = [1, 1]} : vector<8x512xf32> to vector<8x128xf32>
    %378 = math.tanh %377 : vector<8x128xf32>
    %379 = vector.extract_strided_slice %364 {offsets = [0, 384], sizes = [8, 128], strides = [1, 1]} : vector<8x512xf32> to vector<8x128xf32>
    %380 = arith.negf %379 : vector<8x128xf32>
    %381 = math.exp %380 : vector<8x128xf32>
    %cst_122 = arith.constant 1.000000e+00 : f32
    %382 = vector.broadcast %cst_122 : f32 to vector<8x128xf32>
    %383 = arith.addf %382, %381 : vector<8x128xf32>
    %384 = arith.divf %382, %383 : vector<8x128xf32>
    %385 = arith.mulf %376, %353 : vector<8x128xf32>
    %386 = arith.mulf %370, %378 : vector<8x128xf32>
    %387 = arith.addf %385, %386 : vector<8x128xf32>
    %388 = math.tanh %387 : vector<8x128xf32>
    %389 = arith.mulf %384, %388 : vector<8x128xf32>
    %390 = arith.index_cast %359 : i32 to index
    %c0_123 = arith.constant 0 : index
    %391 = vector.load %arg9[%390, %c0_123] : memref<64x128xf32, #tpu.memory_space<vmem>>, vector<8x128xf32>
    tpu.vector_store %arg9[%390, %c0_123], %389 {strides = array<i32>} : memref<64x128xf32, #tpu.memory_space<vmem>>, vector<8x128xf32>,
    %c3_i32_124 = arith.constant 3 : i32
    %c8_i32_125 = arith.constant 8 : i32
    %392 = arith.muli %c3_i32_124, %c8_i32_125 : i32
    %393 = tpu.assume_multiple %392, 8 : i32
    %394 = arith.index_cast %393 : i32 to index
    %c0_126 = arith.constant 0 : index
    %395 = vector.load %arg12[%394, %c0_126] : memref<64x512xf32, #tpu.memory_space<vmem>>, vector<8x512xf32>
    %c0_127 = arith.constant 0 : index
    %c0_128 = arith.constant 0 : index
    %396 = vector.load %arg5[%c0_127, %c0_128] : memref<128x512xf32, #tpu.memory_space<vmem>>, vector<128x512xf32>
    %cst_129 = arith.constant dense<0.000000e+00> : vector<8x512xf32>
    %397 = tpu.matmul %389, %396, %cst_129 {dimension_numbers = #tpu.dot_dimension_numbers<[1], [0], [0], [1], [0, 0, 1, 1], [], []>} : vector<8x128xf32>, vector<128x512xf32>, vector<8x512xf32> -> vector<8x512xf32>
    %398 = arith.addf %395, %397 : vector<8x512xf32>
    %399 = vector.extract_strided_slice %398 {offsets = [0, 0], sizes = [8, 128], strides = [1, 1]} : vector<8x512xf32> to vector<8x128xf32>
    %400 = arith.negf %399 : vector<8x128xf32>
    %401 = math.exp %400 : vector<8x128xf32>
    %cst_130 = arith.constant 1.000000e+00 : f32
    %402 = vector.broadcast %cst_130 : f32 to vector<8x128xf32>
    %403 = arith.addf %402, %401 : vector<8x128xf32>
    %404 = arith.divf %402, %403 : vector<8x128xf32>
    %405 = vector.extract_strided_slice %398 {offsets = [0, 128], sizes = [8, 128], strides = [1, 1]} : vector<8x512xf32> to vector<8x128xf32>
    %406 = arith.negf %405 : vector<8x128xf32>
    %407 = math.exp %406 : vector<8x128xf32>
    %cst_131 = arith.constant 1.000000e+00 : f32
    %408 = vector.broadcast %cst_131 : f32 to vector<8x128xf32>
    %409 = arith.addf %408, %407 : vector<8x128xf32>
    %410 = arith.divf %408, %409 : vector<8x128xf32>
    %411 = vector.extract_strided_slice %398 {offsets = [0, 256], sizes = [8, 128], strides = [1, 1]} : vector<8x512xf32> to vector<8x128xf32>
    %412 = math.tanh %411 : vector<8x128xf32>
    %413 = vector.extract_strided_slice %398 {offsets = [0, 384], sizes = [8, 128], strides = [1, 1]} : vector<8x512xf32> to vector<8x128xf32>
    %414 = arith.negf %413 : vector<8x128xf32>
    %415 = math.exp %414 : vector<8x128xf32>
    %cst_132 = arith.constant 1.000000e+00 : f32
    %416 = vector.broadcast %cst_132 : f32 to vector<8x128xf32>
    %417 = arith.addf %416, %415 : vector<8x128xf32>
    %418 = arith.divf %416, %417 : vector<8x128xf32>
    %419 = arith.mulf %410, %387 : vector<8x128xf32>
    %420 = arith.mulf %404, %412 : vector<8x128xf32>
    %421 = arith.addf %419, %420 : vector<8x128xf32>
    %422 = math.tanh %421 : vector<8x128xf32>
    %423 = arith.mulf %418, %422 : vector<8x128xf32>
    %424 = arith.index_cast %393 : i32 to index
    %c0_133 = arith.constant 0 : index
    %425 = vector.load %arg9[%424, %c0_133] : memref<64x128xf32, #tpu.memory_space<vmem>>, vector<8x128xf32>
    tpu.vector_store %arg9[%424, %c0_133], %423 {strides = array<i32>} : memref<64x128xf32, #tpu.memory_space<vmem>>, vector<8x128xf32>,
    %c4_i32_134 = arith.constant 4 : i32
    %c8_i32_135 = arith.constant 8 : i32
    %426 = arith.muli %c4_i32_134, %c8_i32_135 : i32
    %427 = tpu.assume_multiple %426, 8 : i32
    %428 = arith.index_cast %427 : i32 to index
    %c0_136 = arith.constant 0 : index
    %429 = vector.load %arg12[%428, %c0_136] : memref<64x512xf32, #tpu.memory_space<vmem>>, vector<8x512xf32>
    %c0_137 = arith.constant 0 : index
    %c0_138 = arith.constant 0 : index
    %430 = vector.load %arg5[%c0_137, %c0_138] : memref<128x512xf32, #tpu.memory_space<vmem>>, vector<128x512xf32>
    %cst_139 = arith.constant dense<0.000000e+00> : vector<8x512xf32>
    %431 = tpu.matmul %423, %430, %cst_139 {dimension_numbers = #tpu.dot_dimension_numbers<[1], [0], [0], [1], [0, 0, 1, 1], [], []>} : vector<8x128xf32>, vector<128x512xf32>, vector<8x512xf32> -> vector<8x512xf32>
    %432 = arith.addf %429, %431 : vector<8x512xf32>
    %433 = vector.extract_strided_slice %432 {offsets = [0, 0], sizes = [8, 128], strides = [1, 1]} : vector<8x512xf32> to vector<8x128xf32>
    %434 = arith.negf %433 : vector<8x128xf32>
    %435 = math.exp %434 : vector<8x128xf32>
    %cst_140 = arith.constant 1.000000e+00 : f32
    %436 = vector.broadcast %cst_140 : f32 to vector<8x128xf32>
    %437 = arith.addf %436, %435 : vector<8x128xf32>
    %438 = arith.divf %436, %437 : vector<8x128xf32>
    %439 = vector.extract_strided_slice %432 {offsets = [0, 128], sizes = [8, 128], strides = [1, 1]} : vector<8x512xf32> to vector<8x128xf32>
    %440 = arith.negf %439 : vector<8x128xf32>
    %441 = math.exp %440 : vector<8x128xf32>
    %cst_141 = arith.constant 1.000000e+00 : f32
    %442 = vector.broadcast %cst_141 : f32 to vector<8x128xf32>
    %443 = arith.addf %442, %441 : vector<8x128xf32>
    %444 = arith.divf %442, %443 : vector<8x128xf32>
    %445 = vector.extract_strided_slice %432 {offsets = [0, 256], sizes = [8, 128], strides = [1, 1]} : vector<8x512xf32> to vector<8x128xf32>
    %446 = math.tanh %445 : vector<8x128xf32>
    %447 = vector.extract_strided_slice %432 {offsets = [0, 384], sizes = [8, 128], strides = [1, 1]} : vector<8x512xf32> to vector<8x128xf32>
    %448 = arith.negf %447 : vector<8x128xf32>
    %449 = math.exp %448 : vector<8x128xf32>
    %cst_142 = arith.constant 1.000000e+00 : f32
    %450 = vector.broadcast %cst_142 : f32 to vector<8x128xf32>
    %451 = arith.addf %450, %449 : vector<8x128xf32>
    %452 = arith.divf %450, %451 : vector<8x128xf32>
    %453 = arith.mulf %444, %421 : vector<8x128xf32>
    %454 = arith.mulf %438, %446 : vector<8x128xf32>
    %455 = arith.addf %453, %454 : vector<8x128xf32>
    %456 = math.tanh %455 : vector<8x128xf32>
    %457 = arith.mulf %452, %456 : vector<8x128xf32>
    %458 = arith.index_cast %427 : i32 to index
    %c0_143 = arith.constant 0 : index
    %459 = vector.load %arg9[%458, %c0_143] : memref<64x128xf32, #tpu.memory_space<vmem>>, vector<8x128xf32>
    tpu.vector_store %arg9[%458, %c0_143], %457 {strides = array<i32>} : memref<64x128xf32, #tpu.memory_space<vmem>>, vector<8x128xf32>,
    %c5_i32_144 = arith.constant 5 : i32
    %c8_i32_145 = arith.constant 8 : i32
    %460 = arith.muli %c5_i32_144, %c8_i32_145 : i32
    %461 = tpu.assume_multiple %460, 8 : i32
    %462 = arith.index_cast %461 : i32 to index
    %c0_146 = arith.constant 0 : index
    %463 = vector.load %arg12[%462, %c0_146] : memref<64x512xf32, #tpu.memory_space<vmem>>, vector<8x512xf32>
    %c0_147 = arith.constant 0 : index
    %c0_148 = arith.constant 0 : index
    %464 = vector.load %arg5[%c0_147, %c0_148] : memref<128x512xf32, #tpu.memory_space<vmem>>, vector<128x512xf32>
    %cst_149 = arith.constant dense<0.000000e+00> : vector<8x512xf32>
    %465 = tpu.matmul %457, %464, %cst_149 {dimension_numbers = #tpu.dot_dimension_numbers<[1], [0], [0], [1], [0, 0, 1, 1], [], []>} : vector<8x128xf32>, vector<128x512xf32>, vector<8x512xf32> -> vector<8x512xf32>
    %466 = arith.addf %463, %465 : vector<8x512xf32>
    %467 = vector.extract_strided_slice %466 {offsets = [0, 0], sizes = [8, 128], strides = [1, 1]} : vector<8x512xf32> to vector<8x128xf32>
    %468 = arith.negf %467 : vector<8x128xf32>
    %469 = math.exp %468 : vector<8x128xf32>
    %cst_150 = arith.constant 1.000000e+00 : f32
    %470 = vector.broadcast %cst_150 : f32 to vector<8x128xf32>
    %471 = arith.addf %470, %469 : vector<8x128xf32>
    %472 = arith.divf %470, %471 : vector<8x128xf32>
    %473 = vector.extract_strided_slice %466 {offsets = [0, 128], sizes = [8, 128], strides = [1, 1]} : vector<8x512xf32> to vector<8x128xf32>
    %474 = arith.negf %473 : vector<8x128xf32>
    %475 = math.exp %474 : vector<8x128xf32>
    %cst_151 = arith.constant 1.000000e+00 : f32
    %476 = vector.broadcast %cst_151 : f32 to vector<8x128xf32>
    %477 = arith.addf %476, %475 : vector<8x128xf32>
    %478 = arith.divf %476, %477 : vector<8x128xf32>
    %479 = vector.extract_strided_slice %466 {offsets = [0, 256], sizes = [8, 128], strides = [1, 1]} : vector<8x512xf32> to vector<8x128xf32>
    %480 = math.tanh %479 : vector<8x128xf32>
    %481 = vector.extract_strided_slice %466 {offsets = [0, 384], sizes = [8, 128], strides = [1, 1]} : vector<8x512xf32> to vector<8x128xf32>
    %482 = arith.negf %481 : vector<8x128xf32>
    %483 = math.exp %482 : vector<8x128xf32>
    %cst_152 = arith.constant 1.000000e+00 : f32
    %484 = vector.broadcast %cst_152 : f32 to vector<8x128xf32>
    %485 = arith.addf %484, %483 : vector<8x128xf32>
    %486 = arith.divf %484, %485 : vector<8x128xf32>
    %487 = arith.mulf %478, %455 : vector<8x128xf32>
    %488 = arith.mulf %472, %480 : vector<8x128xf32>
    %489 = arith.addf %487, %488 : vector<8x128xf32>
    %490 = math.tanh %489 : vector<8x128xf32>
    %491 = arith.mulf %486, %490 : vector<8x128xf32>
    %492 = arith.index_cast %461 : i32 to index
    %c0_153 = arith.constant 0 : index
    %493 = vector.load %arg9[%492, %c0_153] : memref<64x128xf32, #tpu.memory_space<vmem>>, vector<8x128xf32>
    tpu.vector_store %arg9[%492, %c0_153], %491 {strides = array<i32>} : memref<64x128xf32, #tpu.memory_space<vmem>>, vector<8x128xf32>,
    %c6_i32_154 = arith.constant 6 : i32
    %c8_i32_155 = arith.constant 8 : i32
    %494 = arith.muli %c6_i32_154, %c8_i32_155 : i32
    %495 = tpu.assume_multiple %494, 8 : i32
    %496 = arith.index_cast %495 : i32 to index
    %c0_156 = arith.constant 0 : index
    %497 = vector.load %arg12[%496, %c0_156] : memref<64x512xf32, #tpu.memory_space<vmem>>, vector<8x512xf32>
    %c0_157 = arith.constant 0 : index
    %c0_158 = arith.constant 0 : index
    %498 = vector.load %arg5[%c0_157, %c0_158] : memref<128x512xf32, #tpu.memory_space<vmem>>, vector<128x512xf32>
    %cst_159 = arith.constant dense<0.000000e+00> : vector<8x512xf32>
    %499 = tpu.matmul %491, %498, %cst_159 {dimension_numbers = #tpu.dot_dimension_numbers<[1], [0], [0], [1], [0, 0, 1, 1], [], []>} : vector<8x128xf32>, vector<128x512xf32>, vector<8x512xf32> -> vector<8x512xf32>
    %500 = arith.addf %497, %499 : vector<8x512xf32>
    %501 = vector.extract_strided_slice %500 {offsets = [0, 0], sizes = [8, 128], strides = [1, 1]} : vector<8x512xf32> to vector<8x128xf32>
    %502 = arith.negf %501 : vector<8x128xf32>
    %503 = math.exp %502 : vector<8x128xf32>
    %cst_160 = arith.constant 1.000000e+00 : f32
    %504 = vector.broadcast %cst_160 : f32 to vector<8x128xf32>
    %505 = arith.addf %504, %503 : vector<8x128xf32>
    %506 = arith.divf %504, %505 : vector<8x128xf32>
    %507 = vector.extract_strided_slice %500 {offsets = [0, 128], sizes = [8, 128], strides = [1, 1]} : vector<8x512xf32> to vector<8x128xf32>
    %508 = arith.negf %507 : vector<8x128xf32>
    %509 = math.exp %508 : vector<8x128xf32>
    %cst_161 = arith.constant 1.000000e+00 : f32
    %510 = vector.broadcast %cst_161 : f32 to vector<8x128xf32>
    %511 = arith.addf %510, %509 : vector<8x128xf32>
    %512 = arith.divf %510, %511 : vector<8x128xf32>
    %513 = vector.extract_strided_slice %500 {offsets = [0, 256], sizes = [8, 128], strides = [1, 1]} : vector<8x512xf32> to vector<8x128xf32>
    %514 = math.tanh %513 : vector<8x128xf32>
    %515 = vector.extract_strided_slice %500 {offsets = [0, 384], sizes = [8, 128], strides = [1, 1]} : vector<8x512xf32> to vector<8x128xf32>
    %516 = arith.negf %515 : vector<8x128xf32>
    %517 = math.exp %516 : vector<8x128xf32>
    %cst_162 = arith.constant 1.000000e+00 : f32
    %518 = vector.broadcast %cst_162 : f32 to vector<8x128xf32>
    %519 = arith.addf %518, %517 : vector<8x128xf32>
    %520 = arith.divf %518, %519 : vector<8x128xf32>
    %521 = arith.mulf %512, %489 : vector<8x128xf32>
    %522 = arith.mulf %506, %514 : vector<8x128xf32>
    %523 = arith.addf %521, %522 : vector<8x128xf32>
    %524 = math.tanh %523 : vector<8x128xf32>
    %525 = arith.mulf %520, %524 : vector<8x128xf32>
    %526 = arith.index_cast %495 : i32 to index
    %c0_163 = arith.constant 0 : index
    %527 = vector.load %arg9[%526, %c0_163] : memref<64x128xf32, #tpu.memory_space<vmem>>, vector<8x128xf32>
    tpu.vector_store %arg9[%526, %c0_163], %525 {strides = array<i32>} : memref<64x128xf32, #tpu.memory_space<vmem>>, vector<8x128xf32>,
    %c7_i32_164 = arith.constant 7 : i32
    %c8_i32_165 = arith.constant 8 : i32
    %528 = arith.muli %c7_i32_164, %c8_i32_165 : i32
    %529 = tpu.assume_multiple %528, 8 : i32
    %530 = arith.index_cast %529 : i32 to index
    %c0_166 = arith.constant 0 : index
    %531 = vector.load %arg12[%530, %c0_166] : memref<64x512xf32, #tpu.memory_space<vmem>>, vector<8x512xf32>
    %c0_167 = arith.constant 0 : index
    %c0_168 = arith.constant 0 : index
    %532 = vector.load %arg5[%c0_167, %c0_168] : memref<128x512xf32, #tpu.memory_space<vmem>>, vector<128x512xf32>
    %cst_169 = arith.constant dense<0.000000e+00> : vector<8x512xf32>
    %533 = tpu.matmul %525, %532, %cst_169 {dimension_numbers = #tpu.dot_dimension_numbers<[1], [0], [0], [1], [0, 0, 1, 1], [], []>} : vector<8x128xf32>, vector<128x512xf32>, vector<8x512xf32> -> vector<8x512xf32>
    %534 = arith.addf %531, %533 : vector<8x512xf32>
    %535 = vector.extract_strided_slice %534 {offsets = [0, 0], sizes = [8, 128], strides = [1, 1]} : vector<8x512xf32> to vector<8x128xf32>
    %536 = arith.negf %535 : vector<8x128xf32>
    %537 = math.exp %536 : vector<8x128xf32>
    %cst_170 = arith.constant 1.000000e+00 : f32
    %538 = vector.broadcast %cst_170 : f32 to vector<8x128xf32>
    %539 = arith.addf %538, %537 : vector<8x128xf32>
    %540 = arith.divf %538, %539 : vector<8x128xf32>
    %541 = vector.extract_strided_slice %534 {offsets = [0, 128], sizes = [8, 128], strides = [1, 1]} : vector<8x512xf32> to vector<8x128xf32>
    %542 = arith.negf %541 : vector<8x128xf32>
    %543 = math.exp %542 : vector<8x128xf32>
    %cst_171 = arith.constant 1.000000e+00 : f32
    %544 = vector.broadcast %cst_171 : f32 to vector<8x128xf32>
    %545 = arith.addf %544, %543 : vector<8x128xf32>
    %546 = arith.divf %544, %545 : vector<8x128xf32>
    %547 = vector.extract_strided_slice %534 {offsets = [0, 256], sizes = [8, 128], strides = [1, 1]} : vector<8x512xf32> to vector<8x128xf32>
    %548 = math.tanh %547 : vector<8x128xf32>
    %549 = vector.extract_strided_slice %534 {offsets = [0, 384], sizes = [8, 128], strides = [1, 1]} : vector<8x512xf32> to vector<8x128xf32>
    %550 = arith.negf %549 : vector<8x128xf32>
    %551 = math.exp %550 : vector<8x128xf32>
    %cst_172 = arith.constant 1.000000e+00 : f32
    %552 = vector.broadcast %cst_172 : f32 to vector<8x128xf32>
    %553 = arith.addf %552, %551 : vector<8x128xf32>
    %554 = arith.divf %552, %553 : vector<8x128xf32>
    %555 = arith.mulf %546, %523 : vector<8x128xf32>
    %556 = arith.mulf %540, %548 : vector<8x128xf32>
    %557 = arith.addf %555, %556 : vector<8x128xf32>
    %558 = math.tanh %557 : vector<8x128xf32>
    %559 = arith.mulf %554, %558 : vector<8x128xf32>
    %560 = arith.index_cast %529 : i32 to index
    %c0_173 = arith.constant 0 : index
    %561 = vector.load %arg9[%560, %c0_173] : memref<64x128xf32, #tpu.memory_space<vmem>>, vector<8x128xf32>
    tpu.vector_store %arg9[%560, %c0_173], %559 {strides = array<i32>} : memref<64x128xf32, #tpu.memory_space<vmem>>, vector<8x128xf32>,
    %c8_i32_174 = arith.constant 8 : i32
    %c0_175 = arith.constant 0 : index
    %c0_176 = arith.constant 0 : index
    %562 = vector.load %arg10[%c0_175, %c0_176] : memref<8x128xf32, #tpu.memory_space<vmem>>, vector<8x128xf32>
    tpu.vector_store %arg10[%c0_175, %c0_176], %559 {strides = array<i32>} : memref<8x128xf32, #tpu.memory_space<vmem>>, vector<8x128xf32>,
    %c0_177 = arith.constant 0 : index
    %c0_178 = arith.constant 0 : index
    %563 = vector.load %arg11[%c0_177, %c0_178] : memref<8x128xf32, #tpu.memory_space<vmem>>, vector<8x128xf32>
    tpu.vector_store %arg11[%c0_177, %c0_178], %557 {strides = array<i32>} : memref<8x128xf32, #tpu.memory_space<vmem>>, vector<8x128xf32>,
    return
  }
}

</mosaic_0001>

<llo_original>
// kernel: tpu_custom_call.1
$region0: #{tpu_custom_call.1}
  #allocation0 [shape = 'u32[]', space=smem, size = 0x4, offset = 0x4, fixed_abs, tag = 'smem constant byte address 0x4 - core index']
  #allocation1 [shape = 'u32[144,128]{1,0:T(1,128)}', space=vmem, size = 0x12000, scoped, tag = 'internal scratch']
  #allocation2 [shape = 'f32[64,512]{1,0:T(8,128)}', space=vmem, size = 0x20000, scoped, tag = 'scratch operand']
  %s0 = inlined_call_operand.hbm [shape: f32[64,128], index: 0, kind: input, shape index: {}]
  %s1 = inlined_call_operand.hbm [shape: f32[128,512], index: 1, kind: input, shape index: {}]
  %s2 = inlined_call_operand.hbm [shape: f32[128,512], index: 2, kind: input, shape index: {}]
  %s3 = inlined_call_operand.hbm [shape: f32[1,512], index: 3, kind: input, shape index: {}]
  %s4 = inlined_call_operand.hbm [shape: f32[128,512], index: 4, kind: input, shape index: {}]
  %s5 = inlined_call_operand.hbm [shape: f32[128,512], index: 5, kind: input, shape index: {}]
  %s6 = inlined_call_operand.vmem [shape: f32[1,512], index: 6, kind: input, shape index: {}]
  %s7 = inlined_call_operand.vmem [shape: f32[8,128], index: 7, kind: input, shape index: {}]
  %s8 = inlined_call_operand.vmem [shape: f32[8,128], index: 8, kind: input, shape index: {}]
  %s9 = inlined_call_operand.hbm [shape: f32[64,128], index: 9, kind: output, shape index: {0}]
  %s10 = inlined_call_operand.hbm [shape: f32[8,128], index: 10, kind: output, shape index: {1}]
  %s11 = inlined_call_operand.hbm [shape: f32[8,128], index: 11, kind: output, shape index: {2}]
  %12 = xla_tuple %s9, %s10, %s11
  %s13 = sld [smem:[#allocation0]]
  $region86: #{tpu_custom_call.1} parent=0
    _
  %s15 = ssub.s32 1, %s13
  %s16 = scalar_select 0, %s15, %s13
  $region1: #{tpu_custom_call.1} parent=0
    #allocation3 [shape = 'u8[32768]{0}', space=vmem, size = 0x8000, scoped, tag = 'input window, operand 0, single buffered']
    #allocation4 [shape = 's32[1]{0}', space=sflag, size = 0x4, scoped, tag = 'scoped memory for tpu_custom_call.1']
    #allocation5 [shape = 's32[1]{0}', space=sflag, size = 0x4, scoped, tag = 'scoped memory for tpu_custom_call.1']
    #allocation6 [shape = 'u8[262144]{0}', space=vmem, size = 0x40000, scoped, tag = 'input window, operand 1, single buffered']
    #allocation7 [shape = 's32[1]{0}', space=sflag, size = 0x4, scoped, tag = 'scoped memory for tpu_custom_call.1']
    #allocation8 [shape = 'u8[262144]{0}', space=vmem, size = 0x40000, scoped, tag = 'input window, operand 2, single buffered']
    #allocation9 [shape = 'u8[2048]{0}', space=vmem, size = 0x800, scoped, tag = 'input window, operand 3, single buffered']
    #allocation10 [shape = 's32[1]{0}', space=sflag, size = 0x4, scoped, tag = 'scoped memory for tpu_custom_call.1']
    #allocation11 [shape = 'u8[262144]{0}', space=vmem, size = 0x40000, scoped, tag = 'input window, operand 4, single buffered']
    #allocation12 [shape = 'u8[262144]{0}', space=vmem, size = 0x40000, scoped, tag = 'input window, operand 5, single buffered']
    #allocation13 [shape = 's32[1]{0}', space=sflag, size = 0x4, scoped, tag = 'scoped memory for tpu_custom_call.1']
    #allocation14 [shape = 'u8[32768]{0}', space=vmem, size = 0x8000, scoped, tag = 'output window, operand 0, single buffered']
    #allocation15 [shape = 'u8[4096]{0}', space=vmem, size = 0x1000, scoped, tag = 'output window, operand 1, single buffered']
    #allocation16 [shape = 's32[1]{0}', space=sflag, size = 0x4, scoped, tag = 'scoped memory for tpu_custom_call.1']
    #allocation17 [shape = 'u8[4096]{0}', space=vmem, size = 0x1000, scoped, tag = 'output window, operand 2, single buffered']
    %17 = vsyncpa [#allocation4], 0
    %18 = vsyncpa [#allocation7], 0
    %19 = vsyncpa [#allocation10], 0
    %20 = vsyncpa [#allocation13], 0
    %21 = vsyncpa [#allocation5], 0
    %22 = vsyncpa [#allocation16], 0
    // Predicated region
    $region2: #{tpu_custom_call.1} parent=1 // pred_check
      _
    $region3: #{tpu_custom_call.1} parent=1 // pred_check_branch
      %24 = sbr.rel (0) target = $region5
    $region4: #{tpu_custom_call.1} parent=1 // pred_region
      %s26 = ssub.s32 1024, 1024
      %27 = vsyncadd [#allocation4], %s26
      %s28 = sshll.u32 [#allocation3], 4
      %s29 = int_to_ptr.vmem [resolvable:$true] %s28
      %34 = dma.hbm_to_vmem [thread:$0]  %s0, 1024, %s29, [#allocation4], 128, 128, 8
    $region5: #{tpu_custom_call.1} parent=1 // pred_fallthru
      _
    // Predicated region
    $region6: #{tpu_custom_call.1} parent=1 // pred_check
      _
    $region7: #{tpu_custom_call.1} parent=1 // pred_check_branch
      %36 = sbr.rel (0) target = $region9
    $region8: #{tpu_custom_call.1} parent=1 // pred_region
      %s38 = ssub.s32 8192, 8192
      %39 = vsyncadd [#allocation7], %s38
      %s40 = sshll.u32 [#allocation6], 4
      %s41 = int_to_ptr.vmem [resolvable:$true] %s40
      %46 = dma.hbm_to_vmem [thread:$0]  %s1, 8192, %s41, [#allocation7], 512, 512, 32
    $region9: #{tpu_custom_call.1} parent=1 // pred_fallthru
      _
    // Predicated region
    $region10: #{tpu_custom_call.1} parent=1 // pred_check
      _
    $region11: #{tpu_custom_call.1} parent=1 // pred_check_branch
      %48 = sbr.rel (0) target = $region13
    $region12: #{tpu_custom_call.1} parent=1 // pred_region
      %s50 = ssub.s32 8192, 8192
      %51 = vsyncadd [#allocation7], %s50
      %s52 = sshll.u32 [#allocation8], 4
      %s53 = int_to_ptr.vmem [resolvable:$true] %s52
      %58 = dma.hbm_to_vmem [thread:$0]  %s2, 8192, %s53, [#allocation7], 512, 512, 32
    $region13: #{tpu_custom_call.1} parent=1 // pred_fallthru
      _
    // Predicated region
    $region14: #{tpu_custom_call.1} parent=1 // pred_check
      _
    $region15: #{tpu_custom_call.1} parent=1 // pred_check_branch
      %60 = sbr.rel (0) target = $region17
    $region16: #{tpu_custom_call.1} parent=1 // pred_region
      %s62 = ssub.s32 64, 64
      %63 = vsyncadd [#allocation10], %s62
      %s65 = sshll.u32 [#allocation9], 4
      %s66 = int_to_ptr.vmem [resolvable:$true] %s65
      %68 = dma.hbm_to_vmem [thread:$0]  %s3, 64, %s66, [#allocation10]
    $region17: #{tpu_custom_call.1} parent=1 // pred_fallthru
      _
    // Predicated region
    $region18: #{tpu_custom_call.1} parent=1 // pred_check
      _
    $region19: #{tpu_custom_call.1} parent=1 // pred_check_branch
      %70 = sbr.rel (0) target = $region21
    $region20: #{tpu_custom_call.1} parent=1 // pred_region
      %s72 = ssub.s32 8192, 8192
      %73 = vsyncadd [#allocation10], %s72
      %s74 = sshll.u32 [#allocation11], 4
      %s75 = int_to_ptr.vmem [resolvable:$true] %s74
      %80 = dma.hbm_to_vmem [thread:$0]  %s4, 8192, %s75, [#allocation10], 512, 512, 32
    $region21: #{tpu_custom_call.1} parent=1 // pred_fallthru
      _
    // Predicated region
    $region22: #{tpu_custom_call.1} parent=1 // pred_check
      _
    $region23: #{tpu_custom_call.1} parent=1 // pred_check_branch
      %82 = sbr.rel (0) target = $region25
    $region24: #{tpu_custom_call.1} parent=1 // pred_region
      %s84 = ssub.s32 8192, 8192
      %85 = vsyncadd [#allocation13], %s84
      %s86 = sshll.u32 [#allocation12], 4
      %s87 = int_to_ptr.vmem [resolvable:$true] %s86
      %92 = dma.hbm_to_vmem [thread:$0]  %s5, 8192, %s87, [#allocation13], 512, 512, 32
    $region25: #{tpu_custom_call.1} parent=1 // pred_fallthru
      _
    // Predicated region
    $region26: #{tpu_custom_call.1} parent=1 // pred_check
      _
    $region27: #{tpu_custom_call.1} parent=1 // pred_check_branch
      %94 = sbr.rel (0) target = $region29
    $region28: #{tpu_custom_call.1} parent=1 // pred_region
      _
    $region29: #{tpu_custom_call.1} parent=1 // pred_fallthru
      _
    // Predicated region
    $region30: #{tpu_custom_call.1} parent=1 // pred_check
      _
    $region31: #{tpu_custom_call.1} parent=1 // pred_check_branch
      %96 = sbr.rel (0) target = $region33
    $region32: #{tpu_custom_call.1} parent=1 // pred_region
      _
    $region33: #{tpu_custom_call.1} parent=1 // pred_fallthru
      _
    // Predicated region
    $region34: #{tpu_custom_call.1} parent=1 // pred_check
      _
    $region35: #{tpu_custom_call.1} parent=1 // pred_check_branch
      %98 = sbr.rel (0) target = $region37
    $region36: #{tpu_custom_call.1} parent=1 // pred_region
      _
    $region37: #{tpu_custom_call.1} parent=1 // pred_fallthru
      _
    // Predicated region
    $region38: #{tpu_custom_call.1} parent=1 // pred_check
      _
    $region39: #{tpu_custom_call.1} parent=1 // pred_check_branch
      %100 = sbr.rel (0) target = $region41
    $region40: #{tpu_custom_call.1} parent=1 // pred_region
      %101 = dma.done [#allocation4], 1024
    $region41: #{tpu_custom_call.1} parent=1 // pred_fallthru
      _
    // Predicated region
    $region42: #{tpu_custom_call.1} parent=1 // pred_check
      _
    $region43: #{tpu_custom_call.1} parent=1 // pred_check_branch
      %103 = sbr.rel (0) target = $region45
    $region44: #{tpu_custom_call.1} parent=1 // pred_region
      %104 = dma.done [#allocation7], 8192
    $region45: #{tpu_custom_call.1} parent=1 // pred_fallthru
      _
    // Predicated region
    $region46: #{tpu_custom_call.1} parent=1 // pred_check
      _
    $region47: #{tpu_custom_call.1} parent=1 // pred_check_branch
      %106 = sbr.rel (0) target = $region49
    $region48: #{tpu_custom_call.1} parent=1 // pred_region
      %107 = dma.done [#allocation7], 8192
    $region49: #{tpu_custom_call.1} parent=1 // pred_fallthru
      _
    // Predicated region
    $region50: #{tpu_custom_call.1} parent=1 // pred_check
      _
    $region51: #{tpu_custom_call.1} parent=1 // pred_check_branch
      %109 = sbr.rel (0) target = $region53
    $region52: #{tpu_custom_call.1} parent=1 // pred_region
      %110 = dma.done [#allocation10], 64
    $region53: #{tpu_custom_call.1} parent=1 // pred_fallthru
      _
    // Predicated region
    $region54: #{tpu_custom_call.1} parent=1 // pred_check
      _
    $region55: #{tpu_custom_call.1} parent=1 // pred_check_branch
      %112 = sbr.rel (0) target = $region57
    $region56: #{tpu_custom_call.1} parent=1 // pred_region
      %113 = dma.done [#allocation10], 8192
    $region57: #{tpu_custom_call.1} parent=1 // pred_fallthru
      _
    // Predicated region
    $region58: #{tpu_custom_call.1} parent=1 // pred_check
      _
    $region59: #{tpu_custom_call.1} parent=1 // pred_check_branch
      %115 = sbr.rel (0) target = $region61
    $region60: #{tpu_custom_call.1} parent=1 // pred_region
      %116 = dma.done [#allocation13], 8192
    $region61: #{tpu_custom_call.1} parent=1 // pred_fallthru
      _
    %v117 = vld [vmem:[%s7] sm:$0xff]
    %v118 = vld [vmem:[%s8] sm:$0xff]
    %v119 = vld [vmem:[#allocation3] sm:$0xff]
    %v120 = vld [vmem:[#allocation3 + $0x8] sm:$0xff]
    %v121 = vld [vmem:[#allocation3 + $0x10] sm:$0xff]
    %v122 = vld [vmem:[#allocation3 + $0x18] sm:$0xff]
    %v123 = vld [vmem:[#allocation3 + $0x20] sm:$0xff]
    %v124 = vld [vmem:[#allocation3 + $0x28] sm:$0xff]
    %v125 = vld [vmem:[#allocation3 + $0x30] sm:$0xff]
    %v126 = vld [vmem:[#allocation3 + $0x38] sm:$0xff]
    %v127 = vld [vmem:[#allocation6] sm:$0xff]
    %v128 = vld [vmem:[#allocation6 + $0x8] sm:$0xff]
    %v129 = vld [vmem:[#allocation6 + $0x10] sm:$0xff]
    %v130 = vld [vmem:[#allocation6 + $0x18] sm:$0xff]
    %v131 = vld [vmem:[#allocation6 + $0x20] sm:$0xff]
    %v132 = vld [vmem:[#allocation6 + $0x28] sm:$0xff]
    %v133 = vld [vmem:[#allocation6 + $0x30] sm:$0xff]
    %v134 = vld [vmem:[#allocation6 + $0x38] sm:$0xff]
    %v135 = vld [vmem:[#allocation6 + $0x40] sm:$0xff]
    %v136 = vld [vmem:[#allocation6 + $0x48] sm:$0xff]
    %v137 = vld [vmem:[#allocation6 + $0x50] sm:$0xff]
    %v138 = vld [vmem:[#allocation6 + $0x58] sm:$0xff]
    %v139 = vld [vmem:[#allocation6 + $0x60] sm:$0xff]
    %v140 = vld [vmem:[#allocation6 + $0x68] sm:$0xff]
    %v141 = vld [vmem:[#allocation6 + $0x70] sm:$0xff]
    %v142 = vld [vmem:[#allocation6 + $0x78] sm:$0xff]
    %v143 = vld [vmem:[#allocation6 + $0x80] sm:$0xff]
    %v144 = vld [vmem:[#allocation6 + $0x88] sm:$0xff]
    %v145 = vld [vmem:[#allocation6 + $0x90] sm:$0xff]
    %v146 = vld [vmem:[#allocation6 + $0x98] sm:$0xff]
    %v147 = vld [vmem:[#allocation6 + $0xa0] sm:$0xff]
    %v148 = vld [vmem:[#allocation6 + $0xa8] sm:$0xff]
    %v149 = vld [vmem:[#allocation6 + $0xb0] sm:$0xff]
    %v150 = vld [vmem:[#allocation6 + $0xb8] sm:$0xff]
    %v151 = vld [vmem:[#allocation6 + $0xc0] sm:$0xff]
    %v152 = vld [vmem:[#allocation6 + $0xc8] sm:$0xff]
    %v153 = vld [vmem:[#allocation6 + $0xd0] sm:$0xff]
    %v154 = vld [vmem:[#allocation6 + $0xd8] sm:$0xff]
    %v155 = vld [vmem:[#allocation6 + $0xe0] sm:$0xff]
    %v156 = vld [vmem:[#allocation6 + $0xe8] sm:$0xff]
    %v157 = vld [vmem:[#allocation6 + $0xf0] sm:$0xff]
    %v158 = vld [vmem:[#allocation6 + $0xf8] sm:$0xff]
    %v159 = vld [vmem:[#allocation6 + $0x100] sm:$0xff]
    %v160 = vld [vmem:[#allocation6 + $0x108] sm:$0xff]
    %v161 = vld [vmem:[#allocation6 + $0x110] sm:$0xff]
    %v162 = vld [vmem:[#allocation6 + $0x118] sm:$0xff]
    %v163 = vld [vmem:[#allocation6 + $0x120] sm:$0xff]
    %v164 = vld [vmem:[#allocation6 + $0x128] sm:$0xff]
    %v165 = vld [vmem:[#allocation6 + $0x130] sm:$0xff]
    %v166 = vld [vmem:[#allocation6 + $0x138] sm:$0xff]
    %v167 = vld [vmem:[#allocation6 + $0x140] sm:$0xff]
    %v168 = vld [vmem:[#allocation6 + $0x148] sm:$0xff]
    %v169 = vld [vmem:[#allocation6 + $0x150] sm:$0xff]
    %v170 = vld [vmem:[#allocation6 + $0x158] sm:$0xff]
    %v171 = vld [vmem:[#allocation6 + $0x160] sm:$0xff]
    %v172 = vld [vmem:[#allocation6 + $0x168] sm:$0xff]
    %v173 = vld [vmem:[#allocation6 + $0x170] sm:$0xff]
    %v174 = vld [vmem:[#allocation6 + $0x178] sm:$0xff]
    %v175 = vld [vmem:[#allocation6 + $0x180] sm:$0xff]
    %v176 = vld [vmem:[#allocation6 + $0x188] sm:$0xff]
    %v177 = vld [vmem:[#allocation6 + $0x190] sm:$0xff]
    %v178 = vld [vmem:[#allocation6 + $0x198] sm:$0xff]
    %v179 = vld [vmem:[#allocation6 + $0x1a0] sm:$0xff]
    %v180 = vld [vmem:[#allocation6 + $0x1a8] sm:$0xff]
    %v181 = vld [vmem:[#allocation6 + $0x1b0] sm:$0xff]
    %v182 = vld [vmem:[#allocation6 + $0x1b8] sm:$0xff]
    %v183 = vld [vmem:[#allocation6 + $0x1c0] sm:$0xff]
    %v184 = vld [vmem:[#allocation6 + $0x1c8] sm:$0xff]
    %v185 = vld [vmem:[#allocation6 + $0x1d0] sm:$0xff]
    %v186 = vld [vmem:[#allocation6 + $0x1d8] sm:$0xff]
    %v187 = vld [vmem:[#allocation6 + $0x1e0] sm:$0xff]
    %v188 = vld [vmem:[#allocation6 + $0x1e8] sm:$0xff]
    %v189 = vld [vmem:[#allocation6 + $0x1f0] sm:$0xff]
    %v190 = vld [vmem:[#allocation6 + $0x1f8] sm:$0xff]
    %v191 = vld [vmem:[#allocation9] sm:$0xf]
    %v193 = vlaneseq
    %v194 = vshrl.u32 %v193, 7
    %v195 = vsub.s32 0, %v194
    %v196 = vrot.slane %v191, %v195
    %v197 = vlaneseq
    %v198 = vshrl.u32 %v197, 7
    %v199 = vsub.s32 1, %v198
    %v200 = vrot.slane %v191, %v199
    %v201 = vlaneseq
    %v202 = vshrl.u32 %v201, 7
    %v203 = vsub.s32 2, %v202
    %v204 = vrot.slane %v191, %v203
    %v205 = vlaneseq
    %v206 = vshrl.u32 %v205, 7
    %v207 = vsub.s32 3, %v206
    %v208 = vrot.slane %v191, %v207
    %213 = vmatprep.subr.mxu0 %v128
    %214 = vmatpush1.msra.mxu0 %v127
    %215 = vmatprep.subr.mxu0 %v132
    %216 = vmatpush1.msra.mxu0 %v131
    %217 = vmatprep.subr.mxu0 %v136
    %218 = vmatpush1.msra.mxu0 %v135
    %219 = vmatprep.subr.mxu0 %v140
    %220 = vmatpush1.msra.mxu0 %v139
    %221 = vmatprep.subr.mxu0 %v144
    %222 = vmatpush1.msra.mxu0 %v143
    %223 = vmatprep.subr.mxu0 %v148
    %224 = vmatpush1.msra.mxu0 %v147
    %225 = vmatprep.subr.mxu0 %v152
    %226 = vmatpush1.msra.mxu0 %v151
    %227 = vmatprep.subr.mxu0 %v156
    %228 = vmatpush1.msra.mxu0 %v155
    %229 = vmatprep.subr.mxu0 %v160
    %230 = vmatpush1.msra.mxu0 %v159
    %231 = vmatprep.subr.mxu0 %v164
    %232 = vmatpush1.msra.mxu0 %v163
    %233 = vmatprep.subr.mxu0 %v168
    %234 = vmatpush1.msra.mxu0 %v167
    %235 = vmatprep.subr.mxu0 %v172
    %236 = vmatpush1.msra.mxu0 %v171
    %237 = vmatprep.subr.mxu0 %v176
    %238 = vmatpush1.msra.mxu0 %v175
    %239 = vmatprep.subr.mxu0 %v180
    %240 = vmatpush1.msra.mxu0 %v179
    %241 = vmatprep.subr.mxu0 %v184
    %242 = vmatpush1.msra.mxu0 %v183
    %243 = vmatprep.subr.mxu0 %v188
    %244 = vmatpush1.msra.mxu0 %v187
    %245 = vmatprep.subr.mxu0 0.0
    %246 = vmatpush1.msra.mxu0 0.0
    %247 = vmatprep.subr.mxu0 0.0
    %248 = vmatpush1.msra.mxu0 0.0
    %249 = vmatprep.subr.mxu0 0.0
    %250 = vmatpush1.msra.mxu0 0.0
    %251 = vmatprep.subr.mxu0 0.0
    %252 = vmatpush1.msra.mxu0 0.0
    %253 = vmatprep.subr.mxu0 0.0
    %254 = vmatpush1.msra.mxu0 0.0
    %255 = vmatprep.subr.mxu0 0.0
    %256 = vmatpush1.msra.mxu0 0.0
    %257 = vmatprep.subr.mxu0 0.0
    %258 = vmatpush1.msra.mxu0 0.0
    %259 = vmatprep.subr.mxu0 0.0
    %260 = vmatpush1.msra.mxu0 0.0
    %261 = vmatprep.subr.mxu0 0.0
    %262 = vmatpush1.msra.mxu0 0.0
    %263 = vmatprep.subr.mxu0 0.0
    %264 = vmatpush1.msra.mxu0 0.0
    %265 = vmatprep.subr.mxu0 0.0
    %266 = vmatpush1.msra.mxu0 0.0
    %267 = vmatprep.subr.mxu0 0.0
    %268 = vmatpush1.msra.mxu0 0.0
    %269 = vmatprep.subr.mxu0 0.0
    %270 = vmatpush1.msra.mxu0 0.0
    %271 = vmatprep.subr.mxu0 0.0
    %272 = vmatpush1.msra.mxu0 0.0
    %273 = vmatprep.subr.mxu0 0.0
    %274 = vmatpush1.msra.mxu0 0.0
    %275 = vmatprep.subr.mxu0 0.0
    %276 = vmatpush1.msra.mxu0 0.0
    %277 = vmatprep.mubr.f32.mxu0 0.0
    %278 = vmatmul.mubr.f32.gmra.mrb[0].mxu0 %v119
    %v279 = vpop.f32.mrb[0].mxu0
    %v280 = vadd.f32 %v196, %v279
    %v281 = vpop.f32.mrb[0].mxu0
    %v282 = vadd.f32 %v200, %v281
    %283 = vmatprep.mubr.f32.mxu0 0.0
    %284 = vmatmul.mubr.f32.gmra.mrb[0].mxu0 %v120
    %v285 = vpop.f32.mrb[0].mxu0
    %v286 = vadd.f32 %v196, %v285
    %v287 = vpop.f32.mrb[0].mxu0
    %v288 = vadd.f32 %v200, %v287
    %289 = vmatprep.mubr.f32.mxu0 0.0
    %290 = vmatmul.mubr.f32.gmra.mrb[0].mxu0 %v121
    %v291 = vpop.f32.mrb[0].mxu0
    %v292 = vadd.f32 %v196, %v291
    %v293 = vpop.f32.mrb[0].mxu0
    %v294 = vadd.f32 %v200, %v293
    %295 = vmatprep.mubr.f32.mxu0 0.0
    %296 = vmatmul.mubr.f32.gmra.mrb[0].mxu0 %v122
    %v297 = vpop.f32.mrb[0].mxu0
    %v298 = vadd.f32 %v196, %v297
    %v299 = vpop.f32.mrb[0].mxu0
    %v300 = vadd.f32 %v200, %v299
    %301 = vmatprep.mubr.f32.mxu0 0.0
    %302 = vmatmul.mubr.f32.gmra.mrb[0].mxu0 %v123
    %v303 = vpop.f32.mrb[0].mxu0
    %v304 = vadd.f32 %v196, %v303
    %v305 = vpop.f32.mrb[0].mxu0
    %v306 = vadd.f32 %v200, %v305
    %307 = vmatprep.mubr.f32.mxu0 0.0
    %308 = vmatmul.mubr.f32.gmra.mrb[0].mxu0 %v124
    %v309 = vpop.f32.mrb[0].mxu0
    %v310 = vadd.f32 %v196, %v309
    %v311 = vpop.f32.mrb[0].mxu0
    %v312 = vadd.f32 %v200, %v311
    %313 = vmatprep.mubr.f32.mxu0 0.0
    %314 = vmatmul.mubr.f32.gmra.mrb[0].mxu0 %v125
    %v315 = vpop.f32.mrb[0].mxu0
    %v316 = vadd.f32 %v196, %v315
    %v317 = vpop.f32.mrb[0].mxu0
    %v318 = vadd.f32 %v200, %v317
    %319 = vmatprep.mubr.f32.mxu0 0.0
    %320 = vmatmul.mubr.f32.gmra.mrb[0].mxu0 %v126
    %v321 = vpop.f32.mrb[0].mxu0
    %v322 = vadd.f32 %v196, %v321
    %v323 = vpop.f32.mrb[0].mxu0
    %v324 = vadd.f32 %v200, %v323
    %325 = vdwg.mxu0
    %326 = vmatprep.subr.mxu0 %v130
    %327 = vmatpush1.msra.mxu0 %v129
    %328 = vmatprep.subr.mxu0 %v134
    %329 = vmatpush1.msra.mxu0 %v133
    %330 = vmatprep.subr.mxu0 %v138
    %331 = vmatpush1.msra.mxu0 %v137
    %332 = vmatprep.subr.mxu0 %v142
    %333 = vmatpush1.msra.mxu0 %v141
    %334 = vmatprep.subr.mxu0 %v146
    %335 = vmatpush1.msra.mxu0 %v145
    %336 = vmatprep.subr.mxu0 %v150
    %337 = vmatpush1.msra.mxu0 %v149
    %338 = vmatprep.subr.mxu0 %v154
    %339 = vmatpush1.msra.mxu0 %v153
    %340 = vmatprep.subr.mxu0 %v158
    %341 = vmatpush1.msra.mxu0 %v157
    %342 = vmatprep.subr.mxu0 %v162
    %343 = vmatpush1.msra.mxu0 %v161
    %344 = vmatprep.subr.mxu0 %v166
    %345 = vmatpush1.msra.mxu0 %v165
    %346 = vmatprep.subr.mxu0 %v170
    %347 = vmatpush1.msra.mxu0 %v169
    %348 = vmatprep.subr.mxu0 %v174
    %349 = vmatpush1.msra.mxu0 %v173
    %350 = vmatprep.subr.mxu0 %v178
    %351 = vmatpush1.msra.mxu0 %v177
    %352 = vmatprep.subr.mxu0 %v182
    %353 = vmatpush1.msra.mxu0 %v181
    %354 = vmatprep.subr.mxu0 %v186
    %355 = vmatpush1.msra.mxu0 %v185
    %356 = vmatprep.subr.mxu0 %v190
    %357 = vmatpush1.msra.mxu0 %v189
    %358 = vmatprep.subr.mxu0 0.0
    %359 = vmatpush1.msra.mxu0 0.0
    %360 = vmatprep.subr.mxu0 0.0
    %361 = vmatpush1.msra.mxu0 0.0
    %362 = vmatprep.subr.mxu0 0.0
    %363 = vmatpush1.msra.mxu0 0.0
    %364 = vmatprep.subr.mxu0 0.0
    %365 = vmatpush1.msra.mxu0 0.0
    %366 = vmatprep.subr.mxu0 0.0
    %367 = vmatpush1.msra.mxu0 0.0
    %368 = vmatprep.subr.mxu0 0.0
    %369 = vmatpush1.msra.mxu0 0.0
    %370 = vmatprep.subr.mxu0 0.0
    %371 = vmatpush1.msra.mxu0 0.0
    %372 = vmatprep.subr.mxu0 0.0
    %373 = vmatpush1.msra.mxu0 0.0
    %374 = vmatprep.subr.mxu0 0.0
    %375 = vmatpush1.msra.mxu0 0.0
    %376 = vmatprep.subr.mxu0 0.0
    %377 = vmatpush1.msra.mxu0 0.0
    %378 = vmatprep.subr.mxu0 0.0
    %379 = vmatpush1.msra.mxu0 0.0
    %380 = vmatprep.subr.mxu0 0.0
    %381 = vmatpush1.msra.mxu0 0.0
    %382 = vmatprep.subr.mxu0 0.0
    %383 = vmatpush1.msra.mxu0 0.0
    %384 = vmatprep.subr.mxu0 0.0
    %385 = vmatpush1.msra.mxu0 0.0
    %386 = vmatprep.subr.mxu0 0.0
    %387 = vmatpush1.msra.mxu0 0.0
    %388 = vmatprep.subr.mxu0 0.0
    %389 = vmatpush1.msra.mxu0 0.0
    %390 = vmatprep.mubr.f32.mxu0 0.0
    %391 = vmatmul.mubr.f32.gmra.mrb[0].mxu0 %v119
    %v392 = vpop.f32.mrb[0].mxu0
    %v393 = vadd.f32 %v204, %v392
    %v394 = vpop.f32.mrb[0].mxu0
    %v395 = vadd.f32 %v208, %v394
    %396 = vmatprep.mubr.f32.mxu0 0.0
    %397 = vmatmul.mubr.f32.gmra.mrb[0].mxu0 %v120
    %v398 = vpop.f32.mrb[0].mxu0
    %v399 = vadd.f32 %v204, %v398
    %v400 = vpop.f32.mrb[0].mxu0
    %v401 = vadd.f32 %v208, %v400
    %402 = vmatprep.mubr.f32.mxu0 0.0
    %403 = vmatmul.mubr.f32.gmra.mrb[0].mxu0 %v121
    %v404 = vpop.f32.mrb[0].mxu0
    %v405 = vadd.f32 %v204, %v404
    %v406 = vpop.f32.mrb[0].mxu0
    %v407 = vadd.f32 %v208, %v406
    %408 = vmatprep.mubr.f32.mxu0 0.0
    %409 = vmatmul.mubr.f32.gmra.mrb[0].mxu0 %v122
    %v410 = vpop.f32.mrb[0].mxu0
    %v411 = vadd.f32 %v204, %v410
    %v412 = vpop.f32.mrb[0].mxu0
    %v413 = vadd.f32 %v208, %v412
    %414 = vmatprep.mubr.f32.mxu0 0.0
    %415 = vmatmul.mubr.f32.gmra.mrb[0].mxu0 %v123
    %v416 = vpop.f32.mrb[0].mxu0
    %v417 = vadd.f32 %v204, %v416
    %v418 = vpop.f32.mrb[0].mxu0
    %v419 = vadd.f32 %v208, %v418
    %420 = vmatprep.mubr.f32.mxu0 0.0
    %421 = vmatmul.mubr.f32.gmra.mrb[0].mxu0 %v124
    %v422 = vpop.f32.mrb[0].mxu0
    %v423 = vadd.f32 %v204, %v422
    %v424 = vpop.f32.mrb[0].mxu0
    %v425 = vadd.f32 %v208, %v424
    %426 = vmatprep.mubr.f32.mxu0 0.0
    %427 = vmatmul.mubr.f32.gmra.mrb[0].mxu0 %v125
    %v428 = vpop.f32.mrb[0].mxu0
    %v429 = vadd.f32 %v204, %v428
    %v430 = vpop.f32.mrb[0].mxu0
    %v431 = vadd.f32 %v208, %v430
    %432 = vmatprep.mubr.f32.mxu0 0.0
    %433 = vmatmul.mubr.f32.gmra.mrb[0].mxu0 %v126
    %v434 = vpop.f32.mrb[0].mxu0
    %v435 = vadd.f32 %v204, %v434
    %v436 = vpop.f32.mrb[0].mxu0
    %v437 = vadd.f32 %v208, %v436
    %438 = vdwg.mxu0
    %439 = vst [vmem:[#allocation2] sm:$0xff] %v280
    %440 = vst [vmem:[#allocation2 + $0x8] sm:$0xff] %v282
    %441 = vst [vmem:[#allocation2 + $0x10] sm:$0xff] %v393
    %442 = vst [vmem:[#allocation2 + $0x18] sm:$0xff] %v395
    %443 = vst [vmem:[#allocation2 + $0x20] sm:$0xff] %v286
    %444 = vst [vmem:[#allocation2 + $0x28] sm:$0xff] %v288
    %445 = vst [vmem:[#allocation2 + $0x30] sm:$0xff] %v399
    %446 = vst [vmem:[#allocation2 + $0x38] sm:$0xff] %v401
    %447 = vst [vmem:[#allocation2 + $0x40] sm:$0xff] %v292
    %448 = vst [vmem:[#allocation2 + $0x48] sm:$0xff] %v294
    %449 = vst [vmem:[#allocation2 + $0x50] sm:$0xff] %v405
    %450 = vst [vmem:[#allocation2 + $0x58] sm:$0xff] %v407
    %451 = vst [vmem:[#allocation2 + $0x60] sm:$0xff] %v298
    %452 = vst [vmem:[#allocation2 + $0x68] sm:$0xff] %v300
    %453 = vst [vmem:[#allocation2 + $0x70] sm:$0xff] %v411
    %454 = vst [vmem:[#allocation2 + $0x78] sm:$0xff] %v413
    %455 = vst [vmem:[#allocation2 + $0x80] sm:$0xff] %v304
    %456 = vst [vmem:[#allocation2 + $0x88] sm:$0xff] %v306
    %457 = vst [vmem:[#allocation2 + $0x90] sm:$0xff] %v417
    %458 = vst [vmem:[#allocation2 + $0x98] sm:$0xff] %v419
    %459 = vst [vmem:[#allocation2 + $0xa0] sm:$0xff] %v310
    %460 = vst [vmem:[#allocation2 + $0xa8] sm:$0xff] %v312
    %461 = vst [vmem:[#allocation2 + $0xb0] sm:$0xff] %v423
    %462 = vst [vmem:[#allocation2 + $0xb8] sm:$0xff] %v425
    %463 = vst [vmem:[#allocation2 + $0xc0] sm:$0xff] %v316
    %464 = vst [vmem:[#allocation2 + $0xc8] sm:$0xff] %v318
    %465 = vst [vmem:[#allocation2 + $0xd0] sm:$0xff] %v429
    %466 = vst [vmem:[#allocation2 + $0xd8] sm:$0xff] %v431
    %467 = vst [vmem:[#allocation2 + $0xe0] sm:$0xff] %v322
    %468 = vst [vmem:[#allocation2 + $0xe8] sm:$0xff] %v324
    %469 = vst [vmem:[#allocation2 + $0xf0] sm:$0xff] %v435
    %470 = vst [vmem:[#allocation2 + $0xf8] sm:$0xff] %v437
    %s471 = smul.u32 0, 4
    %s472 = smul.addr %s471, 8
    %s473 = scalar_lea.vmem [#allocation2], %s472
    %v474 = vld [vmem:[%s473] sm:$0xff]
    %v475 = vld [vmem:[%s473 + $0x8] sm:$0xff]
    %v476 = vld [vmem:[%s473 + $0x10] sm:$0xff]
    %v477 = vld [vmem:[%s473 + $0x18] sm:$0xff]
    %v478 = vld [vmem:[#allocation8] sm:$0xff]
    %v479 = vld [vmem:[#allocation8 + $0x8] sm:$0xff]
    %v480 = vld [vmem:[#allocation8 + $0x10] sm:$0xff]
    %v481 = vld [vmem:[#allocation8 + $0x18] sm:$0xff]
    %v482 = vld [vmem:[#allocation8 + $0x20] sm:$0xff]
    %v483 = vld [vmem:[#allocation8 + $0x28] sm:$0xff]
    %v484 = vld [vmem:[#allocation8 + $0x30] sm:$0xff]
    %v485 = vld [vmem:[#allocation8 + $0x38] sm:$0xff]
    %v486 = vld [vmem:[#allocation8 + $0x40] sm:$0xff]
    %v487 = vld [vmem:[#allocation8 + $0x48] sm:$0xff]
    %v488 = vld [vmem:[#allocation8 + $0x50] sm:$0xff]
    %v489 = vld [vmem:[#allocation8 + $0x58] sm:$0xff]
    %v490 = vld [vmem:[#allocation8 + $0x60] sm:$0xff]
    %v491 = vld [vmem:[#allocation8 + $0x68] sm:$0xff]
    %v492 = vld [vmem:[#allocation8 + $0x70] sm:$0xff]
    %v493 = vld [vmem:[#allocation8 + $0x78] sm:$0xff]
    %v494 = vld [vmem:[#allocation8 + $0x80] sm:$0xff]
    %v495 = vld [vmem:[#allocation8 + $0x88] sm:$0xff]
    %v496 = vld [vmem:[#allocation8 + $0x90] sm:$0xff]
    %v497 = vld [vmem:[#allocation8 + $0x98] sm:$0xff]
    %v498 = vld [vmem:[#allocation8 + $0xa0] sm:$0xff]
    %v499 = vld [vmem:[#allocation8 + $0xa8] sm:$0xff]
    %v500 = vld [vmem:[#allocation8 + $0xb0] sm:$0xff]
    %v501 = vld [vmem:[#allocation8 + $0xb8] sm:$0xff]
    %v502 = vld [vmem:[#allocation8 + $0xc0] sm:$0xff]
    %v503 = vld [vmem:[#allocation8 + $0xc8] sm:$0xff]
    %v504 = vld [vmem:[#allocation8 + $0xd0] sm:$0xff]
    %v505 = vld [vmem:[#allocation8 + $0xd8] sm:$0xff]
    %v506 = vld [vmem:[#allocation8 + $0xe0] sm:$0xff]
    %v507 = vld [vmem:[#allocation8 + $0xe8] sm:$0xff]
    %v508 = vld [vmem:[#allocation8 + $0xf0] sm:$0xff]
    %v509 = vld [vmem:[#allocation8 + $0xf8] sm:$0xff]
    %v510 = vld [vmem:[#allocation8 + $0x100] sm:$0xff]
    %v511 = vld [vmem:[#allocation8 + $0x108] sm:$0xff]
    %v512 = vld [vmem:[#allocation8 + $0x110] sm:$0xff]
    %v513 = vld [vmem:[#allocation8 + $0x118] sm:$0xff]
    %v514 = vld [vmem:[#allocation8 + $0x120] sm:$0xff]
    %v515 = vld [vmem:[#allocation8 + $0x128] sm:$0xff]
    %v516 = vld [vmem:[#allocation8 + $0x130] sm:$0xff]
    %v517 = vld [vmem:[#allocation8 + $0x138] sm:$0xff]
    %v518 = vld [vmem:[#allocation8 + $0x140] sm:$0xff]
    %v519 = vld [vmem:[#allocation8 + $0x148] sm:$0xff]
    %v520 = vld [vmem:[#allocation8 + $0x150] sm:$0xff]
    %v521 = vld [vmem:[#allocation8 + $0x158] sm:$0xff]
    %v522 = vld [vmem:[#allocation8 + $0x160] sm:$0xff]
    %v523 = vld [vmem:[#allocation8 + $0x168] sm:$0xff]
    %v524 = vld [vmem:[#allocation8 + $0x170] sm:$0xff]
    %v525 = vld [vmem:[#allocation8 + $0x178] sm:$0xff]
    %v526 = vld [vmem:[#allocation8 + $0x180] sm:$0xff]
    %v527 = vld [vmem:[#allocation8 + $0x188] sm:$0xff]
    %v528 = vld [vmem:[#allocation8 + $0x190] sm:$0xff]
    %v529 = vld [vmem:[#allocation8 + $0x198] sm:$0xff]
    %v530 = vld [vmem:[#allocation8 + $0x1a0] sm:$0xff]
    %v531 = vld [vmem:[#allocation8 + $0x1a8] sm:$0xff]
    %v532 = vld [vmem:[#allocation8 + $0x1b0] sm:$0xff]
    %v533 = vld [vmem:[#allocation8 + $0x1b8] sm:$0xff]
    %v534 = vld [vmem:[#allocation8 + $0x1c0] sm:$0xff]
    %v535 = vld [vmem:[#allocation8 + $0x1c8] sm:$0xff]
    %v536 = vld [vmem:[#allocation8 + $0x1d0] sm:$0xff]
    %v537 = vld [vmem:[#allocation8 + $0x1d8] sm:$0xff]
    %v538 = vld [vmem:[#allocation8 + $0x1e0] sm:$0xff]
    %v539 = vld [vmem:[#allocation8 + $0x1e8] sm:$0xff]
    %v540 = vld [vmem:[#allocation8 + $0x1f0] sm:$0xff]
    %v541 = vld [vmem:[#allocation8 + $0x1f8] sm:$0xff]
    %542 = vmatprep.subr.mxu0 %v479
    %543 = vmatpush1.msra.mxu0 %v478
    %544 = vmatprep.subr.mxu0 %v483
    %545 = vmatpush1.msra.mxu0 %v482
    %546 = vmatprep.subr.mxu0 %v487
    %547 = vmatpush1.msra.mxu0 %v486
    %548 = vmatprep.subr.mxu0 %v491
    %549 = vmatpush1.msra.mxu0 %v490
    %550 = vmatprep.subr.mxu0 %v495
    %551 = vmatpush1.msra.mxu0 %v494
    %552 = vmatprep.subr.mxu0 %v499
    %553 = vmatpush1.msra.mxu0 %v498
    %554 = vmatprep.subr.mxu0 %v503
    %555 = vmatpush1.msra.mxu0 %v502
    %556 = vmatprep.subr.mxu0 %v507
    %557 = vmatpush1.msra.mxu0 %v506
    %558 = vmatprep.subr.mxu0 %v511
    %559 = vmatpush1.msra.mxu0 %v510
    %560 = vmatprep.subr.mxu0 %v515
    %561 = vmatpush1.msra.mxu0 %v514
    %562 = vmatprep.subr.mxu0 %v519
    %563 = vmatpush1.msra.mxu0 %v518
    %564 = vmatprep.subr.mxu0 %v523
    %565 = vmatpush1.msra.mxu0 %v522
    %566 = vmatprep.subr.mxu0 %v527
    %567 = vmatpush1.msra.mxu0 %v526
    %568 = vmatprep.subr.mxu0 %v531
    %569 = vmatpush1.msra.mxu0 %v530
    %570 = vmatprep.subr.mxu0 %v535
    %571 = vmatpush1.msra.mxu0 %v534
    %572 = vmatprep.subr.mxu0 %v539
    %573 = vmatpush1.msra.mxu0 %v538
    %574 = vmatprep.subr.mxu0 0.0
    %575 = vmatpush1.msra.mxu0 0.0
    %576 = vmatprep.subr.mxu0 0.0
    %577 = vmatpush1.msra.mxu0 0.0
    %578 = vmatprep.subr.mxu0 0.0
    %579 = vmatpush1.msra.mxu0 0.0
    %580 = vmatprep.subr.mxu0 0.0
    %581 = vmatpush1.msra.mxu0 0.0
    %582 = vmatprep.subr.mxu0 0.0
    %583 = vmatpush1.msra.mxu0 0.0
    %584 = vmatprep.subr.mxu0 0.0
    %585 = vmatpush1.msra.mxu0 0.0
    %586 = vmatprep.subr.mxu0 0.0
    %587 = vmatpush1.msra.mxu0 0.0
    %588 = vmatprep.subr.mxu0 0.0
    %589 = vmatpush1.msra.mxu0 0.0
    %590 = vmatprep.subr.mxu0 0.0
    %591 = vmatpush1.msra.mxu0 0.0
    %592 = vmatprep.subr.mxu0 0.0
    %593 = vmatpush1.msra.mxu0 0.0
    %594 = vmatprep.subr.mxu0 0.0
    %595 = vmatpush1.msra.mxu0 0.0
    %596 = vmatprep.subr.mxu0 0.0
    %597 = vmatpush1.msra.mxu0 0.0
    %598 = vmatprep.subr.mxu0 0.0
    %599 = vmatpush1.msra.mxu0 0.0
    %600 = vmatprep.subr.mxu0 0.0
    %601 = vmatpush1.msra.mxu0 0.0
    %602 = vmatprep.subr.mxu0 0.0
    %603 = vmatpush1.msra.mxu0 0.0
    %604 = vmatprep.subr.mxu0 0.0
    %605 = vmatpush1.msra.mxu0 0.0
    %606 = vmatprep.mubr.f32.mxu0 0.0
    %607 = vmatmul.mubr.f32.gmra.mrb[0].mxu0 %v117
    %v608 = vpop.f32.mrb[0].mxu0
    %v609 = vadd.f32 0.0, %v608
    %v610 = vpop.f32.mrb[0].mxu0
    %v611 = vadd.f32 0.0, %v610
    %612 = vdwg.mxu0
    %613 = vmatprep.subr.mxu0 %v481
    %614 = vmatpush1.msra.mxu0 %v480
    %615 = vmatprep.subr.mxu0 %v485
    %616 = vmatpush1.msra.mxu0 %v484
    %617 = vmatprep.subr.mxu0 %v489
    %618 = vmatpush1.msra.mxu0 %v488
    %619 = vmatprep.subr.mxu0 %v493
    %620 = vmatpush1.msra.mxu0 %v492
    %621 = vmatprep.subr.mxu0 %v497
    %622 = vmatpush1.msra.mxu0 %v496
    %623 = vmatprep.subr.mxu0 %v501
    %624 = vmatpush1.msra.mxu0 %v500
    %625 = vmatprep.subr.mxu0 %v505
    %626 = vmatpush1.msra.mxu0 %v504
    %627 = vmatprep.subr.mxu0 %v509
    %628 = vmatpush1.msra.mxu0 %v508
    %629 = vmatprep.subr.mxu0 %v513
    %630 = vmatpush1.msra.mxu0 %v512
    %631 = vmatprep.subr.mxu0 %v517
    %632 = vmatpush1.msra.mxu0 %v516
    %633 = vmatprep.subr.mxu0 %v521
    %634 = vmatpush1.msra.mxu0 %v520
    %635 = vmatprep.subr.mxu0 %v525
    %636 = vmatpush1.msra.mxu0 %v524
    %637 = vmatprep.subr.mxu0 %v529
    %638 = vmatpush1.msra.mxu0 %v528
    %639 = vmatprep.subr.mxu0 %v533
    %640 = vmatpush1.msra.mxu0 %v532
    %641 = vmatprep.subr.mxu0 %v537
    %642 = vmatpush1.msra.mxu0 %v536
    %643 = vmatprep.subr.mxu0 %v541
    %644 = vmatpush1.msra.mxu0 %v540
    %645 = vmatprep.subr.mxu0 0.0
    %646 = vmatpush1.msra.mxu0 0.0
    %647 = vmatprep.subr.mxu0 0.0
    %648 = vmatpush1.msra.mxu0 0.0
    %649 = vmatprep.subr.mxu0 0.0
    %650 = vmatpush1.msra.mxu0 0.0
    %651 = vmatprep.subr.mxu0 0.0
    %652 = vmatpush1.msra.mxu0 0.0
    %653 = vmatprep.subr.mxu0 0.0
    %654 = vmatpush1.msra.mxu0 0.0
    %655 = vmatprep.subr.mxu0 0.0
    %656 = vmatpush1.msra.mxu0 0.0
    %657 = vmatprep.subr.mxu0 0.0
    %658 = vmatpush1.msra.mxu0 0.0
    %659 = vmatprep.subr.mxu0 0.0
    %660 = vmatpush1.msra.mxu0 0.0
    %661 = vmatprep.subr.mxu0 0.0
    %662 = vmatpush1.msra.mxu0 0.0
    %663 = vmatprep.subr.mxu0 0.0
    %664 = vmatpush1.msra.mxu0 0.0
    %665 = vmatprep.subr.mxu0 0.0
    %666 = vmatpush1.msra.mxu0 0.0
    %667 = vmatprep.subr.mxu0 0.0
    %668 = vmatpush1.msra.mxu0 0.0
    %669 = vmatprep.subr.mxu0 0.0
    %670 = vmatpush1.msra.mxu0 0.0
    %671 = vmatprep.subr.mxu0 0.0
    %672 = vmatpush1.msra.mxu0 0.0
    %673 = vmatprep.subr.mxu0 0.0
    %674 = vmatpush1.msra.mxu0 0.0
    %675 = vmatprep.subr.mxu0 0.0
    %676 = vmatpush1.msra.mxu0 0.0
    %677 = vmatprep.mubr.f32.mxu0 0.0
    %678 = vmatmul.mubr.f32.gmra.mrb[0].mxu0 %v117
    %v679 = vpop.f32.mrb[0].mxu0
    %v680 = vadd.f32 0.0, %v679
    %v681 = vpop.f32.mrb[0].mxu0
    %v682 = vadd.f32 0.0, %v681
    %683 = vdwg.mxu0
    %v684 = vadd.f32 %v474, %v609
    %v685 = vadd.f32 %v475, %v611
    %v686 = vadd.f32 %v476, %v680
    %v687 = vadd.f32 %v477, %v682
    %v688 = vxor.u32 %v684, 2147483648
    %v689 = vmul.f32 %v688, 1.442695
    %v690 = vpow.pop %v689
    %v691 = vadd.f32 %v690, 1.0
    %v692 = vrcp.pop %v691
    %v693 = vmul.f32 1.0, %v692
    %v694 = vxor.u32 %v685, 2147483648
    %v695 = vmul.f32 %v694, 1.442695
    %v696 = vpow.pop %v695
    %v697 = vadd.f32 %v696, 1.0
    %v698 = vrcp.pop %v697
    %v699 = vmul.f32 1.0, %v698
    %v700 = vtanh.pop %v686
    %v701 = vxor.u32 %v687, 2147483648
    %v702 = vmul.f32 %v701, 1.442695
    %v703 = vpow.pop %v702
    %v704 = vadd.f32 %v703, 1.0
    %v705 = vrcp.pop %v704
    %v706 = vmul.f32 1.0, %v705
    %v707 = vmul.f32 %v699, %v118
    %v708 = vmul.f32 %v693, %v700
    %v709 = vadd.f32 %v707, %v708
    %v710 = vtanh.pop %v709
    %v711 = vmul.f32 %v706, %v710
    %712 = vst [vmem:[#allocation14] sm:$0xff] %v711
    %s713 = smul.u32 1, 4
    %s714 = smul.addr %s713, 8
    %s715 = scalar_lea.vmem [#allocation2], %s714
    %v716 = vld [vmem:[%s715] sm:$0xff]
    %v717 = vld [vmem:[%s715 + $0x8] sm:$0xff]
    %v718 = vld [vmem:[%s715 + $0x10] sm:$0xff]
    %v719 = vld [vmem:[%s715 + $0x18] sm:$0xff]
    %v720 = vld [vmem:[#allocation8] sm:$0xff]
    %v721 = vld [vmem:[#allocation8 + $0x8] sm:$0xff]
    %v722 = vld [vmem:[#allocation8 + $0x10] sm:$0xff]
    %v723 = vld [vmem:[#allocation8 + $0x18] sm:$0xff]
    %v724 = vld [vmem:[#allocation8 + $0x20] sm:$0xff]
    %v725 = vld [vmem:[#allocation8 + $0x28] sm:$0xff]
    %v726 = vld [vmem:[#allocation8 + $0x30] sm:$0xff]
    %v727 = vld [vmem:[#allocation8 + $0x38] sm:$0xff]
    %v728 = vld [vmem:[#allocation8 + $0x40] sm:$0xff]
    %v729 = vld [vmem:[#allocation8 + $0x48] sm:$0xff]
    %v730 = vld [vmem:[#allocation8 + $0x50] sm:$0xff]
    %v731 = vld [vmem:[#allocation8 + $0x58] sm:$0xff]
    %v732 = vld [vmem:[#allocation8 + $0x60] sm:$0xff]
    %v733 = vld [vmem:[#allocation8 + $0x68] sm:$0xff]
    %v734 = vld [vmem:[#allocation8 + $0x70] sm:$0xff]
    %v735 = vld [vmem:[#allocation8 + $0x78] sm:$0xff]
    %v736 = vld [vmem:[#allocation8 + $0x80] sm:$0xff]
    %v737 = vld [vmem:[#allocation8 + $0x88] sm:$0xff]
    %v738 = vld [vmem:[#allocation8 + $0x90] sm:$0xff]
    %v739 = vld [vmem:[#allocation8 + $0x98] sm:$0xff]
    %v740 = vld [vmem:[#allocation8 + $0xa0] sm:$0xff]
    %v741 = vld [vmem:[#allocation8 + $0xa8] sm:$0xff]
    %v742 = vld [vmem:[#allocation8 + $0xb0] sm:$0xff]
    %v743 = vld [vmem:[#allocation8 + $0xb8] sm:$0xff]
    %v744 = vld [vmem:[#allocation8 + $0xc0] sm:$0xff]
    %v745 = vld [vmem:[#allocation8 + $0xc8] sm:$0xff]
    %v746 = vld [vmem:[#allocation8 + $0xd0] sm:$0xff]
    %v747 = vld [vmem:[#allocation8 + $0xd8] sm:$0xff]
    %v748 = vld [vmem:[#allocation8 + $0xe0] sm:$0xff]
    %v749 = vld [vmem:[#allocation8 + $0xe8] sm:$0xff]
    %v750 = vld [vmem:[#allocation8 + $0xf0] sm:$0xff]
    %v751 = vld [vmem:[#allocation8 + $0xf8] sm:$0xff]
    %v752 = vld [vmem:[#allocation8 + $0x100] sm:$0xff]
    %v753 = vld [vmem:[#allocation8 + $0x108] sm:$0xff]
    %v754 = vld [vmem:[#allocation8 + $0x110] sm:$0xff]
    %v755 = vld [vmem:[#allocation8 + $0x118] sm:$0xff]
    %v756 = vld [vmem:[#allocation8 + $0x120] sm:$0xff]
    %v757 = vld [vmem:[#allocation8 + $0x128] sm:$0xff]
    %v758 = vld [vmem:[#allocation8 + $0x130] sm:$0xff]
    %v759 = vld [vmem:[#allocation8 + $0x138] sm:$0xff]
    %v760 = vld [vmem:[#allocation8 + $0x140] sm:$0xff]
    %v761 = vld [vmem:[#allocation8 + $0x148] sm:$0xff]
    %v762 = vld [vmem:[#allocation8 + $0x150] sm:$0xff]
    %v763 = vld [vmem:[#allocation8 + $0x158] sm:$0xff]
    %v764 = vld [vmem:[#allocation8 + $0x160] sm:$0xff]
    %v765 = vld [vmem:[#allocation8 + $0x168] sm:$0xff]
    %v766 = vld [vmem:[#allocation8 + $0x170] sm:$0xff]
    %v767 = vld [vmem:[#allocation8 + $0x178] sm:$0xff]
    %v768 = vld [vmem:[#allocation8 + $0x180] sm:$0xff]
    %v769 = vld [vmem:[#allocation8 + $0x188] sm:$0xff]
    %v770 = vld [vmem:[#allocation8 + $0x190] sm:$0xff]
    %v771 = vld [vmem:[#allocation8 + $0x198] sm:$0xff]
    %v772 = vld [vmem:[#allocation8 + $0x1a0] sm:$0xff]
    %v773 = vld [vmem:[#allocation8 + $0x1a8] sm:$0xff]
    %v774 = vld [vmem:[#allocation8 + $0x1b0] sm:$0xff]
    %v775 = vld [vmem:[#allocation8 + $0x1b8] sm:$0xff]
    %v776 = vld [vmem:[#allocation8 + $0x1c0] sm:$0xff]
    %v777 = vld [vmem:[#allocation8 + $0x1c8] sm:$0xff]
    %v778 = vld [vmem:[#allocation8 + $0x1d0] sm:$0xff]
    %v779 = vld [vmem:[#allocation8 + $0x1d8] sm:$0xff]
    %v780 = vld [vmem:[#allocation8 + $0x1e0] sm:$0xff]
    %v781 = vld [vmem:[#allocation8 + $0x1e8] sm:$0xff]
    %v782 = vld [vmem:[#allocation8 + $0x1f0] sm:$0xff]
    %v783 = vld [vmem:[#allocation8 + $0x1f8] sm:$0xff]
    %784 = vmatprep.subr.mxu0 %v721
    %785 = vmatpush1.msra.mxu0 %v720
    %786 = vmatprep.subr.mxu0 %v725
    %787 = vmatpush1.msra.mxu0 %v724
    %788 = vmatprep.subr.mxu0 %v729
    %789 = vmatpush1.msra.mxu0 %v728
    %790 = vmatprep.subr.mxu0 %v733
    %791 = vmatpush1.msra.mxu0 %v732
    %792 = vmatprep.subr.mxu0 %v737
    %793 = vmatpush1.msra.mxu0 %v736
    %794 = vmatprep.subr.mxu0 %v741
    %795 = vmatpush1.msra.mxu0 %v740
    %796 = vmatprep.subr.mxu0 %v745
    %797 = vmatpush1.msra.mxu0 %v744
    %798 = vmatprep.subr.mxu0 %v749
    %799 = vmatpush1.msra.mxu0 %v748
    %800 = vmatprep.subr.mxu0 %v753
    %801 = vmatpush1.msra.mxu0 %v752
    %802 = vmatprep.subr.mxu0 %v757
    %803 = vmatpush1.msra.mxu0 %v756
    %804 = vmatprep.subr.mxu0 %v761
    %805 = vmatpush1.msra.mxu0 %v760
    %806 = vmatprep.subr.mxu0 %v765
    %807 = vmatpush1.msra.mxu0 %v764
    %808 = vmatprep.subr.mxu0 %v769
    %809 = vmatpush1.msra.mxu0 %v768
    %810 = vmatprep.subr.mxu0 %v773
    %811 = vmatpush1.msra.mxu0 %v772
    %812 = vmatprep.subr.mxu0 %v777
    %813 = vmatpush1.msra.mxu0 %v776
    %814 = vmatprep.subr.mxu0 %v781
    %815 = vmatpush1.msra.mxu0 %v780
    %816 = vmatprep.subr.mxu0 0.0
    %817 = vmatpush1.msra.mxu0 0.0
    %818 = vmatprep.subr.mxu0 0.0
    %819 = vmatpush1.msra.mxu0 0.0
    %820 = vmatprep.subr.mxu0 0.0
    %821 = vmatpush1.msra.mxu0 0.0
    %822 = vmatprep.subr.mxu0 0.0
    %823 = vmatpush1.msra.mxu0 0.0
    %824 = vmatprep.subr.mxu0 0.0
    %825 = vmatpush1.msra.mxu0 0.0
    %826 = vmatprep.subr.mxu0 0.0
    %827 = vmatpush1.msra.mxu0 0.0
    %828 = vmatprep.subr.mxu0 0.0
    %829 = vmatpush1.msra.mxu0 0.0
    %830 = vmatprep.subr.mxu0 0.0
    %831 = vmatpush1.msra.mxu0 0.0
    %832 = vmatprep.subr.mxu0 0.0
    %833 = vmatpush1.msra.mxu0 0.0
    %834 = vmatprep.subr.mxu0 0.0
    %835 = vmatpush1.msra.mxu0 0.0
    %836 = vmatprep.subr.mxu0 0.0
    %837 = vmatpush1.msra.mxu0 0.0
    %838 = vmatprep.subr.mxu0 0.0
    %839 = vmatpush1.msra.mxu0 0.0
    %840 = vmatprep.subr.mxu0 0.0
    %841 = vmatpush1.msra.mxu0 0.0
    %842 = vmatprep.subr.mxu0 0.0
    %843 = vmatpush1.msra.mxu0 0.0
    %844 = vmatprep.subr.mxu0 0.0
    %845 = vmatpush1.msra.mxu0 0.0
    %846 = vmatprep.subr.mxu0 0.0
    %847 = vmatpush1.msra.mxu0 0.0
    %848 = vmatprep.mubr.f32.mxu0 0.0
    %849 = vmatmul.mubr.f32.gmra.mrb[0].mxu0 %v711
    %v850 = vpop.f32.mrb[0].mxu0
    %v851 = vadd.f32 0.0, %v850
    %v852 = vpop.f32.mrb[0].mxu0
    %v853 = vadd.f32 0.0, %v852
    %854 = vdwg.mxu0
    %855 = vmatprep.subr.mxu0 %v723
    %856 = vmatpush1.msra.mxu0 %v722
    %857 = vmatprep.subr.mxu0 %v727
    %858 = vmatpush1.msra.mxu0 %v726
    %859 = vmatprep.subr.mxu0 %v731
    %860 = vmatpush1.msra.mxu0 %v730
    %861 = vmatprep.subr.mxu0 %v735
    %862 = vmatpush1.msra.mxu0 %v734
    %863 = vmatprep.subr.mxu0 %v739
    %864 = vmatpush1.msra.mxu0 %v738
    %865 = vmatprep.subr.mxu0 %v743
    %866 = vmatpush1.msra.mxu0 %v742
    %867 = vmatprep.subr.mxu0 %v747
    %868 = vmatpush1.msra.mxu0 %v746
    %869 = vmatprep.subr.mxu0 %v751
    %870 = vmatpush1.msra.mxu0 %v750
    %871 = vmatprep.subr.mxu0 %v755
    %872 = vmatpush1.msra.mxu0 %v754
    %873 = vmatprep.subr.mxu0 %v759
    %874 = vmatpush1.msra.mxu0 %v758
    %875 = vmatprep.subr.mxu0 %v763
    %876 = vmatpush1.msra.mxu0 %v762
    %877 = vmatprep.subr.mxu0 %v767
    %878 = vmatpush1.msra.mxu0 %v766
    %879 = vmatprep.subr.mxu0 %v771
    %880 = vmatpush1.msra.mxu0 %v770
    %881 = vmatprep.subr.mxu0 %v775
    %882 = vmatpush1.msra.mxu0 %v774
    %883 = vmatprep.subr.mxu0 %v779
    %884 = vmatpush1.msra.mxu0 %v778
    %885 = vmatprep.subr.mxu0 %v783
    %886 = vmatpush1.msra.mxu0 %v782
    %887 = vmatprep.subr.mxu0 0.0
    %888 = vmatpush1.msra.mxu0 0.0
    %889 = vmatprep.subr.mxu0 0.0
    %890 = vmatpush1.msra.mxu0 0.0
    %891 = vmatprep.subr.mxu0 0.0
    %892 = vmatpush1.msra.mxu0 0.0
    %893 = vmatprep.subr.mxu0 0.0
    %894 = vmatpush1.msra.mxu0 0.0
    %895 = vmatprep.subr.mxu0 0.0
    %896 = vmatpush1.msra.mxu0 0.0
    %897 = vmatprep.subr.mxu0 0.0
    %898 = vmatpush1.msra.mxu0 0.0
    %899 = vmatprep.subr.mxu0 0.0
    %900 = vmatpush1.msra.mxu0 0.0
    %901 = vmatprep.subr.mxu0 0.0
    %902 = vmatpush1.msra.mxu0 0.0
    %903 = vmatprep.subr.mxu0 0.0
    %904 = vmatpush1.msra.mxu0 0.0
    %905 = vmatprep.subr.mxu0 0.0
    %906 = vmatpush1.msra.mxu0 0.0
    %907 = vmatprep.subr.mxu0 0.0
    %908 = vmatpush1.msra.mxu0 0.0
    %909 = vmatprep.subr.mxu0 0.0
    %910 = vmatpush1.msra.mxu0 0.0
    %911 = vmatprep.subr.mxu0 0.0
    %912 = vmatpush1.msra.mxu0 0.0
    %913 = vmatprep.subr.mxu0 0.0
    %914 = vmatpush1.msra.mxu0 0.0
    %915 = vmatprep.subr.mxu0 0.0
    %916 = vmatpush1.msra.mxu0 0.0
    %917 = vmatprep.subr.mxu0 0.0
    %918 = vmatpush1.msra.mxu0 0.0
    %919 = vmatprep.mubr.f32.mxu0 0.0
    %920 = vmatmul.mubr.f32.gmra.mrb[0].mxu0 %v711
    %v921 = vpop.f32.mrb[0].mxu0
    %v922 = vadd.f32 0.0, %v921
    %v923 = vpop.f32.mrb[0].mxu0
    %v924 = vadd.f32 0.0, %v923
    %925 = vdwg.mxu0
    %v926 = vadd.f32 %v716, %v851
    %v927 = vadd.f32 %v717, %v853
    %v928 = vadd.f32 %v718, %v922
    %v929 = vadd.f32 %v719, %v924
    %v930 = vxor.u32 %v926, 2147483648
    %v931 = vmul.f32 %v930, 1.442695
    %v932 = vpow.pop %v931
    %v933 = vadd.f32 %v932, 1.0
    %v934 = vrcp.pop %v933
    %v935 = vmul.f32 1.0, %v934
    %v936 = vxor.u32 %v927, 2147483648
    %v937 = vmul.f32 %v936, 1.442695
    %v938 = vpow.pop %v937
    %v939 = vadd.f32 %v938, 1.0
    %v940 = vrcp.pop %v939
    %v941 = vmul.f32 1.0, %v940
    %v942 = vtanh.pop %v928
    %v943 = vxor.u32 %v929, 2147483648
    %v944 = vmul.f32 %v943, 1.442695
    %v945 = vpow.pop %v944
    %v946 = vadd.f32 %v945, 1.0
    %v947 = vrcp.pop %v946
    %v948 = vmul.f32 1.0, %v947
    %v949 = vmul.f32 %v941, %v709
    %v950 = vmul.f32 %v935, %v942
    %v951 = vadd.f32 %v949, %v950
    %v952 = vtanh.pop %v951
    %v953 = vmul.f32 %v948, %v952
    %s954 = scalar_lea.vmem [#allocation14], 8
    %955 = vst [vmem:[%s954] sm:$0xff] %v953
    %s956 = smul.u32 2, 4
    %s957 = smul.addr %s956, 8
    %s958 = scalar_lea.vmem [#allocation2], %s957
    %v959 = vld [vmem:[%s958] sm:$0xff]
    %v960 = vld [vmem:[%s958 + $0x8] sm:$0xff]
    %v961 = vld [vmem:[%s958 + $0x10] sm:$0xff]
    %v962 = vld [vmem:[%s958 + $0x18] sm:$0xff]
    %v963 = vld [vmem:[#allocation8] sm:$0xff]
    %v964 = vld [vmem:[#allocation8 + $0x8] sm:$0xff]
    %v965 = vld [vmem:[#allocation8 + $0x10] sm:$0xff]
    %v966 = vld [vmem:[#allocation8 + $0x18] sm:$0xff]
    %v967 = vld [vmem:[#allocation8 + $0x20] sm:$0xff]
    %v968 = vld [vmem:[#allocation8 + $0x28] sm:$0xff]
    %v969 = vld [vmem:[#allocation8 + $0x30] sm:$0xff]
    %v970 = vld [vmem:[#allocation8 + $0x38] sm:$0xff]
    %v971 = vld [vmem:[#allocation8 + $0x40] sm:$0xff]
    %v972 = vld [vmem:[#allocation8 + $0x48] sm:$0xff]
    %v973 = vld [vmem:[#allocation8 + $0x50] sm:$0xff]
    %v974 = vld [vmem:[#allocation8 + $0x58] sm:$0xff]
    %v975 = vld [vmem:[#allocation8 + $0x60] sm:$0xff]
    %v976 = vld [vmem:[#allocation8 + $0x68] sm:$0xff]
    %v977 = vld [vmem:[#allocation8 + $0x70] sm:$0xff]
    %v978 = vld [vmem:[#allocation8 + $0x78] sm:$0xff]
    %v979 = vld [vmem:[#allocation8 + $0x80] sm:$0xff]
    %v980 = vld [vmem:[#allocation8 + $0x88] sm:$0xff]
    %v981 = vld [vmem:[#allocation8 + $0x90] sm:$0xff]
    %v982 = vld [vmem:[#allocation8 + $0x98] sm:$0xff]
    %v983 = vld [vmem:[#allocation8 + $0xa0] sm:$0xff]
    %v984 = vld [vmem:[#allocation8 + $0xa8] sm:$0xff]
    %v985 = vld [vmem:[#allocation8 + $0xb0] sm:$0xff]
    %v986 = vld [vmem:[#allocation8 + $0xb8] sm:$0xff]
    %v987 = vld [vmem:[#allocation8 + $0xc0] sm:$0xff]
    %v988 = vld [vmem:[#allocation8 + $0xc8] sm:$0xff]
    %v989 = vld [vmem:[#allocation8 + $0xd0] sm:$0xff]
    %v990 = vld [vmem:[#allocation8 + $0xd8] sm:$0xff]
    %v991 = vld [vmem:[#allocation8 + $0xe0] sm:$0xff]
    %v992 = vld [vmem:[#allocation8 + $0xe8] sm:$0xff]
    %v993 = vld [vmem:[#allocation8 + $0xf0] sm:$0xff]
    %v994 = vld [vmem:[#allocation8 + $0xf8] sm:$0xff]
    %v995 = vld [vmem:[#allocation8 + $0x100] sm:$0xff]
    %v996 = vld [vmem:[#allocation8 + $0x108] sm:$0xff]
    %v997 = vld [vmem:[#allocation8 + $0x110] sm:$0xff]
    %v998 = vld [vmem:[#allocation8 + $0x118] sm:$0xff]
    %v999 = vld [vmem:[#allocation8 + $0x120] sm:$0xff]
    %v1000 = vld [vmem:[#allocation8 + $0x128] sm:$0xff]
    %v1001 = vld [vmem:[#allocation8 + $0x130] sm:$0xff]
    %v1002 = vld [vmem:[#allocation8 + $0x138] sm:$0xff]
    %v1003 = vld [vmem:[#allocation8 + $0x140] sm:$0xff]
    %v1004 = vld [vmem:[#allocation8 + $0x148] sm:$0xff]
    %v1005 = vld [vmem:[#allocation8 + $0x150] sm:$0xff]
    %v1006 = vld [vmem:[#allocation8 + $0x158] sm:$0xff]
    %v1007 = vld [vmem:[#allocation8 + $0x160] sm:$0xff]
    %v1008 = vld [vmem:[#allocation8 + $0x168] sm:$0xff]
    %v1009 = vld [vmem:[#allocation8 + $0x170] sm:$0xff]
    %v1010 = vld [vmem:[#allocation8 + $0x178] sm:$0xff]
    %v1011 = vld [vmem:[#allocation8 + $0x180] sm:$0xff]
    %v1012 = vld [vmem:[#allocation8 + $0x188] sm:$0xff]
    %v1013 = vld [vmem:[#allocation8 + $0x190] sm:$0xff]
    %v1014 = vld [vmem:[#allocation8 + $0x198] sm:$0xff]
    %v1015 = vld [vmem:[#allocation8 + $0x1a0] sm:$0xff]
    %v1016 = vld [vmem:[#allocation8 + $0x1a8] sm:$0xff]
    %v1017 = vld [vmem:[#allocation8 + $0x1b0] sm:$0xff]
    %v1018 = vld [vmem:[#allocation8 + $0x1b8] sm:$0xff]
    %v1019 = vld [vmem:[#allocation8 + $0x1c0] sm:$0xff]
    %v1020 = vld [vmem:[#allocation8 + $0x1c8] sm:$0xff]
    %v1021 = vld [vmem:[#allocation8 + $0x1d0] sm:$0xff]
    %v1022 = vld [vmem:[#allocation8 + $0x1d8] sm:$0xff]
    %v1023 = vld [vmem:[#allocation8 + $0x1e0] sm:$0xff]
    %v1024 = vld [vmem:[#allocation8 + $0x1e8] sm:$0xff]
    %v1025 = vld [vmem:[#allocation8 + $0x1f0] sm:$0xff]
    %v1026 = vld [vmem:[#allocation8 + $0x1f8] sm:$0xff]
    %1027 = vmatprep.subr.mxu0 %v964
    %1028 = vmatpush1.msra.mxu0 %v963
    %1029 = vmatprep.subr.mxu0 %v968
    %1030 = vmatpush1.msra.mxu0 %v967
    %1031 = vmatprep.subr.mxu0 %v972
    %1032 = vmatpush1.msra.mxu0 %v971
    %1033 = vmatprep.subr.mxu0 %v976
    %1034 = vmatpush1.msra.mxu0 %v975
    %1035 = vmatprep.subr.mxu0 %v980
    %1036 = vmatpush1.msra.mxu0 %v979
    %1037 = vmatprep.subr.mxu0 %v984
    %1038 = vmatpush1.msra.mxu0 %v983
    %1039 = vmatprep.subr.mxu0 %v988
    %1040 = vmatpush1.msra.mxu0 %v987
    %1041 = vmatprep.subr.mxu0 %v992
    %1042 = vmatpush1.msra.mxu0 %v991
    %1043 = vmatprep.subr.mxu0 %v996
    %1044 = vmatpush1.msra.mxu0 %v995
    %1045 = vmatprep.subr.mxu0 %v1000
    %1046 = vmatpush1.msra.mxu0 %v999
    %1047 = vmatprep.subr.mxu0 %v1004
    %1048 = vmatpush1.msra.mxu0 %v1003
    %1049 = vmatprep.subr.mxu0 %v1008
    %1050 = vmatpush1.msra.mxu0 %v1007
    %1051 = vmatprep.subr.mxu0 %v1012
    %1052 = vmatpush1.msra.mxu0 %v1011
    %1053 = vmatprep.subr.mxu0 %v1016
    %1054 = vmatpush1.msra.mxu0 %v1015
    %1055 = vmatprep.subr.mxu0 %v1020
    %1056 = vmatpush1.msra.mxu0 %v1019
    %1057 = vmatprep.subr.mxu0 %v1024
    %1058 = vmatpush1.msra.mxu0 %v1023
    %1059 = vmatprep.subr.mxu0 0.0
    %1060 = vmatpush1.msra.mxu0 0.0
    %1061 = vmatprep.subr.mxu0 0.0
    %1062 = vmatpush1.msra.mxu0 0.0
    %1063 = vmatprep.subr.mxu0 0.0
    %1064 = vmatpush1.msra.mxu0 0.0
    %1065 = vmatprep.subr.mxu0 0.0
    %1066 = vmatpush1.msra.mxu0 0.0
    %1067 = vmatprep.subr.mxu0 0.0
    %1068 = vmatpush1.msra.mxu0 0.0
    %1069 = vmatprep.subr.mxu0 0.0
    %1070 = vmatpush1.msra.mxu0 0.0
    %1071 = vmatprep.subr.mxu0 0.0
    %1072 = vmatpush1.msra.mxu0 0.0
    %1073 = vmatprep.subr.mxu0 0.0
    %1074 = vmatpush1.msra.mxu0 0.0
    %1075 = vmatprep.subr.mxu0 0.0
    %1076 = vmatpush1.msra.mxu0 0.0
    %1077 = vmatprep.subr.mxu0 0.0
    %1078 = vmatpush1.msra.mxu0 0.0
    %1079 = vmatprep.subr.mxu0 0.0
    %1080 = vmatpush1.msra.mxu0 0.0
    %1081 = vmatprep.subr.mxu0 0.0
    %1082 = vmatpush1.msra.mxu0 0.0
    %1083 = vmatprep.subr.mxu0 0.0
    %1084 = vmatpush1.msra.mxu0 0.0
    %1085 = vmatprep.subr.mxu0 0.0
    %1086 = vmatpush1.msra.mxu0 0.0
    %1087 = vmatprep.subr.mxu0 0.0
    %1088 = vmatpush1.msra.mxu0 0.0
    %1089 = vmatprep.subr.mxu0 0.0
    %1090 = vmatpush1.msra.mxu0 0.0
    %1091 = vmatprep.mubr.f32.mxu0 0.0
    %1092 = vmatmul.mubr.f32.gmra.mrb[0].mxu0 %v953
    %v1093 = vpop.f32.mrb[0].mxu0
    %v1094 = vadd.f32 0.0, %v1093
    %v1095 = vpop.f32.mrb[0].mxu0
    %v1096 = vadd.f32 0.0, %v1095
    %1097 = vdwg.mxu0
    %1098 = vmatprep.subr.mxu0 %v966
    %1099 = vmatpush1.msra.mxu0 %v965
    %1100 = vmatprep.subr.mxu0 %v970
    %1101 = vmatpush1.msra.mxu0 %v969
    %1102 = vmatprep.subr.mxu0 %v974
    %1103 = vmatpush1.msra.mxu0 %v973
    %1104 = vmatprep.subr.mxu0 %v978
    %1105 = vmatpush1.msra.mxu0 %v977
    %1106 = vmatprep.subr.mxu0 %v982
    %1107 = vmatpush1.msra.mxu0 %v981
    %1108 = vmatprep.subr.mxu0 %v986
    %1109 = vmatpush1.msra.mxu0 %v985
    %1110 = vmatprep.subr.mxu0 %v990
    %1111 = vmatpush1.msra.mxu0 %v989
    %1112 = vmatprep.subr.mxu0 %v994
    %1113 = vmatpush1.msra.mxu0 %v993
    %1114 = vmatprep.subr.mxu0 %v998
    %1115 = vmatpush1.msra.mxu0 %v997
    %1116 = vmatprep.subr.mxu0 %v1002
    %1117 = vmatpush1.msra.mxu0 %v1001
    %1118 = vmatprep.subr.mxu0 %v1006
    %1119 = vmatpush1.msra.mxu0 %v1005
    %1120 = vmatprep.subr.mxu0 %v1010
    %1121 = vmatpush1.msra.mxu0 %v1009
    %1122 = vmatprep.subr.mxu0 %v1014
    %1123 = vmatpush1.msra.mxu0 %v1013
    %1124 = vmatprep.subr.mxu0 %v1018
    %1125 = vmatpush1.msra.mxu0 %v1017
    %1126 = vmatprep.subr.mxu0 %v1022
    %1127 = vmatpush1.msra.mxu0 %v1021
    %1128 = vmatprep.subr.mxu0 %v1026
    %1129 = vmatpush1.msra.mxu0 %v1025
    %1130 = vmatprep.subr.mxu0 0.0
    %1131 = vmatpush1.msra.mxu0 0.0
    %1132 = vmatprep.subr.mxu0 0.0
    %1133 = vmatpush1.msra.mxu0 0.0
    %1134 = vmatprep.subr.mxu0 0.0
    %1135 = vmatpush1.msra.mxu0 0.0
    %1136 = vmatprep.subr.mxu0 0.0
    %1137 = vmatpush1.msra.mxu0 0.0
    %1138 = vmatprep.subr.mxu0 0.0
    %1139 = vmatpush1.msra.mxu0 0.0
    %1140 = vmatprep.subr.mxu0 0.0
    %1141 = vmatpush1.msra.mxu0 0.0
    %1142 = vmatprep.subr.mxu0 0.0
    %1143 = vmatpush1.msra.mxu0 0.0
    %1144 = vmatprep.subr.mxu0 0.0
    %1145 = vmatpush1.msra.mxu0 0.0
    %1146 = vmatprep.subr.mxu0 0.0
    %1147 = vmatpush1.msra.mxu0 0.0
    %1148 = vmatprep.subr.mxu0 0.0
    %1149 = vmatpush1.msra.mxu0 0.0
    %1150 = vmatprep.subr.mxu0 0.0
    %1151 = vmatpush1.msra.mxu0 0.0
    %1152 = vmatprep.subr.mxu0 0.0
    %1153 = vmatpush1.msra.mxu0 0.0
    %1154 = vmatprep.subr.mxu0 0.0
    %1155 = vmatpush1.msra.mxu0 0.0
    %1156 = vmatprep.subr.mxu0 0.0
    %1157 = vmatpush1.msra.mxu0 0.0
    %1158 = vmatprep.subr.mxu0 0.0
    %1159 = vmatpush1.msra.mxu0 0.0
    %1160 = vmatprep.subr.mxu0 0.0
    %1161 = vmatpush1.msra.mxu0 0.0
    %1162 = vmatprep.mubr.f32.mxu0 0.0
    %1163 = vmatmul.mubr.f32.gmra.mrb[0].mxu0 %v953
    %v1164 = vpop.f32.mrb[0].mxu0
    %v1165 = vadd.f32 0.0, %v1164
    %v1166 = vpop.f32.mrb[0].mxu0
    %v1167 = vadd.f32 0.0, %v1166
    %1168 = vdwg.mxu0
    %v1169 = vadd.f32 %v959, %v1094
    %v1170 = vadd.f32 %v960, %v1096
    %v1171 = vadd.f32 %v961, %v1165
    %v1172 = vadd.f32 %v962, %v1167
    %v1173 = vxor.u32 %v1169, 2147483648
    %v1174 = vmul.f32 %v1173, 1.442695
    %v1175 = vpow.pop %v1174
    %v1176 = vadd.f32 %v1175, 1.0
    %v1177 = vrcp.pop %v1176
    %v1178 = vmul.f32 1.0, %v1177
    %v1179 = vxor.u32 %v1170, 2147483648
    %v1180 = vmul.f32 %v1179, 1.442695
    %v1181 = vpow.pop %v1180
    %v1182 = vadd.f32 %v1181, 1.0
    %v1183 = vrcp.pop %v1182
    %v1184 = vmul.f32 1.0, %v1183
    %v1185 = vtanh.pop %v1171
    %v1186 = vxor.u32 %v1172, 2147483648
    %v1187 = vmul.f32 %v1186, 1.442695
    %v1188 = vpow.pop %v1187
    %v1189 = vadd.f32 %v1188, 1.0
    %v1190 = vrcp.pop %v1189
    %v1191 = vmul.f32 1.0, %v1190
    %v1192 = vmul.f32 %v1184, %v951
    %v1193 = vmul.f32 %v1178, %v1185
    %v1194 = vadd.f32 %v1192, %v1193
    %v1195 = vtanh.pop %v1194
    %v1196 = vmul.f32 %v1191, %v1195
    %s1197 = scalar_lea.vmem [#allocation14], 16
    %1198 = vst [vmem:[%s1197] sm:$0xff] %v1196
    %s1199 = smul.u32 3, 4
    %s1200 = smul.addr %s1199, 8
    %s1201 = scalar_lea.vmem [#allocation2], %s1200
    %v1202 = vld [vmem:[%s1201] sm:$0xff]
    %v1203 = vld [vmem:[%s1201 + $0x8] sm:$0xff]
    %v1204 = vld [vmem:[%s1201 + $0x10] sm:$0xff]
    %v1205 = vld [vmem:[%s1201 + $0x18] sm:$0xff]
    %v1206 = vld [vmem:[#allocation8] sm:$0xff]
    %v1207 = vld [vmem:[#allocation8 + $0x8] sm:$0xff]
    %v1208 = vld [vmem:[#allocation8 + $0x10] sm:$0xff]
    %v1209 = vld [vmem:[#allocation8 + $0x18] sm:$0xff]
    %v1210 = vld [vmem:[#allocation8 + $0x20] sm:$0xff]
    %v1211 = vld [vmem:[#allocation8 + $0x28] sm:$0xff]
    %v1212 = vld [vmem:[#allocation8 + $0x30] sm:$0xff]
    %v1213 = vld [vmem:[#allocation8 + $0x38] sm:$0xff]
    %v1214 = vld [vmem:[#allocation8 + $0x40] sm:$0xff]
    %v1215 = vld [vmem:[#allocation8 + $0x48] sm:$0xff]
    %v1216 = vld [vmem:[#allocation8 + $0x50] sm:$0xff]
    %v1217 = vld [vmem:[#allocation8 + $0x58] sm:$0xff]
    %v1218 = vld [vmem:[#allocation8 + $0x60] sm:$0xff]
    %v1219 = vld [vmem:[#allocation8 + $0x68] sm:$0xff]
    %v1220 = vld [vmem:[#allocation8 + $0x70] sm:$0xff]
    %v1221 = vld [vmem:[#allocation8 + $0x78] sm:$0xff]
    %v1222 = vld [vmem:[#allocation8 + $0x80] sm:$0xff]
    %v1223 = vld [vmem:[#allocation8 + $0x88] sm:$0xff]
    %v1224 = vld [vmem:[#allocation8 + $0x90] sm:$0xff]
    %v1225 = vld [vmem:[#allocation8 + $0x98] sm:$0xff]
    %v1226 = vld [vmem:[#allocation8 + $0xa0] sm:$0xff]
    %v1227 = vld [vmem:[#allocation8 + $0xa8] sm:$0xff]
    %v1228 = vld [vmem:[#allocation8 + $0xb0] sm:$0xff]
    %v1229 = vld [vmem:[#allocation8 + $0xb8] sm:$0xff]
    %v1230 = vld [vmem:[#allocation8 + $0xc0] sm:$0xff]
    %v1231 = vld [vmem:[#allocation8 + $0xc8] sm:$0xff]
    %v1232 = vld [vmem:[#allocation8 + $0xd0] sm:$0xff]
    %v1233 = vld [vmem:[#allocation8 + $0xd8] sm:$0xff]
    %v1234 = vld [vmem:[#allocation8 + $0xe0] sm:$0xff]
    %v1235 = vld [vmem:[#allocation8 + $0xe8] sm:$0xff]
    %v1236 = vld [vmem:[#allocation8 + $0xf0] sm:$0xff]
    %v1237 = vld [vmem:[#allocation8 + $0xf8] sm:$0xff]
    %v1238 = vld [vmem:[#allocation8 + $0x100] sm:$0xff]
    %v1239 = vld [vmem:[#allocation8 + $0x108] sm:$0xff]
    %v1240 = vld [vmem:[#allocation8 + $0x110] sm:$0xff]
    %v1241 = vld [vmem:[#allocation8 + $0x118] sm:$0xff]
    %v1242 = vld [vmem:[#allocation8 + $0x120] sm:$0xff]
    %v1243 = vld [vmem:[#allocation8 + $0x128] sm:$0xff]
    %v1244 = vld [vmem:[#allocation8 + $0x130] sm:$0xff]
    %v1245 = vld [vmem:[#allocation8 + $0x138] sm:$0xff]
    %v1246 = vld [vmem:[#allocation8 + $0x140] sm:$0xff]
    %v1247 = vld [vmem:[#allocation8 + $0x148] sm:$0xff]
    %v1248 = vld [vmem:[#allocation8 + $0x150] sm:$0xff]
    %v1249 = vld [vmem:[#allocation8 + $0x158] sm:$0xff]
    %v1250 = vld [vmem:[#allocation8 + $0x160] sm:$0xff]
    %v1251 = vld [vmem:[#allocation8 + $0x168] sm:$0xff]
    %v1252 = vld [vmem:[#allocation8 + $0x170] sm:$0xff]
    %v1253 = vld [vmem:[#allocation8 + $0x178] sm:$0xff]
    %v1254 = vld [vmem:[#allocation8 + $0x180] sm:$0xff]
    %v1255 = vld [vmem:[#allocation8 + $0x188] sm:$0xff]
    %v1256 = vld [vmem:[#allocation8 + $0x190] sm:$0xff]
    %v1257 = vld [vmem:[#allocation8 + $0x198] sm:$0xff]
    %v1258 = vld [vmem:[#allocation8 + $0x1a0] sm:$0xff]
    %v1259 = vld [vmem:[#allocation8 + $0x1a8] sm:$0xff]
    %v1260 = vld [vmem:[#allocation8 + $0x1b0] sm:$0xff]
    %v1261 = vld [vmem:[#allocation8 + $0x1b8] sm:$0xff]
    %v1262 = vld [vmem:[#allocation8 + $0x1c0] sm:$0xff]
    %v1263 = vld [vmem:[#allocation8 + $0x1c8] sm:$0xff]
    %v1264 = vld [vmem:[#allocation8 + $0x1d0] sm:$0xff]
    %v1265 = vld [vmem:[#allocation8 + $0x1d8] sm:$0xff]
    %v1266 = vld [vmem:[#allocation8 + $0x1e0] sm:$0xff]
    %v1267 = vld [vmem:[#allocation8 + $0x1e8] sm:$0xff]
    %v1268 = vld [vmem:[#allocation8 + $0x1f0] sm:$0xff]
    %v1269 = vld [vmem:[#allocation8 + $0x1f8] sm:$0xff]
    %1270 = vmatprep.subr.mxu0 %v1207
    %1271 = vmatpush1.msra.mxu0 %v1206
    %1272 = vmatprep.subr.mxu0 %v1211
    %1273 = vmatpush1.msra.mxu0 %v1210
    %1274 = vmatprep.subr.mxu0 %v1215
    %1275 = vmatpush1.msra.mxu0 %v1214
    %1276 = vmatprep.subr.mxu0 %v1219
    %1277 = vmatpush1.msra.mxu0 %v1218
    %1278 = vmatprep.subr.mxu0 %v1223
    %1279 = vmatpush1.msra.mxu0 %v1222
    %1280 = vmatprep.subr.mxu0 %v1227
    %1281 = vmatpush1.msra.mxu0 %v1226
    %1282 = vmatprep.subr.mxu0 %v1231
    %1283 = vmatpush1.msra.mxu0 %v1230
    %1284 = vmatprep.subr.mxu0 %v1235
    %1285 = vmatpush1.msra.mxu0 %v1234
    %1286 = vmatprep.subr.mxu0 %v1239
    %1287 = vmatpush1.msra.mxu0 %v1238
    %1288 = vmatprep.subr.mxu0 %v1243
    %1289 = vmatpush1.msra.mxu0 %v1242
    %1290 = vmatprep.subr.mxu0 %v1247
    %1291 = vmatpush1.msra.mxu0 %v1246
    %1292 = vmatprep.subr.mxu0 %v1251
    %1293 = vmatpush1.msra.mxu0 %v1250
    %1294 = vmatprep.subr.mxu0 %v1255
    %1295 = vmatpush1.msra.mxu0 %v1254
    %1296 = vmatprep.subr.mxu0 %v1259
    %1297 = vmatpush1.msra.mxu0 %v1258
    %1298 = vmatprep.subr.mxu0 %v1263
    %1299 = vmatpush1.msra.mxu0 %v1262
    %1300 = vmatprep.subr.mxu0 %v1267
    %1301 = vmatpush1.msra.mxu0 %v1266
    %1302 = vmatprep.subr.mxu0 0.0
    %1303 = vmatpush1.msra.mxu0 0.0
    %1304 = vmatprep.subr.mxu0 0.0
    %1305 = vmatpush1.msra.mxu0 0.0
    %1306 = vmatprep.subr.mxu0 0.0
    %1307 = vmatpush1.msra.mxu0 0.0
    %1308 = vmatprep.subr.mxu0 0.0
    %1309 = vmatpush1.msra.mxu0 0.0
    %1310 = vmatprep.subr.mxu0 0.0
    %1311 = vmatpush1.msra.mxu0 0.0
    %1312 = vmatprep.subr.mxu0 0.0
    %1313 = vmatpush1.msra.mxu0 0.0
    %1314 = vmatprep.subr.mxu0 0.0
    %1315 = vmatpush1.msra.mxu0 0.0
    %1316 = vmatprep.subr.mxu0 0.0
    %1317 = vmatpush1.msra.mxu0 0.0
    %1318 = vmatprep.subr.mxu0 0.0
    %1319 = vmatpush1.msra.mxu0 0.0
    %1320 = vmatprep.subr.mxu0 0.0
    %1321 = vmatpush1.msra.mxu0 0.0
    %1322 = vmatprep.subr.mxu0 0.0
    %1323 = vmatpush1.msra.mxu0 0.0
    %1324 = vmatprep.subr.mxu0 0.0
    %1325 = vmatpush1.msra.mxu0 0.0
    %1326 = vmatprep.subr.mxu0 0.0
    %1327 = vmatpush1.msra.mxu0 0.0
    %1328 = vmatprep.subr.mxu0 0.0
    %1329 = vmatpush1.msra.mxu0 0.0
    %1330 = vmatprep.subr.mxu0 0.0
    %1331 = vmatpush1.msra.mxu0 0.0
    %1332 = vmatprep.subr.mxu0 0.0
    %1333 = vmatpush1.msra.mxu0 0.0
    %1334 = vmatprep.mubr.f32.mxu0 0.0
    %1335 = vmatmul.mubr.f32.gmra.mrb[0].mxu0 %v1196
    %v1336 = vpop.f32.mrb[0].mxu0
    %v1337 = vadd.f32 0.0, %v1336
    %v1338 = vpop.f32.mrb[0].mxu0
    %v1339 = vadd.f32 0.0, %v1338
    %1340 = vdwg.mxu0
    %1341 = vmatprep.subr.mxu0 %v1209
    %1342 = vmatpush1.msra.mxu0 %v1208
    %1343 = vmatprep.subr.mxu0 %v1213
    %1344 = vmatpush1.msra.mxu0 %v1212
    %1345 = vmatprep.subr.mxu0 %v1217
    %1346 = vmatpush1.msra.mxu0 %v1216
    %1347 = vmatprep.subr.mxu0 %v1221
    %1348 = vmatpush1.msra.mxu0 %v1220
    %1349 = vmatprep.subr.mxu0 %v1225
    %1350 = vmatpush1.msra.mxu0 %v1224
    %1351 = vmatprep.subr.mxu0 %v1229
    %1352 = vmatpush1.msra.mxu0 %v1228
    %1353 = vmatprep.subr.mxu0 %v1233
    %1354 = vmatpush1.msra.mxu0 %v1232
    %1355 = vmatprep.subr.mxu0 %v1237
    %1356 = vmatpush1.msra.mxu0 %v1236
    %1357 = vmatprep.subr.mxu0 %v1241
    %1358 = vmatpush1.msra.mxu0 %v1240
    %1359 = vmatprep.subr.mxu0 %v1245
    %1360 = vmatpush1.msra.mxu0 %v1244
    %1361 = vmatprep.subr.mxu0 %v1249
    %1362 = vmatpush1.msra.mxu0 %v1248
    %1363 = vmatprep.subr.mxu0 %v1253
    %1364 = vmatpush1.msra.mxu0 %v1252
    %1365 = vmatprep.subr.mxu0 %v1257
    %1366 = vmatpush1.msra.mxu0 %v1256
    %1367 = vmatprep.subr.mxu0 %v1261
    %1368 = vmatpush1.msra.mxu0 %v1260
    %1369 = vmatprep.subr.mxu0 %v1265
    %1370 = vmatpush1.msra.mxu0 %v1264
    %1371 = vmatprep.subr.mxu0 %v1269
    %1372 = vmatpush1.msra.mxu0 %v1268
    %1373 = vmatprep.subr.mxu0 0.0
    %1374 = vmatpush1.msra.mxu0 0.0
    %1375 = vmatprep.subr.mxu0 0.0
    %1376 = vmatpush1.msra.mxu0 0.0
    %1377 = vmatprep.subr.mxu0 0.0
    %1378 = vmatpush1.msra.mxu0 0.0
    %1379 = vmatprep.subr.mxu0 0.0
    %1380 = vmatpush1.msra.mxu0 0.0
    %1381 = vmatprep.subr.mxu0 0.0
    %1382 = vmatpush1.msra.mxu0 0.0
    %1383 = vmatprep.subr.mxu0 0.0
    %1384 = vmatpush1.msra.mxu0 0.0
    %1385 = vmatprep.subr.mxu0 0.0
    %1386 = vmatpush1.msra.mxu0 0.0
    %1387 = vmatprep.subr.mxu0 0.0
    %1388 = vmatpush1.msra.mxu0 0.0
    %1389 = vmatprep.subr.mxu0 0.0
    %1390 = vmatpush1.msra.mxu0 0.0
    %1391 = vmatprep.subr.mxu0 0.0
    %1392 = vmatpush1.msra.mxu0 0.0
    %1393 = vmatprep.subr.mxu0 0.0
    %1394 = vmatpush1.msra.mxu0 0.0
    %1395 = vmatprep.subr.mxu0 0.0
    %1396 = vmatpush1.msra.mxu0 0.0
    %1397 = vmatprep.subr.mxu0 0.0
    %1398 = vmatpush1.msra.mxu0 0.0
    %1399 = vmatprep.subr.mxu0 0.0
    %1400 = vmatpush1.msra.mxu0 0.0
    %1401 = vmatprep.subr.mxu0 0.0
    %1402 = vmatpush1.msra.mxu0 0.0
    %1403 = vmatprep.subr.mxu0 0.0
    %1404 = vmatpush1.msra.mxu0 0.0
    %1405 = vmatprep.mubr.f32.mxu0 0.0
    %1406 = vmatmul.mubr.f32.gmra.mrb[0].mxu0 %v1196
    %v1407 = vpop.f32.mrb[0].mxu0
    %v1408 = vadd.f32 0.0, %v1407
    %v1409 = vpop.f32.mrb[0].mxu0
    %v1410 = vadd.f32 0.0, %v1409
    %1411 = vdwg.mxu0
    %v1412 = vadd.f32 %v1202, %v1337
    %v1413 = vadd.f32 %v1203, %v1339
    %v1414 = vadd.f32 %v1204, %v1408
    %v1415 = vadd.f32 %v1205, %v1410
    %v1416 = vxor.u32 %v1412, 2147483648
    %v1417 = vmul.f32 %v1416, 1.442695
    %v1418 = vpow.pop %v1417
    %v1419 = vadd.f32 %v1418, 1.0
    %v1420 = vrcp.pop %v1419
    %v1421 = vmul.f32 1.0, %v1420
    %v1422 = vxor.u32 %v1413, 2147483648
    %v1423 = vmul.f32 %v1422, 1.442695
    %v1424 = vpow.pop %v1423
    %v1425 = vadd.f32 %v1424, 1.0
    %v1426 = vrcp.pop %v1425
    %v1427 = vmul.f32 1.0, %v1426
    %v1428 = vtanh.pop %v1414
    %v1429 = vxor.u32 %v1415, 2147483648
    %v1430 = vmul.f32 %v1429, 1.442695
    %v1431 = vpow.pop %v1430
    %v1432 = vadd.f32 %v1431, 1.0
    %v1433 = vrcp.pop %v1432
    %v1434 = vmul.f32 1.0, %v1433
    %v1435 = vmul.f32 %v1427, %v1194
    %v1436 = vmul.f32 %v1421, %v1428
    %v1437 = vadd.f32 %v1435, %v1436
    %v1438 = vtanh.pop %v1437
    %v1439 = vmul.f32 %v1434, %v1438
    %s1440 = scalar_lea.vmem [#allocation14], 24
    %1441 = vst [vmem:[%s1440] sm:$0xff] %v1439
    %s1442 = smul.u32 4, 4
    %s1443 = smul.addr %s1442, 8
    %s1444 = scalar_lea.vmem [#allocation2], %s1443
    %v1445 = vld [vmem:[%s1444] sm:$0xff]
    %v1446 = vld [vmem:[%s1444 + $0x8] sm:$0xff]
    %v1447 = vld [vmem:[%s1444 + $0x10] sm:$0xff]
    %v1448 = vld [vmem:[%s1444 + $0x18] sm:$0xff]
    %v1449 = vld [vmem:[#allocation8] sm:$0xff]
    %v1450 = vld [vmem:[#allocation8 + $0x8] sm:$0xff]
    %v1451 = vld [vmem:[#allocation8 + $0x10] sm:$0xff]
    %v1452 = vld [vmem:[#allocation8 + $0x18] sm:$0xff]
    %v1453 = vld [vmem:[#allocation8 + $0x20] sm:$0xff]
    %v1454 = vld [vmem:[#allocation8 + $0x28] sm:$0xff]
    %v1455 = vld [vmem:[#allocation8 + $0x30] sm:$0xff]
    %v1456 = vld [vmem:[#allocation8 + $0x38] sm:$0xff]
    %v1457 = vld [vmem:[#allocation8 + $0x40] sm:$0xff]
    %v1458 = vld [vmem:[#allocation8 + $0x48] sm:$0xff]
    %v1459 = vld [vmem:[#allocation8 + $0x50] sm:$0xff]
    %v1460 = vld [vmem:[#allocation8 + $0x58] sm:$0xff]
    %v1461 = vld [vmem:[#allocation8 + $0x60] sm:$0xff]
    %v1462 = vld [vmem:[#allocation8 + $0x68] sm:$0xff]
    %v1463 = vld [vmem:[#allocation8 + $0x70] sm:$0xff]
    %v1464 = vld [vmem:[#allocation8 + $0x78] sm:$0xff]
    %v1465 = vld [vmem:[#allocation8 + $0x80] sm:$0xff]
    %v1466 = vld [vmem:[#allocation8 + $0x88] sm:$0xff]
    %v1467 = vld [vmem:[#allocation8 + $0x90] sm:$0xff]
    %v1468 = vld [vmem:[#allocation8 + $0x98] sm:$0xff]
    %v1469 = vld [vmem:[#allocation8 + $0xa0] sm:$0xff]
    %v1470 = vld [vmem:[#allocation8 + $0xa8] sm:$0xff]
    %v1471 = vld [vmem:[#allocation8 + $0xb0] sm:$0xff]
    %v1472 = vld [vmem:[#allocation8 + $0xb8] sm:$0xff]
    %v1473 = vld [vmem:[#allocation8 + $0xc0] sm:$0xff]
    %v1474 = vld [vmem:[#allocation8 + $0xc8] sm:$0xff]
    %v1475 = vld [vmem:[#allocation8 + $0xd0] sm:$0xff]
    %v1476 = vld [vmem:[#allocation8 + $0xd8] sm:$0xff]
    %v1477 = vld [vmem:[#allocation8 + $0xe0] sm:$0xff]
    %v1478 = vld [vmem:[#allocation8 + $0xe8] sm:$0xff]
    %v1479 = vld [vmem:[#allocation8 + $0xf0] sm:$0xff]
    %v1480 = vld [vmem:[#allocation8 + $0xf8] sm:$0xff]
    %v1481 = vld [vmem:[#allocation8 + $0x100] sm:$0xff]
    %v1482 = vld [vmem:[#allocation8 + $0x108] sm:$0xff]
    %v1483 = vld [vmem:[#allocation8 + $0x110] sm:$0xff]
    %v1484 = vld [vmem:[#allocation8 + $0x118] sm:$0xff]
    %v1485 = vld [vmem:[#allocation8 + $0x120] sm:$0xff]
    %v1486 = vld [vmem:[#allocation8 + $0x128] sm:$0xff]
    %v1487 = vld [vmem:[#allocation8 + $0x130] sm:$0xff]
    %v1488 = vld [vmem:[#allocation8 + $0x138] sm:$0xff]
    %v1489 = vld [vmem:[#allocation8 + $0x140] sm:$0xff]
    %v1490 = vld [vmem:[#allocation8 + $0x148] sm:$0xff]
    %v1491 = vld [vmem:[#allocation8 + $0x150] sm:$0xff]
    %v1492 = vld [vmem:[#allocation8 + $0x158] sm:$0xff]
    %v1493 = vld [vmem:[#allocation8 + $0x160] sm:$0xff]
    %v1494 = vld [vmem:[#allocation8 + $0x168] sm:$0xff]
    %v1495 = vld [vmem:[#allocation8 + $0x170] sm:$0xff]
    %v1496 = vld [vmem:[#allocation8 + $0x178] sm:$0xff]
    %v1497 = vld [vmem:[#allocation8 + $0x180] sm:$0xff]
    %v1498 = vld [vmem:[#allocation8 + $0x188] sm:$0xff]
    %v1499 = vld [vmem:[#allocation8 + $0x190] sm:$0xff]
    %v1500 = vld [vmem:[#allocation8 + $0x198] sm:$0xff]
    %v1501 = vld [vmem:[#allocation8 + $0x1a0] sm:$0xff]
    %v1502 = vld [vmem:[#allocation8 + $0x1a8] sm:$0xff]
    %v1503 = vld [vmem:[#allocation8 + $0x1b0] sm:$0xff]
    %v1504 = vld [vmem:[#allocation8 + $0x1b8] sm:$0xff]
    %v1505 = vld [vmem:[#allocation8 + $0x1c0] sm:$0xff]
    %v1506 = vld [vmem:[#allocation8 + $0x1c8] sm:$0xff]
    %v1507 = vld [vmem:[#allocation8 + $0x1d0] sm:$0xff]
    %v1508 = vld [vmem:[#allocation8 + $0x1d8] sm:$0xff]
    %v1509 = vld [vmem:[#allocation8 + $0x1e0] sm:$0xff]
    %v1510 = vld [vmem:[#allocation8 + $0x1e8] sm:$0xff]
    %v1511 = vld [vmem:[#allocation8 + $0x1f0] sm:$0xff]
    %v1512 = vld [vmem:[#allocation8 + $0x1f8] sm:$0xff]
    %1513 = vmatprep.subr.mxu0 %v1450
    %1514 = vmatpush1.msra.mxu0 %v1449
    %1515 = vmatprep.subr.mxu0 %v1454
    %1516 = vmatpush1.msra.mxu0 %v1453
    %1517 = vmatprep.subr.mxu0 %v1458
    %1518 = vmatpush1.msra.mxu0 %v1457
    %1519 = vmatprep.subr.mxu0 %v1462
    %1520 = vmatpush1.msra.mxu0 %v1461
    %1521 = vmatprep.subr.mxu0 %v1466
    %1522 = vmatpush1.msra.mxu0 %v1465
    %1523 = vmatprep.subr.mxu0 %v1470
    %1524 = vmatpush1.msra.mxu0 %v1469
    %1525 = vmatprep.subr.mxu0 %v1474
    %1526 = vmatpush1.msra.mxu0 %v1473
    %1527 = vmatprep.subr.mxu0 %v1478
    %1528 = vmatpush1.msra.mxu0 %v1477
    %1529 = vmatprep.subr.mxu0 %v1482
    %1530 = vmatpush1.msra.mxu0 %v1481
    %1531 = vmatprep.subr.mxu0 %v1486
    %1532 = vmatpush1.msra.mxu0 %v1485
    %1533 = vmatprep.subr.mxu0 %v1490
    %1534 = vmatpush1.msra.mxu0 %v1489
    %1535 = vmatprep.subr.mxu0 %v1494
    %1536 = vmatpush1.msra.mxu0 %v1493
    %1537 = vmatprep.subr.mxu0 %v1498
    %1538 = vmatpush1.msra.mxu0 %v1497
    %1539 = vmatprep.subr.mxu0 %v1502
    %1540 = vmatpush1.msra.mxu0 %v1501
    %1541 = vmatprep.subr.mxu0 %v1506
    %1542 = vmatpush1.msra.mxu0 %v1505
    %1543 = vmatprep.subr.mxu0 %v1510
    %1544 = vmatpush1.msra.mxu0 %v1509
    %1545 = vmatprep.subr.mxu0 0.0
    %1546 = vmatpush1.msra.mxu0 0.0
    %1547 = vmatprep.subr.mxu0 0.0
    %1548 = vmatpush1.msra.mxu0 0.0
    %1549 = vmatprep.subr.mxu0 0.0
    %1550 = vmatpush1.msra.mxu0 0.0
    %1551 = vmatprep.subr.mxu0 0.0
    %1552 = vmatpush1.msra.mxu0 0.0
    %1553 = vmatprep.subr.mxu0 0.0
    %1554 = vmatpush1.msra.mxu0 0.0
    %1555 = vmatprep.subr.mxu0 0.0
    %1556 = vmatpush1.msra.mxu0 0.0
    %1557 = vmatprep.subr.mxu0 0.0
    %1558 = vmatpush1.msra.mxu0 0.0
    %1559 = vmatprep.subr.mxu0 0.0
    %1560 = vmatpush1.msra.mxu0 0.0
    %1561 = vmatprep.subr.mxu0 0.0
    %1562 = vmatpush1.msra.mxu0 0.0
    %1563 = vmatprep.subr.mxu0 0.0
    %1564 = vmatpush1.msra.mxu0 0.0
    %1565 = vmatprep.subr.mxu0 0.0
    %1566 = vmatpush1.msra.mxu0 0.0
    %1567 = vmatprep.subr.mxu0 0.0
    %1568 = vmatpush1.msra.mxu0 0.0
    %1569 = vmatprep.subr.mxu0 0.0
    %1570 = vmatpush1.msra.mxu0 0.0
    %1571 = vmatprep.subr.mxu0 0.0
    %1572 = vmatpush1.msra.mxu0 0.0
    %1573 = vmatprep.subr.mxu0 0.0
    %1574 = vmatpush1.msra.mxu0 0.0
    %1575 = vmatprep.subr.mxu0 0.0
    %1576 = vmatpush1.msra.mxu0 0.0
    %1577 = vmatprep.mubr.f32.mxu0 0.0
    %1578 = vmatmul.mubr.f32.gmra.mrb[0].mxu0 %v1439
    %v1579 = vpop.f32.mrb[0].mxu0
    %v1580 = vadd.f32 0.0, %v1579
    %v1581 = vpop.f32.mrb[0].mxu0
    %v1582 = vadd.f32 0.0, %v1581
    %1583 = vdwg.mxu0
    %1584 = vmatprep.subr.mxu0 %v1452
    %1585 = vmatpush1.msra.mxu0 %v1451
    %1586 = vmatprep.subr.mxu0 %v1456
    %1587 = vmatpush1.msra.mxu0 %v1455
    %1588 = vmatprep.subr.mxu0 %v1460
    %1589 = vmatpush1.msra.mxu0 %v1459
    %1590 = vmatprep.subr.mxu0 %v1464
    %1591 = vmatpush1.msra.mxu0 %v1463
    %1592 = vmatprep.subr.mxu0 %v1468
    %1593 = vmatpush1.msra.mxu0 %v1467
    %1594 = vmatprep.subr.mxu0 %v1472
    %1595 = vmatpush1.msra.mxu0 %v1471
    %1596 = vmatprep.subr.mxu0 %v1476
    %1597 = vmatpush1.msra.mxu0 %v1475
    %1598 = vmatprep.subr.mxu0 %v1480
    %1599 = vmatpush1.msra.mxu0 %v1479
    %1600 = vmatprep.subr.mxu0 %v1484
    %1601 = vmatpush1.msra.mxu0 %v1483
    %1602 = vmatprep.subr.mxu0 %v1488
    %1603 = vmatpush1.msra.mxu0 %v1487
    %1604 = vmatprep.subr.mxu0 %v1492
    %1605 = vmatpush1.msra.mxu0 %v1491
    %1606 = vmatprep.subr.mxu0 %v1496
    %1607 = vmatpush1.msra.mxu0 %v1495
    %1608 = vmatprep.subr.mxu0 %v1500
    %1609 = vmatpush1.msra.mxu0 %v1499
    %1610 = vmatprep.subr.mxu0 %v1504
    %1611 = vmatpush1.msra.mxu0 %v1503
    %1612 = vmatprep.subr.mxu0 %v1508
    %1613 = vmatpush1.msra.mxu0 %v1507
    %1614 = vmatprep.subr.mxu0 %v1512
    %1615 = vmatpush1.msra.mxu0 %v1511
    %1616 = vmatprep.subr.mxu0 0.0
    %1617 = vmatpush1.msra.mxu0 0.0
    %1618 = vmatprep.subr.mxu0 0.0
    %1619 = vmatpush1.msra.mxu0 0.0
    %1620 = vmatprep.subr.mxu0 0.0
    %1621 = vmatpush1.msra.mxu0 0.0
    %1622 = vmatprep.subr.mxu0 0.0
    %1623 = vmatpush1.msra.mxu0 0.0
    %1624 = vmatprep.subr.mxu0 0.0
    %1625 = vmatpush1.msra.mxu0 0.0
    %1626 = vmatprep.subr.mxu0 0.0
    %1627 = vmatpush1.msra.mxu0 0.0
    %1628 = vmatprep.subr.mxu0 0.0
    %1629 = vmatpush1.msra.mxu0 0.0
    %1630 = vmatprep.subr.mxu0 0.0
    %1631 = vmatpush1.msra.mxu0 0.0
    %1632 = vmatprep.subr.mxu0 0.0
    %1633 = vmatpush1.msra.mxu0 0.0
    %1634 = vmatprep.subr.mxu0 0.0
    %1635 = vmatpush1.msra.mxu0 0.0
    %1636 = vmatprep.subr.mxu0 0.0
    %1637 = vmatpush1.msra.mxu0 0.0
    %1638 = vmatprep.subr.mxu0 0.0
    %1639 = vmatpush1.msra.mxu0 0.0
    %1640 = vmatprep.subr.mxu0 0.0
    %1641 = vmatpush1.msra.mxu0 0.0
    %1642 = vmatprep.subr.mxu0 0.0
    %1643 = vmatpush1.msra.mxu0 0.0
    %1644 = vmatprep.subr.mxu0 0.0
    %1645 = vmatpush1.msra.mxu0 0.0
    %1646 = vmatprep.subr.mxu0 0.0
    %1647 = vmatpush1.msra.mxu0 0.0
    %1648 = vmatprep.mubr.f32.mxu0 0.0
    %1649 = vmatmul.mubr.f32.gmra.mrb[0].mxu0 %v1439
    %v1650 = vpop.f32.mrb[0].mxu0
    %v1651 = vadd.f32 0.0, %v1650
    %v1652 = vpop.f32.mrb[0].mxu0
    %v1653 = vadd.f32 0.0, %v1652
    %1654 = vdwg.mxu0
    %v1655 = vadd.f32 %v1445, %v1580
    %v1656 = vadd.f32 %v1446, %v1582
    %v1657 = vadd.f32 %v1447, %v1651
    %v1658 = vadd.f32 %v1448, %v1653
    %v1659 = vxor.u32 %v1655, 2147483648
    %v1660 = vmul.f32 %v1659, 1.442695
    %v1661 = vpow.pop %v1660
    %v1662 = vadd.f32 %v1661, 1.0
    %v1663 = vrcp.pop %v1662
    %v1664 = vmul.f32 1.0, %v1663
    %v1665 = vxor.u32 %v1656, 2147483648
    %v1666 = vmul.f32 %v1665, 1.442695
    %v1667 = vpow.pop %v1666
    %v1668 = vadd.f32 %v1667, 1.0
    %v1669 = vrcp.pop %v1668
    %v1670 = vmul.f32 1.0, %v1669
    %v1671 = vtanh.pop %v1657
    %v1672 = vxor.u32 %v1658, 2147483648
    %v1673 = vmul.f32 %v1672, 1.442695
    %v1674 = vpow.pop %v1673
    %v1675 = vadd.f32 %v1674, 1.0
    %v1676 = vrcp.pop %v1675
    %v1677 = vmul.f32 1.0, %v1676
    %v1678 = vmul.f32 %v1670, %v1437
    %v1679 = vmul.f32 %v1664, %v1671
    %v1680 = vadd.f32 %v1678, %v1679
    %v1681 = vtanh.pop %v1680
    %v1682 = vmul.f32 %v1677, %v1681
    %s1683 = scalar_lea.vmem [#allocation14], 32
    %1684 = vst [vmem:[%s1683] sm:$0xff] %v1682
    %s1685 = smul.u32 5, 4
    %s1686 = smul.addr %s1685, 8
    %s1687 = scalar_lea.vmem [#allocation2], %s1686
    %v1688 = vld [vmem:[%s1687] sm:$0xff]
    %v1689 = vld [vmem:[%s1687 + $0x8] sm:$0xff]
    %v1690 = vld [vmem:[%s1687 + $0x10] sm:$0xff]
    %v1691 = vld [vmem:[%s1687 + $0x18] sm:$0xff]
    %v1692 = vld [vmem:[#allocation8] sm:$0xff]
    %v1693 = vld [vmem:[#allocation8 + $0x8] sm:$0xff]
    %v1694 = vld [vmem:[#allocation8 + $0x10] sm:$0xff]
    %v1695 = vld [vmem:[#allocation8 + $0x18] sm:$0xff]
    %v1696 = vld [vmem:[#allocation8 + $0x20] sm:$0xff]
    %v1697 = vld [vmem:[#allocation8 + $0x28] sm:$0xff]
    %v1698 = vld [vmem:[#allocation8 + $0x30] sm:$0xff]
    %v1699 = vld [vmem:[#allocation8 + $0x38] sm:$0xff]
    %v1700 = vld [vmem:[#allocation8 + $0x40] sm:$0xff]
    %v1701 = vld [vmem:[#allocation8 + $0x48] sm:$0xff]
    %v1702 = vld [vmem:[#allocation8 + $0x50] sm:$0xff]
    %v1703 = vld [vmem:[#allocation8 + $0x58] sm:$0xff]
    %v1704 = vld [vmem:[#allocation8 + $0x60] sm:$0xff]
    %v1705 = vld [vmem:[#allocation8 + $0x68] sm:$0xff]
    %v1706 = vld [vmem:[#allocation8 + $0x70] sm:$0xff]
    %v1707 = vld [vmem:[#allocation8 + $0x78] sm:$0xff]
    %v1708 = vld [vmem:[#allocation8 + $0x80] sm:$0xff]
    %v1709 = vld [vmem:[#allocation8 + $0x88] sm:$0xff]
    %v1710 = vld [vmem:[#allocation8 + $0x90] sm:$0xff]
    %v1711 = vld [vmem:[#allocation8 + $0x98] sm:$0xff]
    %v1712 = vld [vmem:[#allocation8 + $0xa0] sm:$0xff]
    %v1713 = vld [vmem:[#allocation8 + $0xa8] sm:$0xff]
    %v1714 = vld [vmem:[#allocation8 + $0xb0] sm:$0xff]
    %v1715 = vld [vmem:[#allocation8 + $0xb8] sm:$0xff]
    %v1716 = vld [vmem:[#allocation8 + $0xc0] sm:$0xff]
    %v1717 = vld [vmem:[#allocation8 + $0xc8] sm:$0xff]
    %v1718 = vld [vmem:[#allocation8 + $0xd0] sm:$0xff]
    %v1719 = vld [vmem:[#allocation8 + $0xd8] sm:$0xff]
    %v1720 = vld [vmem:[#allocation8 + $0xe0] sm:$0xff]
    %v1721 = vld [vmem:[#allocation8 + $0xe8] sm:$0xff]
    %v1722 = vld [vmem:[#allocation8 + $0xf0] sm:$0xff]
    %v1723 = vld [vmem:[#allocation8 + $0xf8] sm:$0xff]
    %v1724 = vld [vmem:[#allocation8 + $0x100] sm:$0xff]
    %v1725 = vld [vmem:[#allocation8 + $0x108] sm:$0xff]
    %v1726 = vld [vmem:[#allocation8 + $0x110] sm:$0xff]
    %v1727 = vld [vmem:[#allocation8 + $0x118] sm:$0xff]
    %v1728 = vld [vmem:[#allocation8 + $0x120] sm:$0xff]
    %v1729 = vld [vmem:[#allocation8 + $0x128] sm:$0xff]
    %v1730 = vld [vmem:[#allocation8 + $0x130] sm:$0xff]
    %v1731 = vld [vmem:[#allocation8 + $0x138] sm:$0xff]
    %v1732 = vld [vmem:[#allocation8 + $0x140] sm:$0xff]
    %v1733 = vld [vmem:[#allocation8 + $0x148] sm:$0xff]
    %v1734 = vld [vmem:[#allocation8 + $0x150] sm:$0xff]
    %v1735 = vld [vmem:[#allocation8 + $0x158] sm:$0xff]
    %v1736 = vld [vmem:[#allocation8 + $0x160] sm:$0xff]
    %v1737 = vld [vmem:[#allocation8 + $0x168] sm:$0xff]
    %v1738 = vld [vmem:[#allocation8 + $0x170] sm:$0xff]
    %v1739 = vld [vmem:[#allocation8 + $0x178] sm:$0xff]
    %v1740 = vld [vmem:[#allocation8 + $0x180] sm:$0xff]
    %v1741 = vld [vmem:[#allocation8 + $0x188] sm:$0xff]
    %v1742 = vld [vmem:[#allocation8 + $0x190] sm:$0xff]
    %v1743 = vld [vmem:[#allocation8 + $0x198] sm:$0xff]
    %v1744 = vld [vmem:[#allocation8 + $0x1a0] sm:$0xff]
    %v1745 = vld [vmem:[#allocation8 + $0x1a8] sm:$0xff]
    %v1746 = vld [vmem:[#allocation8 + $0x1b0] sm:$0xff]
    %v1747 = vld [vmem:[#allocation8 + $0x1b8] sm:$0xff]
    %v1748 = vld [vmem:[#allocation8 + $0x1c0] sm:$0xff]
    %v1749 = vld [vmem:[#allocation8 + $0x1c8] sm:$0xff]
    %v1750 = vld [vmem:[#allocation8 + $0x1d0] sm:$0xff]
    %v1751 = vld [vmem:[#allocation8 + $0x1d8] sm:$0xff]
    %v1752 = vld [vmem:[#allocation8 + $0x1e0] sm:$0xff]
    %v1753 = vld [vmem:[#allocation8 + $0x1e8] sm:$0xff]
    %v1754 = vld [vmem:[#allocation8 + $0x1f0] sm:$0xff]
    %v1755 = vld [vmem:[#allocation8 + $0x1f8] sm:$0xff]
    %1756 = vmatprep.subr.mxu0 %v1693
    %1757 = vmatpush1.msra.mxu0 %v1692
    %1758 = vmatprep.subr.mxu0 %v1697
    %1759 = vmatpush1.msra.mxu0 %v1696
    %1760 = vmatprep.subr.mxu0 %v1701
    %1761 = vmatpush1.msra.mxu0 %v1700
    %1762 = vmatprep.subr.mxu0 %v1705
    %1763 = vmatpush1.msra.mxu0 %v1704
    %1764 = vmatprep.subr.mxu0 %v1709
    %1765 = vmatpush1.msra.mxu0 %v1708
    %1766 = vmatprep.subr.mxu0 %v1713
    %1767 = vmatpush1.msra.mxu0 %v1712
    %1768 = vmatprep.subr.mxu0 %v1717
    %1769 = vmatpush1.msra.mxu0 %v1716
    %1770 = vmatprep.subr.mxu0 %v1721
    %1771 = vmatpush1.msra.mxu0 %v1720
    %1772 = vmatprep.subr.mxu0 %v1725
    %1773 = vmatpush1.msra.mxu0 %v1724
    %1774 = vmatprep.subr.mxu0 %v1729
    %1775 = vmatpush1.msra.mxu0 %v1728
    %1776 = vmatprep.subr.mxu0 %v1733
    %1777 = vmatpush1.msra.mxu0 %v1732
    %1778 = vmatprep.subr.mxu0 %v1737
    %1779 = vmatpush1.msra.mxu0 %v1736
    %1780 = vmatprep.subr.mxu0 %v1741
    %1781 = vmatpush1.msra.mxu0 %v1740
    %1782 = vmatprep.subr.mxu0 %v1745
    %1783 = vmatpush1.msra.mxu0 %v1744
    %1784 = vmatprep.subr.mxu0 %v1749
    %1785 = vmatpush1.msra.mxu0 %v1748
    %1786 = vmatprep.subr.mxu0 %v1753
    %1787 = vmatpush1.msra.mxu0 %v1752
    %1788 = vmatprep.subr.mxu0 0.0
    %1789 = vmatpush1.msra.mxu0 0.0
    %1790 = vmatprep.subr.mxu0 0.0
    %1791 = vmatpush1.msra.mxu0 0.0
    %1792 = vmatprep.subr.mxu0 0.0
    %1793 = vmatpush1.msra.mxu0 0.0
    %1794 = vmatprep.subr.mxu0 0.0
    %1795 = vmatpush1.msra.mxu0 0.0
    %1796 = vmatprep.subr.mxu0 0.0
    %1797 = vmatpush1.msra.mxu0 0.0
    %1798 = vmatprep.subr.mxu0 0.0
    %1799 = vmatpush1.msra.mxu0 0.0
    %1800 = vmatprep.subr.mxu0 0.0
    %1801 = vmatpush1.msra.mxu0 0.0
    %1802 = vmatprep.subr.mxu0 0.0
    %1803 = vmatpush1.msra.mxu0 0.0
    %1804 = vmatprep.subr.mxu0 0.0
    %1805 = vmatpush1.msra.mxu0 0.0
    %1806 = vmatprep.subr.mxu0 0.0
    %1807 = vmatpush1.msra.mxu0 0.0
    %1808 = vmatprep.subr.mxu0 0.0
    %1809 = vmatpush1.msra.mxu0 0.0
    %1810 = vmatprep.subr.mxu0 0.0
    %1811 = vmatpush1.msra.mxu0 0.0
    %1812 = vmatprep.subr.mxu0 0.0
    %1813 = vmatpush1.msra.mxu0 0.0
    %1814 = vmatprep.subr.mxu0 0.0
    %1815 = vmatpush1.msra.mxu0 0.0
    %1816 = vmatprep.subr.mxu0 0.0
    %1817 = vmatpush1.msra.mxu0 0.0
    %1818 = vmatprep.subr.mxu0 0.0
    %1819 = vmatpush1.msra.mxu0 0.0
    %1820 = vmatprep.mubr.f32.mxu0 0.0
    %1821 = vmatmul.mubr.f32.gmra.mrb[0].mxu0 %v1682
    %v1822 = vpop.f32.mrb[0].mxu0
    %v1823 = vadd.f32 0.0, %v1822
    %v1824 = vpop.f32.mrb[0].mxu0
    %v1825 = vadd.f32 0.0, %v1824
    %1826 = vdwg.mxu0
    %1827 = vmatprep.subr.mxu0 %v1695
    %1828 = vmatpush1.msra.mxu0 %v1694
    %1829 = vmatprep.subr.mxu0 %v1699
    %1830 = vmatpush1.msra.mxu0 %v1698
    %1831 = vmatprep.subr.mxu0 %v1703
    %1832 = vmatpush1.msra.mxu0 %v1702
    %1833 = vmatprep.subr.mxu0 %v1707
    %1834 = vmatpush1.msra.mxu0 %v1706
    %1835 = vmatprep.subr.mxu0 %v1711
    %1836 = vmatpush1.msra.mxu0 %v1710
    %1837 = vmatprep.subr.mxu0 %v1715
    %1838 = vmatpush1.msra.mxu0 %v1714
    %1839 = vmatprep.subr.mxu0 %v1719
    %1840 = vmatpush1.msra.mxu0 %v1718
    %1841 = vmatprep.subr.mxu0 %v1723
    %1842 = vmatpush1.msra.mxu0 %v1722
    %1843 = vmatprep.subr.mxu0 %v1727
    %1844 = vmatpush1.msra.mxu0 %v1726
    %1845 = vmatprep.subr.mxu0 %v1731
    %1846 = vmatpush1.msra.mxu0 %v1730
    %1847 = vmatprep.subr.mxu0 %v1735
    %1848 = vmatpush1.msra.mxu0 %v1734
    %1849 = vmatprep.subr.mxu0 %v1739
    %1850 = vmatpush1.msra.mxu0 %v1738
    %1851 = vmatprep.subr.mxu0 %v1743
    %1852 = vmatpush1.msra.mxu0 %v1742
    %1853 = vmatprep.subr.mxu0 %v1747
    %1854 = vmatpush1.msra.mxu0 %v1746
    %1855 = vmatprep.subr.mxu0 %v1751
    %1856 = vmatpush1.msra.mxu0 %v1750
    %1857 = vmatprep.subr.mxu0 %v1755
    %1858 = vmatpush1.msra.mxu0 %v1754
    %1859 = vmatprep.subr.mxu0 0.0
    %1860 = vmatpush1.msra.mxu0 0.0
    %1861 = vmatprep.subr.mxu0 0.0
    %1862 = vmatpush1.msra.mxu0 0.0
    %1863 = vmatprep.subr.mxu0 0.0
    %1864 = vmatpush1.msra.mxu0 0.0
    %1865 = vmatprep.subr.mxu0 0.0
    %1866 = vmatpush1.msra.mxu0 0.0
    %1867 = vmatprep.subr.mxu0 0.0
    %1868 = vmatpush1.msra.mxu0 0.0
    %1869 = vmatprep.subr.mxu0 0.0
    %1870 = vmatpush1.msra.mxu0 0.0
    %1871 = vmatprep.subr.mxu0 0.0
    %1872 = vmatpush1.msra.mxu0 0.0
    %1873 = vmatprep.subr.mxu0 0.0
    %1874 = vmatpush1.msra.mxu0 0.0
    %1875 = vmatprep.subr.mxu0 0.0
    %1876 = vmatpush1.msra.mxu0 0.0
    %1877 = vmatprep.subr.mxu0 0.0
    %1878 = vmatpush1.msra.mxu0 0.0
    %1879 = vmatprep.subr.mxu0 0.0
    %1880 = vmatpush1.msra.mxu0 0.0
    %1881 = vmatprep.subr.mxu0 0.0
    %1882 = vmatpush1.msra.mxu0 0.0
    %1883 = vmatprep.subr.mxu0 0.0
    %1884 = vmatpush1.msra.mxu0 0.0
    %1885 = vmatprep.subr.mxu0 0.0
    %1886 = vmatpush1.msra.mxu0 0.0
    %1887 = vmatprep.subr.mxu0 0.0
    %1888 = vmatpush1.msra.mxu0 0.0
    %1889 = vmatprep.subr.mxu0 0.0
    %1890 = vmatpush1.msra.mxu0 0.0
    %1891 = vmatprep.mubr.f32.mxu0 0.0
    %1892 = vmatmul.mubr.f32.gmra.mrb[0].mxu0 %v1682
    %v1893 = vpop.f32.mrb[0].mxu0
    %v1894 = vadd.f32 0.0, %v1893
    %v1895 = vpop.f32.mrb[0].mxu0
    %v1896 = vadd.f32 0.0, %v1895
    %1897 = vdwg.mxu0
    %v1898 = vadd.f32 %v1688, %v1823
    %v1899 = vadd.f32 %v1689, %v1825
    %v1900 = vadd.f32 %v1690, %v1894
    %v1901 = vadd.f32 %v1691, %v1896
    %v1902 = vxor.u32 %v1898, 2147483648
    %v1903 = vmul.f32 %v1902, 1.442695
    %v1904 = vpow.pop %v1903
    %v1905 = vadd.f32 %v1904, 1.0
    %v1906 = vrcp.pop %v1905
    %v1907 = vmul.f32 1.0, %v1906
    %v1908 = vxor.u32 %v1899, 2147483648
    %v1909 = vmul.f32 %v1908, 1.442695
    %v1910 = vpow.pop %v1909
    %v1911 = vadd.f32 %v1910, 1.0
    %v1912 = vrcp.pop %v1911
    %v1913 = vmul.f32 1.0, %v1912
    %v1914 = vtanh.pop %v1900
    %v1915 = vxor.u32 %v1901, 2147483648
    %v1916 = vmul.f32 %v1915, 1.442695
    %v1917 = vpow.pop %v1916
    %v1918 = vadd.f32 %v1917, 1.0
    %v1919 = vrcp.pop %v1918
    %v1920 = vmul.f32 1.0, %v1919
    %v1921 = vmul.f32 %v1913, %v1680
    %v1922 = vmul.f32 %v1907, %v1914
    %v1923 = vadd.f32 %v1921, %v1922
    %v1924 = vtanh.pop %v1923
    %v1925 = vmul.f32 %v1920, %v1924
    %s1926 = scalar_lea.vmem [#allocation14], 40
    %1927 = vst [vmem:[%s1926] sm:$0xff] %v1925
    %s1928 = smul.u32 6, 4
    %s1929 = smul.addr %s1928, 8
    %s1930 = scalar_lea.vmem [#allocation2], %s1929
    %v1931 = vld [vmem:[%s1930] sm:$0xff]
    %v1932 = vld [vmem:[%s1930 + $0x8] sm:$0xff]
    %v1933 = vld [vmem:[%s1930 + $0x10] sm:$0xff]
    %v1934 = vld [vmem:[%s1930 + $0x18] sm:$0xff]
    %v1935 = vld [vmem:[#allocation8] sm:$0xff]
    %v1936 = vld [vmem:[#allocation8 + $0x8] sm:$0xff]
    %v1937 = vld [vmem:[#allocation8 + $0x10] sm:$0xff]
    %v1938 = vld [vmem:[#allocation8 + $0x18] sm:$0xff]
    %v1939 = vld [vmem:[#allocation8 + $0x20] sm:$0xff]
    %v1940 = vld [vmem:[#allocation8 + $0x28] sm:$0xff]
    %v1941 = vld [vmem:[#allocation8 + $0x30] sm:$0xff]
    %v1942 = vld [vmem:[#allocation8 + $0x38] sm:$0xff]
    %v1943 = vld [vmem:[#allocation8 + $0x40] sm:$0xff]
    %v1944 = vld [vmem:[#allocation8 + $0x48] sm:$0xff]
    %v1945 = vld [vmem:[#allocation8 + $0x50] sm:$0xff]
    %v1946 = vld [vmem:[#allocation8 + $0x58] sm:$0xff]
    %v1947 = vld [vmem:[#allocation8 + $0x60] sm:$0xff]
    %v1948 = vld [vmem:[#allocation8 + $0x68] sm:$0xff]
    %v1949 = vld [vmem:[#allocation8 + $0x70] sm:$0xff]
    %v1950 = vld [vmem:[#allocation8 + $0x78] sm:$0xff]
    %v1951 = vld [vmem:[#allocation8 + $0x80] sm:$0xff]
    %v1952 = vld [vmem:[#allocation8 + $0x88] sm:$0xff]
    %v1953 = vld [vmem:[#allocation8 + $0x90] sm:$0xff]
    %v1954 = vld [vmem:[#allocation8 + $0x98] sm:$0xff]
    %v1955 = vld [vmem:[#allocation8 + $0xa0] sm:$0xff]
    %v1956 = vld [vmem:[#allocation8 + $0xa8] sm:$0xff]
    %v1957 = vld [vmem:[#allocation8 + $0xb0] sm:$0xff]
    %v1958 = vld [vmem:[#allocation8 + $0xb8] sm:$0xff]
    %v1959 = vld [vmem:[#allocation8 + $0xc0] sm:$0xff]
    %v1960 = vld [vmem:[#allocation8 + $0xc8] sm:$0xff]
    %v1961 = vld [vmem:[#allocation8 + $0xd0] sm:$0xff]
    %v1962 = vld [vmem:[#allocation8 + $0xd8] sm:$0xff]
    %v1963 = vld [vmem:[#allocation8 + $0xe0] sm:$0xff]
    %v1964 = vld [vmem:[#allocation8 + $0xe8] sm:$0xff]
    %v1965 = vld [vmem:[#allocation8 + $0xf0] sm:$0xff]
    %v1966 = vld [vmem:[#allocation8 + $0xf8] sm:$0xff]
    %v1967 = vld [vmem:[#allocation8 + $0x100] sm:$0xff]
    %v1968 = vld [vmem:[#allocation8 + $0x108] sm:$0xff]
    %v1969 = vld [vmem:[#allocation8 + $0x110] sm:$0xff]
    %v1970 = vld [vmem:[#allocation8 + $0x118] sm:$0xff]
    %v1971 = vld [vmem:[#allocation8 + $0x120] sm:$0xff]
    %v1972 = vld [vmem:[#allocation8 + $0x128] sm:$0xff]
    %v1973 = vld [vmem:[#allocation8 + $0x130] sm:$0xff]
    %v1974 = vld [vmem:[#allocation8 + $0x138] sm:$0xff]
    %v1975 = vld [vmem:[#allocation8 + $0x140] sm:$0xff]
    %v1976 = vld [vmem:[#allocation8 + $0x148] sm:$0xff]
    %v1977 = vld [vmem:[#allocation8 + $0x150] sm:$0xff]
    %v1978 = vld [vmem:[#allocation8 + $0x158] sm:$0xff]
    %v1979 = vld [vmem:[#allocation8 + $0x160] sm:$0xff]
    %v1980 = vld [vmem:[#allocation8 + $0x168] sm:$0xff]
    %v1981 = vld [vmem:[#allocation8 + $0x170] sm:$0xff]
    %v1982 = vld [vmem:[#allocation8 + $0x178] sm:$0xff]
    %v1983 = vld [vmem:[#allocation8 + $0x180] sm:$0xff]
    %v1984 = vld [vmem:[#allocation8 + $0x188] sm:$0xff]
    %v1985 = vld [vmem:[#allocation8 + $0x190] sm:$0xff]
    %v1986 = vld [vmem:[#allocation8 + $0x198] sm:$0xff]
    %v1987 = vld [vmem:[#allocation8 + $0x1a0] sm:$0xff]
    %v1988 = vld [vmem:[#allocation8 + $0x1a8] sm:$0xff]
    %v1989 = vld [vmem:[#allocation8 + $0x1b0] sm:$0xff]
    %v1990 = vld [vmem:[#allocation8 + $0x1b8] sm:$0xff]
    %v1991 = vld [vmem:[#allocation8 + $0x1c0] sm:$0xff]
    %v1992 = vld [vmem:[#allocation8 + $0x1c8] sm:$0xff]
    %v1993 = vld [vmem:[#allocation8 + $0x1d0] sm:$0xff]
    %v1994 = vld [vmem:[#allocation8 + $0x1d8] sm:$0xff]
    %v1995 = vld [vmem:[#allocation8 + $0x1e0] sm:$0xff]
    %v1996 = vld [vmem:[#allocation8 + $0x1e8] sm:$0xff]
    %v1997 = vld [vmem:[#allocation8 + $0x1f0] sm:$0xff]
    %v1998 = vld [vmem:[#allocation8 + $0x1f8] sm:$0xff]
    %1999 = vmatprep.subr.mxu0 %v1936
    %2000 = vmatpush1.msra.mxu0 %v1935
    %2001 = vmatprep.subr.mxu0 %v1940
    %2002 = vmatpush1.msra.mxu0 %v1939
    %2003 = vmatprep.subr.mxu0 %v1944
    %2004 = vmatpush1.msra.mxu0 %v1943
    %2005 = vmatprep.subr.mxu0 %v1948
    %2006 = vmatpush1.msra.mxu0 %v1947
    %2007 = vmatprep.subr.mxu0 %v1952
    %2008 = vmatpush1.msra.mxu0 %v1951
    %2009 = vmatprep.subr.mxu0 %v1956
    %2010 = vmatpush1.msra.mxu0 %v1955
    %2011 = vmatprep.subr.mxu0 %v1960
    %2012 = vmatpush1.msra.mxu0 %v1959
    %2013 = vmatprep.subr.mxu0 %v1964
    %2014 = vmatpush1.msra.mxu0 %v1963
    %2015 = vmatprep.subr.mxu0 %v1968
    %2016 = vmatpush1.msra.mxu0 %v1967
    %2017 = vmatprep.subr.mxu0 %v1972
    %2018 = vmatpush1.msra.mxu0 %v1971
    %2019 = vmatprep.subr.mxu0 %v1976
    %2020 = vmatpush1.msra.mxu0 %v1975
    %2021 = vmatprep.subr.mxu0 %v1980
    %2022 = vmatpush1.msra.mxu0 %v1979
    %2023 = vmatprep.subr.mxu0 %v1984
    %2024 = vmatpush1.msra.mxu0 %v1983
    %2025 = vmatprep.subr.mxu0 %v1988
    %2026 = vmatpush1.msra.mxu0 %v1987
    %2027 = vmatprep.subr.mxu0 %v1992
    %2028 = vmatpush1.msra.mxu0 %v1991
    %2029 = vmatprep.subr.mxu0 %v1996
    %2030 = vmatpush1.msra.mxu0 %v1995
    %2031 = vmatprep.subr.mxu0 0.0
    %2032 = vmatpush1.msra.mxu0 0.0
    %2033 = vmatprep.subr.mxu0 0.0
    %2034 = vmatpush1.msra.mxu0 0.0
    %2035 = vmatprep.subr.mxu0 0.0
    %2036 = vmatpush1.msra.mxu0 0.0
    %2037 = vmatprep.subr.mxu0 0.0
    %2038 = vmatpush1.msra.mxu0 0.0
    %2039 = vmatprep.subr.mxu0 0.0
    %2040 = vmatpush1.msra.mxu0 0.0
    %2041 = vmatprep.subr.mxu0 0.0
    %2042 = vmatpush1.msra.mxu0 0.0
    %2043 = vmatprep.subr.mxu0 0.0
    %2044 = vmatpush1.msra.mxu0 0.0
    %2045 = vmatprep.subr.mxu0 0.0
    %2046 = vmatpush1.msra.mxu0 0.0
    %2047 = vmatprep.subr.mxu0 0.0
    %2048 = vmatpush1.msra.mxu0 0.0
    %2049 = vmatprep.subr.mxu0 0.0
    %2050 = vmatpush1.msra.mxu0 0.0
    %2051 = vmatprep.subr.mxu0 0.0
    %2052 = vmatpush1.msra.mxu0 0.0
    %2053 = vmatprep.subr.mxu0 0.0
    %2054 = vmatpush1.msra.mxu0 0.0
    %2055 = vmatprep.subr.mxu0 0.0
    %2056 = vmatpush1.msra.mxu0 0.0
    %2057 = vmatprep.subr.mxu0 0.0
    %2058 = vmatpush1.msra.mxu0 0.0
    %2059 = vmatprep.subr.mxu0 0.0
    %2060 = vmatpush1.msra.mxu0 0.0
    %2061 = vmatprep.subr.mxu0 0.0
    %2062 = vmatpush1.msra.mxu0 0.0
    %2063 = vmatprep.mubr.f32.mxu0 0.0
    %2064 = vmatmul.mubr.f32.gmra.mrb[0].mxu0 %v1925
    %v2065 = vpop.f32.mrb[0].mxu0
    %v2066 = vadd.f32 0.0, %v2065
    %v2067 = vpop.f32.mrb[0].mxu0
    %v2068 = vadd.f32 0.0, %v2067
    %2069 = vdwg.mxu0
    %2070 = vmatprep.subr.mxu0 %v1938
    %2071 = vmatpush1.msra.mxu0 %v1937
    %2072 = vmatprep.subr.mxu0 %v1942
    %2073 = vmatpush1.msra.mxu0 %v1941
    %2074 = vmatprep.subr.mxu0 %v1946
    %2075 = vmatpush1.msra.mxu0 %v1945
    %2076 = vmatprep.subr.mxu0 %v1950
    %2077 = vmatpush1.msra.mxu0 %v1949
    %2078 = vmatprep.subr.mxu0 %v1954
    %2079 = vmatpush1.msra.mxu0 %v1953
    %2080 = vmatprep.subr.mxu0 %v1958
    %2081 = vmatpush1.msra.mxu0 %v1957
    %2082 = vmatprep.subr.mxu0 %v1962
    %2083 = vmatpush1.msra.mxu0 %v1961
    %2084 = vmatprep.subr.mxu0 %v1966
    %2085 = vmatpush1.msra.mxu0 %v1965
    %2086 = vmatprep.subr.mxu0 %v1970
    %2087 = vmatpush1.msra.mxu0 %v1969
    %2088 = vmatprep.subr.mxu0 %v1974
    %2089 = vmatpush1.msra.mxu0 %v1973
    %2090 = vmatprep.subr.mxu0 %v1978
    %2091 = vmatpush1.msra.mxu0 %v1977
    %2092 = vmatprep.subr.mxu0 %v1982
    %2093 = vmatpush1.msra.mxu0 %v1981
    %2094 = vmatprep.subr.mxu0 %v1986
    %2095 = vmatpush1.msra.mxu0 %v1985
    %2096 = vmatprep.subr.mxu0 %v1990
    %2097 = vmatpush1.msra.mxu0 %v1989
    %2098 = vmatprep.subr.mxu0 %v1994
    %2099 = vmatpush1.msra.mxu0 %v1993
    %2100 = vmatprep.subr.mxu0 %v1998
    %2101 = vmatpush1.msra.mxu0 %v1997
    %2102 = vmatprep.subr.mxu0 0.0
    %2103 = vmatpush1.msra.mxu0 0.0
    %2104 = vmatprep.subr.mxu0 0.0
    %2105 = vmatpush1.msra.mxu0 0.0
    %2106 = vmatprep.subr.mxu0 0.0
    %2107 = vmatpush1.msra.mxu0 0.0
    %2108 = vmatprep.subr.mxu0 0.0
    %2109 = vmatpush1.msra.mxu0 0.0
    %2110 = vmatprep.subr.mxu0 0.0
    %2111 = vmatpush1.msra.mxu0 0.0
    %2112 = vmatprep.subr.mxu0 0.0
    %2113 = vmatpush1.msra.mxu0 0.0
    %2114 = vmatprep.subr.mxu0 0.0
    %2115 = vmatpush1.msra.mxu0 0.0
    %2116 = vmatprep.subr.mxu0 0.0
    %2117 = vmatpush1.msra.mxu0 0.0
    %2118 = vmatprep.subr.mxu0 0.0
    %2119 = vmatpush1.msra.mxu0 0.0
    %2120 = vmatprep.subr.mxu0 0.0
    %2121 = vmatpush1.msra.mxu0 0.0
    %2122 = vmatprep.subr.mxu0 0.0
    %2123 = vmatpush1.msra.mxu0 0.0
    %2124 = vmatprep.subr.mxu0 0.0
    %2125 = vmatpush1.msra.mxu0 0.0
    %2126 = vmatprep.subr.mxu0 0.0
    %2127 = vmatpush1.msra.mxu0 0.0
    %2128 = vmatprep.subr.mxu0 0.0
    %2129 = vmatpush1.msra.mxu0 0.0
    %2130 = vmatprep.subr.mxu0 0.0
    %2131 = vmatpush1.msra.mxu0 0.0
    %2132 = vmatprep.subr.mxu0 0.0
    %2133 = vmatpush1.msra.mxu0 0.0
    %2134 = vmatprep.mubr.f32.mxu0 0.0
    %2135 = vmatmul.mubr.f32.gmra.mrb[0].mxu0 %v1925
    %v2136 = vpop.f32.mrb[0].mxu0
    %v2137 = vadd.f32 0.0, %v2136
    %v2138 = vpop.f32.mrb[0].mxu0
    %v2139 = vadd.f32 0.0, %v2138
    %2140 = vdwg.mxu0
    %v2141 = vadd.f32 %v1931, %v2066
    %v2142 = vadd.f32 %v1932, %v2068
    %v2143 = vadd.f32 %v1933, %v2137
    %v2144 = vadd.f32 %v1934, %v2139
    %v2145 = vxor.u32 %v2141, 2147483648
    %v2146 = vmul.f32 %v2145, 1.442695
    %v2147 = vpow.pop %v2146
    %v2148 = vadd.f32 %v2147, 1.0
    %v2149 = vrcp.pop %v2148
    %v2150 = vmul.f32 1.0, %v2149
    %v2151 = vxor.u32 %v2142, 2147483648
    %v2152 = vmul.f32 %v2151, 1.442695
    %v2153 = vpow.pop %v2152
    %v2154 = vadd.f32 %v2153, 1.0
    %v2155 = vrcp.pop %v2154
    %v2156 = vmul.f32 1.0, %v2155
    %v2157 = vtanh.pop %v2143
    %v2158 = vxor.u32 %v2144, 2147483648
    %v2159 = vmul.f32 %v2158, 1.442695
    %v2160 = vpow.pop %v2159
    %v2161 = vadd.f32 %v2160, 1.0
    %v2162 = vrcp.pop %v2161
    %v2163 = vmul.f32 1.0, %v2162
    %v2164 = vmul.f32 %v2156, %v1923
    %v2165 = vmul.f32 %v2150, %v2157
    %v2166 = vadd.f32 %v2164, %v2165
    %v2167 = vtanh.pop %v2166
    %v2168 = vmul.f32 %v2163, %v2167
    %s2169 = scalar_lea.vmem [#allocation14], 48
    %2170 = vst [vmem:[%s2169] sm:$0xff] %v2168
    %s2171 = smul.u32 7, 4
    %s2172 = smul.addr %s2171, 8
    %s2173 = scalar_lea.vmem [#allocation2], %s2172
    %v2174 = vld [vmem:[%s2173] sm:$0xff]
    %v2175 = vld [vmem:[%s2173 + $0x8] sm:$0xff]
    %v2176 = vld [vmem:[%s2173 + $0x10] sm:$0xff]
    %v2177 = vld [vmem:[%s2173 + $0x18] sm:$0xff]
    %v2178 = vld [vmem:[#allocation8] sm:$0xff]
    %v2179 = vld [vmem:[#allocation8 + $0x8] sm:$0xff]
    %v2180 = vld [vmem:[#allocation8 + $0x10] sm:$0xff]
    %v2181 = vld [vmem:[#allocation8 + $0x18] sm:$0xff]
    %v2182 = vld [vmem:[#allocation8 + $0x20] sm:$0xff]
    %v2183 = vld [vmem:[#allocation8 + $0x28] sm:$0xff]
    %v2184 = vld [vmem:[#allocation8 + $0x30] sm:$0xff]
    %v2185 = vld [vmem:[#allocation8 + $0x38] sm:$0xff]
    %v2186 = vld [vmem:[#allocation8 + $0x40] sm:$0xff]
    %v2187 = vld [vmem:[#allocation8 + $0x48] sm:$0xff]
    %v2188 = vld [vmem:[#allocation8 + $0x50] sm:$0xff]
    %v2189 = vld [vmem:[#allocation8 + $0x58] sm:$0xff]
    %v2190 = vld [vmem:[#allocation8 + $0x60] sm:$0xff]
    %v2191 = vld [vmem:[#allocation8 + $0x68] sm:$0xff]
    %v2192 = vld [vmem:[#allocation8 + $0x70] sm:$0xff]
    %v2193 = vld [vmem:[#allocation8 + $0x78] sm:$0xff]
    %v2194 = vld [vmem:[#allocation8 + $0x80] sm:$0xff]
    %v2195 = vld [vmem:[#allocation8 + $0x88] sm:$0xff]
    %v2196 = vld [vmem:[#allocation8 + $0x90] sm:$0xff]
    %v2197 = vld [vmem:[#allocation8 + $0x98] sm:$0xff]
    %v2198 = vld [vmem:[#allocation8 + $0xa0] sm:$0xff]
    %v2199 = vld [vmem:[#allocation8 + $0xa8] sm:$0xff]
    %v2200 = vld [vmem:[#allocation8 + $0xb0] sm:$0xff]
    %v2201 = vld [vmem:[#allocation8 + $0xb8] sm:$0xff]
    %v2202 = vld [vmem:[#allocation8 + $0xc0] sm:$0xff]
    %v2203 = vld [vmem:[#allocation8 + $0xc8] sm:$0xff]
    %v2204 = vld [vmem:[#allocation8 + $0xd0] sm:$0xff]
    %v2205 = vld [vmem:[#allocation8 + $0xd8] sm:$0xff]
    %v2206 = vld [vmem:[#allocation8 + $0xe0] sm:$0xff]
    %v2207 = vld [vmem:[#allocation8 + $0xe8] sm:$0xff]
    %v2208 = vld [vmem:[#allocation8 + $0xf0] sm:$0xff]
    %v2209 = vld [vmem:[#allocation8 + $0xf8] sm:$0xff]
    %v2210 = vld [vmem:[#allocation8 + $0x100] sm:$0xff]
    %v2211 = vld [vmem:[#allocation8 + $0x108] sm:$0xff]
    %v2212 = vld [vmem:[#allocation8 + $0x110] sm:$0xff]
    %v2213 = vld [vmem:[#allocation8 + $0x118] sm:$0xff]
    %v2214 = vld [vmem:[#allocation8 + $0x120] sm:$0xff]
    %v2215 = vld [vmem:[#allocation8 + $0x128] sm:$0xff]
    %v2216 = vld [vmem:[#allocation8 + $0x130] sm:$0xff]
    %v2217 = vld [vmem:[#allocation8 + $0x138] sm:$0xff]
    %v2218 = vld [vmem:[#allocation8 + $0x140] sm:$0xff]
    %v2219 = vld [vmem:[#allocation8 + $0x148] sm:$0xff]
    %v2220 = vld [vmem:[#allocation8 + $0x150] sm:$0xff]
    %v2221 = vld [vmem:[#allocation8 + $0x158] sm:$0xff]
    %v2222 = vld [vmem:[#allocation8 + $0x160] sm:$0xff]
    %v2223 = vld [vmem:[#allocation8 + $0x168] sm:$0xff]
    %v2224 = vld [vmem:[#allocation8 + $0x170] sm:$0xff]
    %v2225 = vld [vmem:[#allocation8 + $0x178] sm:$0xff]
    %v2226 = vld [vmem:[#allocation8 + $0x180] sm:$0xff]
    %v2227 = vld [vmem:[#allocation8 + $0x188] sm:$0xff]
    %v2228 = vld [vmem:[#allocation8 + $0x190] sm:$0xff]
    %v2229 = vld [vmem:[#allocation8 + $0x198] sm:$0xff]
    %v2230 = vld [vmem:[#allocation8 + $0x1a0] sm:$0xff]
    %v2231 = vld [vmem:[#allocation8 + $0x1a8] sm:$0xff]
    %v2232 = vld [vmem:[#allocation8 + $0x1b0] sm:$0xff]
    %v2233 = vld [vmem:[#allocation8 + $0x1b8] sm:$0xff]
    %v2234 = vld [vmem:[#allocation8 + $0x1c0] sm:$0xff]
    %v2235 = vld [vmem:[#allocation8 + $0x1c8] sm:$0xff]
    %v2236 = vld [vmem:[#allocation8 + $0x1d0] sm:$0xff]
    %v2237 = vld [vmem:[#allocation8 + $0x1d8] sm:$0xff]
    %v2238 = vld [vmem:[#allocation8 + $0x1e0] sm:$0xff]
    %v2239 = vld [vmem:[#allocation8 + $0x1e8] sm:$0xff]
    %v2240 = vld [vmem:[#allocation8 + $0x1f0] sm:$0xff]
    %v2241 = vld [vmem:[#allocation8 + $0x1f8] sm:$0xff]
    %2242 = vmatprep.subr.mxu0 %v2179
    %2243 = vmatpush1.msra.mxu0 %v2178
    %2244 = vmatprep.subr.mxu0 %v2183
    %2245 = vmatpush1.msra.mxu0 %v2182
    %2246 = vmatprep.subr.mxu0 %v2187
    %2247 = vmatpush1.msra.mxu0 %v2186
    %2248 = vmatprep.subr.mxu0 %v2191
    %2249 = vmatpush1.msra.mxu0 %v2190
    %2250 = vmatprep.subr.mxu0 %v2195
    %2251 = vmatpush1.msra.mxu0 %v2194
    %2252 = vmatprep.subr.mxu0 %v2199
    %2253 = vmatpush1.msra.mxu0 %v2198
    %2254 = vmatprep.subr.mxu0 %v2203
    %2255 = vmatpush1.msra.mxu0 %v2202
    %2256 = vmatprep.subr.mxu0 %v2207
    %2257 = vmatpush1.msra.mxu0 %v2206
    %2258 = vmatprep.subr.mxu0 %v2211
    %2259 = vmatpush1.msra.mxu0 %v2210
    %2260 = vmatprep.subr.mxu0 %v2215
    %2261 = vmatpush1.msra.mxu0 %v2214
    %2262 = vmatprep.subr.mxu0 %v2219
    %2263 = vmatpush1.msra.mxu0 %v2218
    %2264 = vmatprep.subr.mxu0 %v2223
    %2265 = vmatpush1.msra.mxu0 %v2222
    %2266 = vmatprep.subr.mxu0 %v2227
    %2267 = vmatpush1.msra.mxu0 %v2226
    %2268 = vmatprep.subr.mxu0 %v2231
    %2269 = vmatpush1.msra.mxu0 %v2230
    %2270 = vmatprep.subr.mxu0 %v2235
    %2271 = vmatpush1.msra.mxu0 %v2234
    %2272 = vmatprep.subr.mxu0 %v2239
    %2273 = vmatpush1.msra.mxu0 %v2238
    %2274 = vmatprep.subr.mxu0 0.0
    %2275 = vmatpush1.msra.mxu0 0.0
    %2276 = vmatprep.subr.mxu0 0.0
    %2277 = vmatpush1.msra.mxu0 0.0
    %2278 = vmatprep.subr.mxu0 0.0
    %2279 = vmatpush1.msra.mxu0 0.0
    %2280 = vmatprep.subr.mxu0 0.0
    %2281 = vmatpush1.msra.mxu0 0.0
    %2282 = vmatprep.subr.mxu0 0.0
    %2283 = vmatpush1.msra.mxu0 0.0
    %2284 = vmatprep.subr.mxu0 0.0
    %2285 = vmatpush1.msra.mxu0 0.0
    %2286 = vmatprep.subr.mxu0 0.0
    %2287 = vmatpush1.msra.mxu0 0.0
    %2288 = vmatprep.subr.mxu0 0.0
    %2289 = vmatpush1.msra.mxu0 0.0
    %2290 = vmatprep.subr.mxu0 0.0
    %2291 = vmatpush1.msra.mxu0 0.0
    %2292 = vmatprep.subr.mxu0 0.0
    %2293 = vmatpush1.msra.mxu0 0.0
    %2294 = vmatprep.subr.mxu0 0.0
    %2295 = vmatpush1.msra.mxu0 0.0
    %2296 = vmatprep.subr.mxu0 0.0
    %2297 = vmatpush1.msra.mxu0 0.0
    %2298 = vmatprep.subr.mxu0 0.0
    %2299 = vmatpush1.msra.mxu0 0.0
    %2300 = vmatprep.subr.mxu0 0.0
    %2301 = vmatpush1.msra.mxu0 0.0
    %2302 = vmatprep.subr.mxu0 0.0
    %2303 = vmatpush1.msra.mxu0 0.0
    %2304 = vmatprep.subr.mxu0 0.0
    %2305 = vmatpush1.msra.mxu0 0.0
    %2306 = vmatprep.mubr.f32.mxu0 0.0
    %2307 = vmatmul.mubr.f32.gmra.mrb[0].mxu0 %v2168
    %v2308 = vpop.f32.mrb[0].mxu0
    %v2309 = vadd.f32 0.0, %v2308
    %v2310 = vpop.f32.mrb[0].mxu0
    %v2311 = vadd.f32 0.0, %v2310
    %2312 = vdwg.mxu0
    %2313 = vmatprep.subr.mxu0 %v2181
    %2314 = vmatpush1.msra.mxu0 %v2180
    %2315 = vmatprep.subr.mxu0 %v2185
    %2316 = vmatpush1.msra.mxu0 %v2184
    %2317 = vmatprep.subr.mxu0 %v2189
    %2318 = vmatpush1.msra.mxu0 %v2188
    %2319 = vmatprep.subr.mxu0 %v2193
    %2320 = vmatpush1.msra.mxu0 %v2192
    %2321 = vmatprep.subr.mxu0 %v2197
    %2322 = vmatpush1.msra.mxu0 %v2196
    %2323 = vmatprep.subr.mxu0 %v2201
    %2324 = vmatpush1.msra.mxu0 %v2200
    %2325 = vmatprep.subr.mxu0 %v2205
    %2326 = vmatpush1.msra.mxu0 %v2204
    %2327 = vmatprep.subr.mxu0 %v2209
    %2328 = vmatpush1.msra.mxu0 %v2208
    %2329 = vmatprep.subr.mxu0 %v2213
    %2330 = vmatpush1.msra.mxu0 %v2212
    %2331 = vmatprep.subr.mxu0 %v2217
    %2332 = vmatpush1.msra.mxu0 %v2216
    %2333 = vmatprep.subr.mxu0 %v2221
    %2334 = vmatpush1.msra.mxu0 %v2220
    %2335 = vmatprep.subr.mxu0 %v2225
    %2336 = vmatpush1.msra.mxu0 %v2224
    %2337 = vmatprep.subr.mxu0 %v2229
    %2338 = vmatpush1.msra.mxu0 %v2228
    %2339 = vmatprep.subr.mxu0 %v2233
    %2340 = vmatpush1.msra.mxu0 %v2232
    %2341 = vmatprep.subr.mxu0 %v2237
    %2342 = vmatpush1.msra.mxu0 %v2236
    %2343 = vmatprep.subr.mxu0 %v2241
    %2344 = vmatpush1.msra.mxu0 %v2240
    %2345 = vmatprep.subr.mxu0 0.0
    %2346 = vmatpush1.msra.mxu0 0.0
    %2347 = vmatprep.subr.mxu0 0.0
    %2348 = vmatpush1.msra.mxu0 0.0
    %2349 = vmatprep.subr.mxu0 0.0
    %2350 = vmatpush1.msra.mxu0 0.0
    %2351 = vmatprep.subr.mxu0 0.0
    %2352 = vmatpush1.msra.mxu0 0.0
    %2353 = vmatprep.subr.mxu0 0.0
    %2354 = vmatpush1.msra.mxu0 0.0
    %2355 = vmatprep.subr.mxu0 0.0
    %2356 = vmatpush1.msra.mxu0 0.0
    %2357 = vmatprep.subr.mxu0 0.0
    %2358 = vmatpush1.msra.mxu0 0.0
    %2359 = vmatprep.subr.mxu0 0.0
    %2360 = vmatpush1.msra.mxu0 0.0
    %2361 = vmatprep.subr.mxu0 0.0
    %2362 = vmatpush1.msra.mxu0 0.0
    %2363 = vmatprep.subr.mxu0 0.0
    %2364 = vmatpush1.msra.mxu0 0.0
    %2365 = vmatprep.subr.mxu0 0.0
    %2366 = vmatpush1.msra.mxu0 0.0
    %2367 = vmatprep.subr.mxu0 0.0
    %2368 = vmatpush1.msra.mxu0 0.0
    %2369 = vmatprep.subr.mxu0 0.0
    %2370 = vmatpush1.msra.mxu0 0.0
    %2371 = vmatprep.subr.mxu0 0.0
    %2372 = vmatpush1.msra.mxu0 0.0
    %2373 = vmatprep.subr.mxu0 0.0
    %2374 = vmatpush1.msra.mxu0 0.0
    %2375 = vmatprep.subr.mxu0 0.0
    %2376 = vmatpush1.msra.mxu0 0.0
    %2377 = vmatprep.mubr.f32.mxu0 0.0
    %2378 = vmatmul.mubr.f32.gmra.mrb[0].mxu0 %v2168
    %v2379 = vpop.f32.mrb[0].mxu0
    %v2380 = vadd.f32 0.0, %v2379
    %v2381 = vpop.f32.mrb[0].mxu0
    %v2382 = vadd.f32 0.0, %v2381
    %2383 = vdwg.mxu0
    %v2384 = vadd.f32 %v2174, %v2309
    %v2385 = vadd.f32 %v2175, %v2311
    %v2386 = vadd.f32 %v2176, %v2380
    %v2387 = vadd.f32 %v2177, %v2382
    %v2388 = vxor.u32 %v2384, 2147483648
    %v2389 = vmul.f32 %v2388, 1.442695
    %v2390 = vpow.pop %v2389
    %v2391 = vadd.f32 %v2390, 1.0
    %v2392 = vrcp.pop %v2391
    %v2393 = vmul.f32 1.0, %v2392
    %v2394 = vxor.u32 %v2385, 2147483648
    %v2395 = vmul.f32 %v2394, 1.442695
    %v2396 = vpow.pop %v2395
    %v2397 = vadd.f32 %v2396, 1.0
    %v2398 = vrcp.pop %v2397
    %v2399 = vmul.f32 1.0, %v2398
    %v2400 = vtanh.pop %v2386
    %v2401 = vxor.u32 %v2387, 2147483648
    %v2402 = vmul.f32 %v2401, 1.442695
    %v2403 = vpow.pop %v2402
    %v2404 = vadd.f32 %v2403, 1.0
    %v2405 = vrcp.pop %v2404
    %v2406 = vmul.f32 1.0, %v2405
    %v2407 = vmul.f32 %v2399, %v2166
    %v2408 = vmul.f32 %v2393, %v2400
    %v2409 = vadd.f32 %v2407, %v2408
    %v2410 = vtanh.pop %v2409
    %v2411 = vmul.f32 %v2406, %v2410
    %s2412 = scalar_lea.vmem [#allocation14], 56
    %2413 = vst [vmem:[%s2412] sm:$0xff] %v2411
    %v2414 = vld [vmem:[#allocation14] sm:$0xff]
    %v2415 = vld [vmem:[#allocation14 + $0x8] sm:$0xff]
    %v2416 = vld [vmem:[#allocation14 + $0x10] sm:$0xff]
    %v2417 = vld [vmem:[#allocation14 + $0x18] sm:$0xff]
    %v2418 = vld [vmem:[#allocation14 + $0x20] sm:$0xff]
    %v2419 = vld [vmem:[#allocation14 + $0x28] sm:$0xff]
    %v2420 = vld [vmem:[#allocation14 + $0x30] sm:$0xff]
    %v2421 = vld [vmem:[#allocation14 + $0x38] sm:$0xff]
    %v2422 = vld [vmem:[#allocation11] sm:$0xff]
    %v2423 = vld [vmem:[#allocation11 + $0x8] sm:$0xff]
    %v2424 = vld [vmem:[#allocation11 + $0x10] sm:$0xff]
    %v2425 = vld [vmem:[#allocation11 + $0x18] sm:$0xff]
    %v2426 = vld [vmem:[#allocation11 + $0x20] sm:$0xff]
    %v2427 = vld [vmem:[#allocation11 + $0x28] sm:$0xff]
    %v2428 = vld [vmem:[#allocation11 + $0x30] sm:$0xff]
    %v2429 = vld [vmem:[#allocation11 + $0x38] sm:$0xff]
    %v2430 = vld [vmem:[#allocation11 + $0x40] sm:$0xff]
    %v2431 = vld [vmem:[#allocation11 + $0x48] sm:$0xff]
    %v2432 = vld [vmem:[#allocation11 + $0x50] sm:$0xff]
    %v2433 = vld [vmem:[#allocation11 + $0x58] sm:$0xff]
    %v2434 = vld [vmem:[#allocation11 + $0x60] sm:$0xff]
    %v2435 = vld [vmem:[#allocation11 + $0x68] sm:$0xff]
    %v2436 = vld [vmem:[#allocation11 + $0x70] sm:$0xff]
    %v2437 = vld [vmem:[#allocation11 + $0x78] sm:$0xff]
    %v2438 = vld [vmem:[#allocation11 + $0x80] sm:$0xff]
    %v2439 = vld [vmem:[#allocation11 + $0x88] sm:$0xff]
    %v2440 = vld [vmem:[#allocation11 + $0x90] sm:$0xff]
    %v2441 = vld [vmem:[#allocation11 + $0x98] sm:$0xff]
    %v2442 = vld [vmem:[#allocation11 + $0xa0] sm:$0xff]
    %v2443 = vld [vmem:[#allocation11 + $0xa8] sm:$0xff]
    %v2444 = vld [vmem:[#allocation11 + $0xb0] sm:$0xff]
    %v2445 = vld [vmem:[#allocation11 + $0xb8] sm:$0xff]
    %v2446 = vld [vmem:[#allocation11 + $0xc0] sm:$0xff]
    %v2447 = vld [vmem:[#allocation11 + $0xc8] sm:$0xff]
    %v2448 = vld [vmem:[#allocation11 + $0xd0] sm:$0xff]
    %v2449 = vld [vmem:[#allocation11 + $0xd8] sm:$0xff]
    %v2450 = vld [vmem:[#allocation11 + $0xe0] sm:$0xff]
    %v2451 = vld [vmem:[#allocation11 + $0xe8] sm:$0xff]
    %v2452 = vld [vmem:[#allocation11 + $0xf0] sm:$0xff]
    %v2453 = vld [vmem:[#allocation11 + $0xf8] sm:$0xff]
    %v2454 = vld [vmem:[#allocation11 + $0x100] sm:$0xff]
    %v2455 = vld [vmem:[#allocation11 + $0x108] sm:$0xff]
    %v2456 = vld [vmem:[#allocation11 + $0x110] sm:$0xff]
    %v2457 = vld [vmem:[#allocation11 + $0x118] sm:$0xff]
    %v2458 = vld [vmem:[#allocation11 + $0x120] sm:$0xff]
    %v2459 = vld [vmem:[#allocation11 + $0x128] sm:$0xff]
    %v2460 = vld [vmem:[#allocation11 + $0x130] sm:$0xff]
    %v2461 = vld [vmem:[#allocation11 + $0x138] sm:$0xff]
    %v2462 = vld [vmem:[#allocation11 + $0x140] sm:$0xff]
    %v2463 = vld [vmem:[#allocation11 + $0x148] sm:$0xff]
    %v2464 = vld [vmem:[#allocation11 + $0x150] sm:$0xff]
    %v2465 = vld [vmem:[#allocation11 + $0x158] sm:$0xff]
    %v2466 = vld [vmem:[#allocation11 + $0x160] sm:$0xff]
    %v2467 = vld [vmem:[#allocation11 + $0x168] sm:$0xff]
    %v2468 = vld [vmem:[#allocation11 + $0x170] sm:$0xff]
    %v2469 = vld [vmem:[#allocation11 + $0x178] sm:$0xff]
    %v2470 = vld [vmem:[#allocation11 + $0x180] sm:$0xff]
    %v2471 = vld [vmem:[#allocation11 + $0x188] sm:$0xff]
    %v2472 = vld [vmem:[#allocation11 + $0x190] sm:$0xff]
    %v2473 = vld [vmem:[#allocation11 + $0x198] sm:$0xff]
    %v2474 = vld [vmem:[#allocation11 + $0x1a0] sm:$0xff]
    %v2475 = vld [vmem:[#allocation11 + $0x1a8] sm:$0xff]
    %v2476 = vld [vmem:[#allocation11 + $0x1b0] sm:$0xff]
    %v2477 = vld [vmem:[#allocation11 + $0x1b8] sm:$0xff]
    %v2478 = vld [vmem:[#allocation11 + $0x1c0] sm:$0xff]
    %v2479 = vld [vmem:[#allocation11 + $0x1c8] sm:$0xff]
    %v2480 = vld [vmem:[#allocation11 + $0x1d0] sm:$0xff]
    %v2481 = vld [vmem:[#allocation11 + $0x1d8] sm:$0xff]
    %v2482 = vld [vmem:[#allocation11 + $0x1e0] sm:$0xff]
    %v2483 = vld [vmem:[#allocation11 + $0x1e8] sm:$0xff]
    %v2484 = vld [vmem:[#allocation11 + $0x1f0] sm:$0xff]
    %v2485 = vld [vmem:[#allocation11 + $0x1f8] sm:$0xff]
    %v2486 = vld [vmem:[%s6] sm:$0xf]
    %v2488 = vlaneseq
    %v2489 = vshrl.u32 %v2488, 7
    %v2490 = vsub.s32 0, %v2489
    %v2491 = vrot.slane %v2486, %v2490
    %v2492 = vlaneseq
    %v2493 = vshrl.u32 %v2492, 7
    %v2494 = vsub.s32 1, %v2493
    %v2495 = vrot.slane %v2486, %v2494
    %v2496 = vlaneseq
    %v2497 = vshrl.u32 %v2496, 7
    %v2498 = vsub.s32 2, %v2497
    %v2499 = vrot.slane %v2486, %v2498
    %v2500 = vlaneseq
    %v2501 = vshrl.u32 %v2500, 7
    %v2502 = vsub.s32 3, %v2501
    %v2503 = vrot.slane %v2486, %v2502
    %2508 = vmatprep.subr.mxu0 %v2423
    %2509 = vmatpush1.msra.mxu0 %v2422
    %2510 = vmatprep.subr.mxu0 %v2427
    %2511 = vmatpush1.msra.mxu0 %v2426
    %2512 = vmatprep.subr.mxu0 %v2431
    %2513 = vmatpush1.msra.mxu0 %v2430
    %2514 = vmatprep.subr.mxu0 %v2435
    %2515 = vmatpush1.msra.mxu0 %v2434
    %2516 = vmatprep.subr.mxu0 %v2439
    %2517 = vmatpush1.msra.mxu0 %v2438
    %2518 = vmatprep.subr.mxu0 %v2443
    %2519 = vmatpush1.msra.mxu0 %v2442
    %2520 = vmatprep.subr.mxu0 %v2447
    %2521 = vmatpush1.msra.mxu0 %v2446
    %2522 = vmatprep.subr.mxu0 %v2451
    %2523 = vmatpush1.msra.mxu0 %v2450
    %2524 = vmatprep.subr.mxu0 %v2455
    %2525 = vmatpush1.msra.mxu0 %v2454
    %2526 = vmatprep.subr.mxu0 %v2459
    %2527 = vmatpush1.msra.mxu0 %v2458
    %2528 = vmatprep.subr.mxu0 %v2463
    %2529 = vmatpush1.msra.mxu0 %v2462
    %2530 = vmatprep.subr.mxu0 %v2467
    %2531 = vmatpush1.msra.mxu0 %v2466
    %2532 = vmatprep.subr.mxu0 %v2471
    %2533 = vmatpush1.msra.mxu0 %v2470
    %2534 = vmatprep.subr.mxu0 %v2475
    %2535 = vmatpush1.msra.mxu0 %v2474
    %2536 = vmatprep.subr.mxu0 %v2479
    %2537 = vmatpush1.msra.mxu0 %v2478
    %2538 = vmatprep.subr.mxu0 %v2483
    %2539 = vmatpush1.msra.mxu0 %v2482
    %2540 = vmatprep.subr.mxu0 0.0
    %2541 = vmatpush1.msra.mxu0 0.0
    %2542 = vmatprep.subr.mxu0 0.0
    %2543 = vmatpush1.msra.mxu0 0.0
    %2544 = vmatprep.subr.mxu0 0.0
    %2545 = vmatpush1.msra.mxu0 0.0
    %2546 = vmatprep.subr.mxu0 0.0
    %2547 = vmatpush1.msra.mxu0 0.0
    %2548 = vmatprep.subr.mxu0 0.0
    %2549 = vmatpush1.msra.mxu0 0.0
    %2550 = vmatprep.subr.mxu0 0.0
    %2551 = vmatpush1.msra.mxu0 0.0
    %2552 = vmatprep.subr.mxu0 0.0
    %2553 = vmatpush1.msra.mxu0 0.0
    %2554 = vmatprep.subr.mxu0 0.0
    %2555 = vmatpush1.msra.mxu0 0.0
    %2556 = vmatprep.subr.mxu0 0.0
    %2557 = vmatpush1.msra.mxu0 0.0
    %2558 = vmatprep.subr.mxu0 0.0
    %2559 = vmatpush1.msra.mxu0 0.0
    %2560 = vmatprep.subr.mxu0 0.0
    %2561 = vmatpush1.msra.mxu0 0.0
    %2562 = vmatprep.subr.mxu0 0.0
    %2563 = vmatpush1.msra.mxu0 0.0
    %2564 = vmatprep.subr.mxu0 0.0
    %2565 = vmatpush1.msra.mxu0 0.0
    %2566 = vmatprep.subr.mxu0 0.0
    %2567 = vmatpush1.msra.mxu0 0.0
    %2568 = vmatprep.subr.mxu0 0.0
    %2569 = vmatpush1.msra.mxu0 0.0
    %2570 = vmatprep.subr.mxu0 0.0
    %2571 = vmatpush1.msra.mxu0 0.0
    %2572 = vmatprep.mubr.f32.mxu0 0.0
    %2573 = vmatmul.mubr.f32.gmra.mrb[0].mxu0 %v2414
    %v2574 = vpop.f32.mrb[0].mxu0
    %v2575 = vadd.f32 %v2491, %v2574
    %v2576 = vpop.f32.mrb[0].mxu0
    %v2577 = vadd.f32 %v2495, %v2576
    %2578 = vmatprep.mubr.f32.mxu0 0.0
    %2579 = vmatmul.mubr.f32.gmra.mrb[0].mxu0 %v2415
    %v2580 = vpop.f32.mrb[0].mxu0
    %v2581 = vadd.f32 %v2491, %v2580
    %v2582 = vpop.f32.mrb[0].mxu0
    %v2583 = vadd.f32 %v2495, %v2582
    %2584 = vmatprep.mubr.f32.mxu0 0.0
    %2585 = vmatmul.mubr.f32.gmra.mrb[0].mxu0 %v2416
    %v2586 = vpop.f32.mrb[0].mxu0
    %v2587 = vadd.f32 %v2491, %v2586
    %v2588 = vpop.f32.mrb[0].mxu0
    %v2589 = vadd.f32 %v2495, %v2588
    %2590 = vmatprep.mubr.f32.mxu0 0.0
    %2591 = vmatmul.mubr.f32.gmra.mrb[0].mxu0 %v2417
    %v2592 = vpop.f32.mrb[0].mxu0
    %v2593 = vadd.f32 %v2491, %v2592
    %v2594 = vpop.f32.mrb[0].mxu0
    %v2595 = vadd.f32 %v2495, %v2594
    %2596 = vmatprep.mubr.f32.mxu0 0.0
    %2597 = vmatmul.mubr.f32.gmra.mrb[0].mxu0 %v2418
    %v2598 = vpop.f32.mrb[0].mxu0
    %v2599 = vadd.f32 %v2491, %v2598
    %v2600 = vpop.f32.mrb[0].mxu0
    %v2601 = vadd.f32 %v2495, %v2600
    %2602 = vmatprep.mubr.f32.mxu0 0.0
    %2603 = vmatmul.mubr.f32.gmra.mrb[0].mxu0 %v2419
    %v2604 = vpop.f32.mrb[0].mxu0
    %v2605 = vadd.f32 %v2491, %v2604
    %v2606 = vpop.f32.mrb[0].mxu0
    %v2607 = vadd.f32 %v2495, %v2606
    %2608 = vmatprep.mubr.f32.mxu0 0.0
    %2609 = vmatmul.mubr.f32.gmra.mrb[0].mxu0 %v2420
    %v2610 = vpop.f32.mrb[0].mxu0
    %v2611 = vadd.f32 %v2491, %v2610
    %v2612 = vpop.f32.mrb[0].mxu0
    %v2613 = vadd.f32 %v2495, %v2612
    %2614 = vmatprep.mubr.f32.mxu0 0.0
    %2615 = vmatmul.mubr.f32.gmra.mrb[0].mxu0 %v2421
    %v2616 = vpop.f32.mrb[0].mxu0
    %v2617 = vadd.f32 %v2491, %v2616
    %v2618 = vpop.f32.mrb[0].mxu0
    %v2619 = vadd.f32 %v2495, %v2618
    %2620 = vdwg.mxu0
    %2621 = vmatprep.subr.mxu0 %v2425
    %2622 = vmatpush1.msra.mxu0 %v2424
    %2623 = vmatprep.subr.mxu0 %v2429
    %2624 = vmatpush1.msra.mxu0 %v2428
    %2625 = vmatprep.subr.mxu0 %v2433
    %2626 = vmatpush1.msra.mxu0 %v2432
    %2627 = vmatprep.subr.mxu0 %v2437
    %2628 = vmatpush1.msra.mxu0 %v2436
    %2629 = vmatprep.subr.mxu0 %v2441
    %2630 = vmatpush1.msra.mxu0 %v2440
    %2631 = vmatprep.subr.mxu0 %v2445
    %2632 = vmatpush1.msra.mxu0 %v2444
    %2633 = vmatprep.subr.mxu0 %v2449
    %2634 = vmatpush1.msra.mxu0 %v2448
    %2635 = vmatprep.subr.mxu0 %v2453
    %2636 = vmatpush1.msra.mxu0 %v2452
    %2637 = vmatprep.subr.mxu0 %v2457
    %2638 = vmatpush1.msra.mxu0 %v2456
    %2639 = vmatprep.subr.mxu0 %v2461
    %2640 = vmatpush1.msra.mxu0 %v2460
    %2641 = vmatprep.subr.mxu0 %v2465
    %2642 = vmatpush1.msra.mxu0 %v2464
    %2643 = vmatprep.subr.mxu0 %v2469
    %2644 = vmatpush1.msra.mxu0 %v2468
    %2645 = vmatprep.subr.mxu0 %v2473
    %2646 = vmatpush1.msra.mxu0 %v2472
    %2647 = vmatprep.subr.mxu0 %v2477
    %2648 = vmatpush1.msra.mxu0 %v2476
    %2649 = vmatprep.subr.mxu0 %v2481
    %2650 = vmatpush1.msra.mxu0 %v2480
    %2651 = vmatprep.subr.mxu0 %v2485
    %2652 = vmatpush1.msra.mxu0 %v2484
    %2653 = vmatprep.subr.mxu0 0.0
    %2654 = vmatpush1.msra.mxu0 0.0
    %2655 = vmatprep.subr.mxu0 0.0
    %2656 = vmatpush1.msra.mxu0 0.0
    %2657 = vmatprep.subr.mxu0 0.0
    %2658 = vmatpush1.msra.mxu0 0.0
    %2659 = vmatprep.subr.mxu0 0.0
    %2660 = vmatpush1.msra.mxu0 0.0
    %2661 = vmatprep.subr.mxu0 0.0
    %2662 = vmatpush1.msra.mxu0 0.0
    %2663 = vmatprep.subr.mxu0 0.0
    %2664 = vmatpush1.msra.mxu0 0.0
    %2665 = vmatprep.subr.mxu0 0.0
    %2666 = vmatpush1.msra.mxu0 0.0
    %2667 = vmatprep.subr.mxu0 0.0
    %2668 = vmatpush1.msra.mxu0 0.0
    %2669 = vmatprep.subr.mxu0 0.0
    %2670 = vmatpush1.msra.mxu0 0.0
    %2671 = vmatprep.subr.mxu0 0.0
    %2672 = vmatpush1.msra.mxu0 0.0
    %2673 = vmatprep.subr.mxu0 0.0
    %2674 = vmatpush1.msra.mxu0 0.0
    %2675 = vmatprep.subr.mxu0 0.0
    %2676 = vmatpush1.msra.mxu0 0.0
    %2677 = vmatprep.subr.mxu0 0.0
    %2678 = vmatpush1.msra.mxu0 0.0
    %2679 = vmatprep.subr.mxu0 0.0
    %2680 = vmatpush1.msra.mxu0 0.0
    %2681 = vmatprep.subr.mxu0 0.0
    %2682 = vmatpush1.msra.mxu0 0.0
    %2683 = vmatprep.subr.mxu0 0.0
    %2684 = vmatpush1.msra.mxu0 0.0
    %2685 = vmatprep.mubr.f32.mxu0 0.0
    %2686 = vmatmul.mubr.f32.gmra.mrb[0].mxu0 %v2414
    %v2687 = vpop.f32.mrb[0].mxu0
    %v2688 = vadd.f32 %v2499, %v2687
    %v2689 = vpop.f32.mrb[0].mxu0
    %v2690 = vadd.f32 %v2503, %v2689
    %2691 = vmatprep.mubr.f32.mxu0 0.0
    %2692 = vmatmul.mubr.f32.gmra.mrb[0].mxu0 %v2415
    %v2693 = vpop.f32.mrb[0].mxu0
    %v2694 = vadd.f32 %v2499, %v2693
    %v2695 = vpop.f32.mrb[0].mxu0
    %v2696 = vadd.f32 %v2503, %v2695
    %2697 = vmatprep.mubr.f32.mxu0 0.0
    %2698 = vmatmul.mubr.f32.gmra.mrb[0].mxu0 %v2416
    %v2699 = vpop.f32.mrb[0].mxu0
    %v2700 = vadd.f32 %v2499, %v2699
    %v2701 = vpop.f32.mrb[0].mxu0
    %v2702 = vadd.f32 %v2503, %v2701
    %2703 = vmatprep.mubr.f32.mxu0 0.0
    %2704 = vmatmul.mubr.f32.gmra.mrb[0].mxu0 %v2417
    %v2705 = vpop.f32.mrb[0].mxu0
    %v2706 = vadd.f32 %v2499, %v2705
    %v2707 = vpop.f32.mrb[0].mxu0
    %v2708 = vadd.f32 %v2503, %v2707
    %2709 = vmatprep.mubr.f32.mxu0 0.0
    %2710 = vmatmul.mubr.f32.gmra.mrb[0].mxu0 %v2418
    %v2711 = vpop.f32.mrb[0].mxu0
    %v2712 = vadd.f32 %v2499, %v2711
    %v2713 = vpop.f32.mrb[0].mxu0
    %v2714 = vadd.f32 %v2503, %v2713
    %2715 = vmatprep.mubr.f32.mxu0 0.0
    %2716 = vmatmul.mubr.f32.gmra.mrb[0].mxu0 %v2419
    %v2717 = vpop.f32.mrb[0].mxu0
    %v2718 = vadd.f32 %v2499, %v2717
    %v2719 = vpop.f32.mrb[0].mxu0
    %v2720 = vadd.f32 %v2503, %v2719
    %2721 = vmatprep.mubr.f32.mxu0 0.0
    %2722 = vmatmul.mubr.f32.gmra.mrb[0].mxu0 %v2420
    %v2723 = vpop.f32.mrb[0].mxu0
    %v2724 = vadd.f32 %v2499, %v2723
    %v2725 = vpop.f32.mrb[0].mxu0
    %v2726 = vadd.f32 %v2503, %v2725
    %2727 = vmatprep.mubr.f32.mxu0 0.0
    %2728 = vmatmul.mubr.f32.gmra.mrb[0].mxu0 %v2421
    %v2729 = vpop.f32.mrb[0].mxu0
    %v2730 = vadd.f32 %v2499, %v2729
    %v2731 = vpop.f32.mrb[0].mxu0
    %v2732 = vadd.f32 %v2503, %v2731
    %2733 = vdwg.mxu0
    %2734 = vst [vmem:[#allocation2] sm:$0xff] %v2575
    %2735 = vst [vmem:[#allocation2 + $0x8] sm:$0xff] %v2577
    %2736 = vst [vmem:[#allocation2 + $0x10] sm:$0xff] %v2688
    %2737 = vst [vmem:[#allocation2 + $0x18] sm:$0xff] %v2690
    %2738 = vst [vmem:[#allocation2 + $0x20] sm:$0xff] %v2581
    %2739 = vst [vmem:[#allocation2 + $0x28] sm:$0xff] %v2583
    %2740 = vst [vmem:[#allocation2 + $0x30] sm:$0xff] %v2694
    %2741 = vst [vmem:[#allocation2 + $0x38] sm:$0xff] %v2696
    %2742 = vst [vmem:[#allocation2 + $0x40] sm:$0xff] %v2587
    %2743 = vst [vmem:[#allocation2 + $0x48] sm:$0xff] %v2589
    %2744 = vst [vmem:[#allocation2 + $0x50] sm:$0xff] %v2700
    %2745 = vst [vmem:[#allocation2 + $0x58] sm:$0xff] %v2702
    %2746 = vst [vmem:[#allocation2 + $0x60] sm:$0xff] %v2593
    %2747 = vst [vmem:[#allocation2 + $0x68] sm:$0xff] %v2595
    %2748 = vst [vmem:[#allocation2 + $0x70] sm:$0xff] %v2706
    %2749 = vst [vmem:[#allocation2 + $0x78] sm:$0xff] %v2708
    %2750 = vst [vmem:[#allocation2 + $0x80] sm:$0xff] %v2599
    %2751 = vst [vmem:[#allocation2 + $0x88] sm:$0xff] %v2601
    %2752 = vst [vmem:[#allocation2 + $0x90] sm:$0xff] %v2712
    %2753 = vst [vmem:[#allocation2 + $0x98] sm:$0xff] %v2714
    %2754 = vst [vmem:[#allocation2 + $0xa0] sm:$0xff] %v2605
    %2755 = vst [vmem:[#allocation2 + $0xa8] sm:$0xff] %v2607
    %2756 = vst [vmem:[#allocation2 + $0xb0] sm:$0xff] %v2718
    %2757 = vst [vmem:[#allocation2 + $0xb8] sm:$0xff] %v2720
    %2758 = vst [vmem:[#allocation2 + $0xc0] sm:$0xff] %v2611
    %2759 = vst [vmem:[#allocation2 + $0xc8] sm:$0xff] %v2613
    %2760 = vst [vmem:[#allocation2 + $0xd0] sm:$0xff] %v2724
    %2761 = vst [vmem:[#allocation2 + $0xd8] sm:$0xff] %v2726
    %2762 = vst [vmem:[#allocation2 + $0xe0] sm:$0xff] %v2617
    %2763 = vst [vmem:[#allocation2 + $0xe8] sm:$0xff] %v2619
    %2764 = vst [vmem:[#allocation2 + $0xf0] sm:$0xff] %v2730
    %2765 = vst [vmem:[#allocation2 + $0xf8] sm:$0xff] %v2732
    %v2766 = vld [vmem:[%s473] sm:$0xff]
    %v2767 = vld [vmem:[%s473 + $0x8] sm:$0xff]
    %v2768 = vld [vmem:[%s473 + $0x10] sm:$0xff]
    %v2769 = vld [vmem:[%s473 + $0x18] sm:$0xff]
    %v2770 = vld [vmem:[#allocation12] sm:$0xff]
    %v2771 = vld [vmem:[#allocation12 + $0x8] sm:$0xff]
    %v2772 = vld [vmem:[#allocation12 + $0x10] sm:$0xff]
    %v2773 = vld [vmem:[#allocation12 + $0x18] sm:$0xff]
    %v2774 = vld [vmem:[#allocation12 + $0x20] sm:$0xff]
    %v2775 = vld [vmem:[#allocation12 + $0x28] sm:$0xff]
    %v2776 = vld [vmem:[#allocation12 + $0x30] sm:$0xff]
    %v2777 = vld [vmem:[#allocation12 + $0x38] sm:$0xff]
    %v2778 = vld [vmem:[#allocation12 + $0x40] sm:$0xff]
    %v2779 = vld [vmem:[#allocation12 + $0x48] sm:$0xff]
    %v2780 = vld [vmem:[#allocation12 + $0x50] sm:$0xff]
    %v2781 = vld [vmem:[#allocation12 + $0x58] sm:$0xff]
    %v2782 = vld [vmem:[#allocation12 + $0x60] sm:$0xff]
    %v2783 = vld [vmem:[#allocation12 + $0x68] sm:$0xff]
    %v2784 = vld [vmem:[#allocation12 + $0x70] sm:$0xff]
    %v2785 = vld [vmem:[#allocation12 + $0x78] sm:$0xff]
    %v2786 = vld [vmem:[#allocation12 + $0x80] sm:$0xff]
    %v2787 = vld [vmem:[#allocation12 + $0x88] sm:$0xff]
    %v2788 = vld [vmem:[#allocation12 + $0x90] sm:$0xff]
    %v2789 = vld [vmem:[#allocation12 + $0x98] sm:$0xff]
    %v2790 = vld [vmem:[#allocation12 + $0xa0] sm:$0xff]
    %v2791 = vld [vmem:[#allocation12 + $0xa8] sm:$0xff]
    %v2792 = vld [vmem:[#allocation12 + $0xb0] sm:$0xff]
    %v2793 = vld [vmem:[#allocation12 + $0xb8] sm:$0xff]
    %v2794 = vld [vmem:[#allocation12 + $0xc0] sm:$0xff]
    %v2795 = vld [vmem:[#allocation12 + $0xc8] sm:$0xff]
    %v2796 = vld [vmem:[#allocation12 + $0xd0] sm:$0xff]
    %v2797 = vld [vmem:[#allocation12 + $0xd8] sm:$0xff]
    %v2798 = vld [vmem:[#allocation12 + $0xe0] sm:$0xff]
    %v2799 = vld [vmem:[#allocation12 + $0xe8] sm:$0xff]
    %v2800 = vld [vmem:[#allocation12 + $0xf0] sm:$0xff]
    %v2801 = vld [vmem:[#allocation12 + $0xf8] sm:$0xff]
    %v2802 = vld [vmem:[#allocation12 + $0x100] sm:$0xff]
    %v2803 = vld [vmem:[#allocation12 + $0x108] sm:$0xff]
    %v2804 = vld [vmem:[#allocation12 + $0x110] sm:$0xff]
    %v2805 = vld [vmem:[#allocation12 + $0x118] sm:$0xff]
    %v2806 = vld [vmem:[#allocation12 + $0x120] sm:$0xff]
    %v2807 = vld [vmem:[#allocation12 + $0x128] sm:$0xff]
    %v2808 = vld [vmem:[#allocation12 + $0x130] sm:$0xff]
    %v2809 = vld [vmem:[#allocation12 + $0x138] sm:$0xff]
    %v2810 = vld [vmem:[#allocation12 + $0x140] sm:$0xff]
    %v2811 = vld [vmem:[#allocation12 + $0x148] sm:$0xff]
    %v2812 = vld [vmem:[#allocation12 + $0x150] sm:$0xff]
    %v2813 = vld [vmem:[#allocation12 + $0x158] sm:$0xff]
    %v2814 = vld [vmem:[#allocation12 + $0x160] sm:$0xff]
    %v2815 = vld [vmem:[#allocation12 + $0x168] sm:$0xff]
    %v2816 = vld [vmem:[#allocation12 + $0x170] sm:$0xff]
    %v2817 = vld [vmem:[#allocation12 + $0x178] sm:$0xff]
    %v2818 = vld [vmem:[#allocation12 + $0x180] sm:$0xff]
    %v2819 = vld [vmem:[#allocation12 + $0x188] sm:$0xff]
    %v2820 = vld [vmem:[#allocation12 + $0x190] sm:$0xff]
    %v2821 = vld [vmem:[#allocation12 + $0x198] sm:$0xff]
    %v2822 = vld [vmem:[#allocation12 + $0x1a0] sm:$0xff]
    %v2823 = vld [vmem:[#allocation12 + $0x1a8] sm:$0xff]
    %v2824 = vld [vmem:[#allocation12 + $0x1b0] sm:$0xff]
    %v2825 = vld [vmem:[#allocation12 + $0x1b8] sm:$0xff]
    %v2826 = vld [vmem:[#allocation12 + $0x1c0] sm:$0xff]
    %v2827 = vld [vmem:[#allocation12 + $0x1c8] sm:$0xff]
    %v2828 = vld [vmem:[#allocation12 + $0x1d0] sm:$0xff]
    %v2829 = vld [vmem:[#allocation12 + $0x1d8] sm:$0xff]
    %v2830 = vld [vmem:[#allocation12 + $0x1e0] sm:$0xff]
    %v2831 = vld [vmem:[#allocation12 + $0x1e8] sm:$0xff]
    %v2832 = vld [vmem:[#allocation12 + $0x1f0] sm:$0xff]
    %v2833 = vld [vmem:[#allocation12 + $0x1f8] sm:$0xff]
    %2834 = vmatprep.subr.mxu0 %v2771
    %2835 = vmatpush1.msra.mxu0 %v2770
    %2836 = vmatprep.subr.mxu0 %v2775
    %2837 = vmatpush1.msra.mxu0 %v2774
    %2838 = vmatprep.subr.mxu0 %v2779
    %2839 = vmatpush1.msra.mxu0 %v2778
    %2840 = vmatprep.subr.mxu0 %v2783
    %2841 = vmatpush1.msra.mxu0 %v2782
    %2842 = vmatprep.subr.mxu0 %v2787
    %2843 = vmatpush1.msra.mxu0 %v2786
    %2844 = vmatprep.subr.mxu0 %v2791
    %2845 = vmatpush1.msra.mxu0 %v2790
    %2846 = vmatprep.subr.mxu0 %v2795
    %2847 = vmatpush1.msra.mxu0 %v2794
    %2848 = vmatprep.subr.mxu0 %v2799
    %2849 = vmatpush1.msra.mxu0 %v2798
    %2850 = vmatprep.subr.mxu0 %v2803
    %2851 = vmatpush1.msra.mxu0 %v2802
    %2852 = vmatprep.subr.mxu0 %v2807
    %2853 = vmatpush1.msra.mxu0 %v2806
    %2854 = vmatprep.subr.mxu0 %v2811
    %2855 = vmatpush1.msra.mxu0 %v2810
    %2856 = vmatprep.subr.mxu0 %v2815
    %2857 = vmatpush1.msra.mxu0 %v2814
    %2858 = vmatprep.subr.mxu0 %v2819
    %2859 = vmatpush1.msra.mxu0 %v2818
    %2860 = vmatprep.subr.mxu0 %v2823
    %2861 = vmatpush1.msra.mxu0 %v2822
    %2862 = vmatprep.subr.mxu0 %v2827
    %2863 = vmatpush1.msra.mxu0 %v2826
    %2864 = vmatprep.subr.mxu0 %v2831
    %2865 = vmatpush1.msra.mxu0 %v2830
    %2866 = vmatprep.subr.mxu0 0.0
    %2867 = vmatpush1.msra.mxu0 0.0
    %2868 = vmatprep.subr.mxu0 0.0
    %2869 = vmatpush1.msra.mxu0 0.0
    %2870 = vmatprep.subr.mxu0 0.0
    %2871 = vmatpush1.msra.mxu0 0.0
    %2872 = vmatprep.subr.mxu0 0.0
    %2873 = vmatpush1.msra.mxu0 0.0
    %2874 = vmatprep.subr.mxu0 0.0
    %2875 = vmatpush1.msra.mxu0 0.0
    %2876 = vmatprep.subr.mxu0 0.0
    %2877 = vmatpush1.msra.mxu0 0.0
    %2878 = vmatprep.subr.mxu0 0.0
    %2879 = vmatpush1.msra.mxu0 0.0
    %2880 = vmatprep.subr.mxu0 0.0
    %2881 = vmatpush1.msra.mxu0 0.0
    %2882 = vmatprep.subr.mxu0 0.0
    %2883 = vmatpush1.msra.mxu0 0.0
    %2884 = vmatprep.subr.mxu0 0.0
    %2885 = vmatpush1.msra.mxu0 0.0
    %2886 = vmatprep.subr.mxu0 0.0
    %2887 = vmatpush1.msra.mxu0 0.0
    %2888 = vmatprep.subr.mxu0 0.0
    %2889 = vmatpush1.msra.mxu0 0.0
    %2890 = vmatprep.subr.mxu0 0.0
    %2891 = vmatpush1.msra.mxu0 0.0
    %2892 = vmatprep.subr.mxu0 0.0
    %2893 = vmatpush1.msra.mxu0 0.0
    %2894 = vmatprep.subr.mxu0 0.0
    %2895 = vmatpush1.msra.mxu0 0.0
    %2896 = vmatprep.subr.mxu0 0.0
    %2897 = vmatpush1.msra.mxu0 0.0
    %2898 = vmatprep.mubr.f32.mxu0 0.0
    %2899 = vmatmul.mubr.f32.gmra.mrb[0].mxu0 0.0
    %v2900 = vpop.f32.mrb[0].mxu0
    %v2901 = vadd.f32 0.0, %v2900
    %v2902 = vpop.f32.mrb[0].mxu0
    %v2903 = vadd.f32 0.0, %v2902
    %2904 = vdwg.mxu0
    %2905 = vmatprep.subr.mxu0 %v2773
    %2906 = vmatpush1.msra.mxu0 %v2772
    %2907 = vmatprep.subr.mxu0 %v2777
    %2908 = vmatpush1.msra.mxu0 %v2776
    %2909 = vmatprep.subr.mxu0 %v2781
    %2910 = vmatpush1.msra.mxu0 %v2780
    %2911 = vmatprep.subr.mxu0 %v2785
    %2912 = vmatpush1.msra.mxu0 %v2784
    %2913 = vmatprep.subr.mxu0 %v2789
    %2914 = vmatpush1.msra.mxu0 %v2788
    %2915 = vmatprep.subr.mxu0 %v2793
    %2916 = vmatpush1.msra.mxu0 %v2792
    %2917 = vmatprep.subr.mxu0 %v2797
    %2918 = vmatpush1.msra.mxu0 %v2796
    %2919 = vmatprep.subr.mxu0 %v2801
    %2920 = vmatpush1.msra.mxu0 %v2800
    %2921 = vmatprep.subr.mxu0 %v2805
    %2922 = vmatpush1.msra.mxu0 %v2804
    %2923 = vmatprep.subr.mxu0 %v2809
    %2924 = vmatpush1.msra.mxu0 %v2808
    %2925 = vmatprep.subr.mxu0 %v2813
    %2926 = vmatpush1.msra.mxu0 %v2812
    %2927 = vmatprep.subr.mxu0 %v2817
    %2928 = vmatpush1.msra.mxu0 %v2816
    %2929 = vmatprep.subr.mxu0 %v2821
    %2930 = vmatpush1.msra.mxu0 %v2820
    %2931 = vmatprep.subr.mxu0 %v2825
    %2932 = vmatpush1.msra.mxu0 %v2824
    %2933 = vmatprep.subr.mxu0 %v2829
    %2934 = vmatpush1.msra.mxu0 %v2828
    %2935 = vmatprep.subr.mxu0 %v2833
    %2936 = vmatpush1.msra.mxu0 %v2832
    %2937 = vmatprep.subr.mxu0 0.0
    %2938 = vmatpush1.msra.mxu0 0.0
    %2939 = vmatprep.subr.mxu0 0.0
    %2940 = vmatpush1.msra.mxu0 0.0
    %2941 = vmatprep.subr.mxu0 0.0
    %2942 = vmatpush1.msra.mxu0 0.0
    %2943 = vmatprep.subr.mxu0 0.0
    %2944 = vmatpush1.msra.mxu0 0.0
    %2945 = vmatprep.subr.mxu0 0.0
    %2946 = vmatpush1.msra.mxu0 0.0
    %2947 = vmatprep.subr.mxu0 0.0
    %2948 = vmatpush1.msra.mxu0 0.0
    %2949 = vmatprep.subr.mxu0 0.0
    %2950 = vmatpush1.msra.mxu0 0.0
    %2951 = vmatprep.subr.mxu0 0.0
    %2952 = vmatpush1.msra.mxu0 0.0
    %2953 = vmatprep.subr.mxu0 0.0
    %2954 = vmatpush1.msra.mxu0 0.0
    %2955 = vmatprep.subr.mxu0 0.0
    %2956 = vmatpush1.msra.mxu0 0.0
    %2957 = vmatprep.subr.mxu0 0.0
    %2958 = vmatpush1.msra.mxu0 0.0
    %2959 = vmatprep.subr.mxu0 0.0
    %2960 = vmatpush1.msra.mxu0 0.0
    %2961 = vmatprep.subr.mxu0 0.0
    %2962 = vmatpush1.msra.mxu0 0.0
    %2963 = vmatprep.subr.mxu0 0.0
    %2964 = vmatpush1.msra.mxu0 0.0
    %2965 = vmatprep.subr.mxu0 0.0
    %2966 = vmatpush1.msra.mxu0 0.0
    %2967 = vmatprep.subr.mxu0 0.0
    %2968 = vmatpush1.msra.mxu0 0.0
    %2969 = vmatprep.mubr.f32.mxu0 0.0
    %2970 = vmatmul.mubr.f32.gmra.mrb[0].mxu0 0.0
    %v2971 = vpop.f32.mrb[0].mxu0
    %v2972 = vadd.f32 0.0, %v2971
    %v2973 = vpop.f32.mrb[0].mxu0
    %v2974 = vadd.f32 0.0, %v2973
    %2975 = vdwg.mxu0
    %v2976 = vadd.f32 %v2766, %v2901
    %v2977 = vadd.f32 %v2767, %v2903
    %v2978 = vadd.f32 %v2768, %v2972
    %v2979 = vadd.f32 %v2769, %v2974
    %v2980 = vxor.u32 %v2976, 2147483648
    %v2981 = vmul.f32 %v2980, 1.442695
    %v2982 = vpow.pop %v2981
    %v2983 = vadd.f32 %v2982, 1.0
    %v2984 = vrcp.pop %v2983
    %v2985 = vmul.f32 1.0, %v2984
    %v2986 = vxor.u32 %v2977, 2147483648
    %v2987 = vmul.f32 %v2986, 1.442695
    %v2988 = vpow.pop %v2987
    %v2989 = vadd.f32 %v2988, 1.0
    %v2990 = vrcp.pop %v2989
    %v2991 = vmul.f32 1.0, %v2990
    %v2992 = vtanh.pop %v2978
    %v2993 = vxor.u32 %v2979, 2147483648
    %v2994 = vmul.f32 %v2993, 1.442695
    %v2995 = vpow.pop %v2994
    %v2996 = vadd.f32 %v2995, 1.0
    %v2997 = vrcp.pop %v2996
    %v2998 = vmul.f32 1.0, %v2997
    %v2999 = vmul.f32 %v2991, 0.0
    %v3000 = vmul.f32 %v2985, %v2992
    %v3001 = vadd.f32 %v2999, %v3000
    %v3002 = vtanh.pop %v3001
    %v3003 = vmul.f32 %v2998, %v3002
    %3004 = vst [vmem:[#allocation14] sm:$0xff] %v3003
    %v3005 = vld [vmem:[%s715] sm:$0xff]
    %v3006 = vld [vmem:[%s715 + $0x8] sm:$0xff]
    %v3007 = vld [vmem:[%s715 + $0x10] sm:$0xff]
    %v3008 = vld [vmem:[%s715 + $0x18] sm:$0xff]
    %v3009 = vld [vmem:[#allocation12] sm:$0xff]
    %v3010 = vld [vmem:[#allocation12 + $0x8] sm:$0xff]
    %v3011 = vld [vmem:[#allocation12 + $0x10] sm:$0xff]
    %v3012 = vld [vmem:[#allocation12 + $0x18] sm:$0xff]
    %v3013 = vld [vmem:[#allocation12 + $0x20] sm:$0xff]
    %v3014 = vld [vmem:[#allocation12 + $0x28] sm:$0xff]
    %v3015 = vld [vmem:[#allocation12 + $0x30] sm:$0xff]
    %v3016 = vld [vmem:[#allocation12 + $0x38] sm:$0xff]
    %v3017 = vld [vmem:[#allocation12 + $0x40] sm:$0xff]
    %v3018 = vld [vmem:[#allocation12 + $0x48] sm:$0xff]
    %v3019 = vld [vmem:[#allocation12 + $0x50] sm:$0xff]
    %v3020 = vld [vmem:[#allocation12 + $0x58] sm:$0xff]
    %v3021 = vld [vmem:[#allocation12 + $0x60] sm:$0xff]
    %v3022 = vld [vmem:[#allocation12 + $0x68] sm:$0xff]
    %v3023 = vld [vmem:[#allocation12 + $0x70] sm:$0xff]
    %v3024 = vld [vmem:[#allocation12 + $0x78] sm:$0xff]
    %v3025 = vld [vmem:[#allocation12 + $0x80] sm:$0xff]
    %v3026 = vld [vmem:[#allocation12 + $0x88] sm:$0xff]
    %v3027 = vld [vmem:[#allocation12 + $0x90] sm:$0xff]
    %v3028 = vld [vmem:[#allocation12 + $0x98] sm:$0xff]
    %v3029 = vld [vmem:[#allocation12 + $0xa0] sm:$0xff]
    %v3030 = vld [vmem:[#allocation12 + $0xa8] sm:$0xff]
    %v3031 = vld [vmem:[#allocation12 + $0xb0] sm:$0xff]
    %v3032 = vld [vmem:[#allocation12 + $0xb8] sm:$0xff]
    %v3033 = vld [vmem:[#allocation12 + $0xc0] sm:$0xff]
    %v3034 = vld [vmem:[#allocation12 + $0xc8] sm:$0xff]
    %v3035 = vld [vmem:[#allocation12 + $0xd0] sm:$0xff]
    %v3036 = vld [vmem:[#allocation12 + $0xd8] sm:$0xff]
    %v3037 = vld [vmem:[#allocation12 + $0xe0] sm:$0xff]
    %v3038 = vld [vmem:[#allocation12 + $0xe8] sm:$0xff]
    %v3039 = vld [vmem:[#allocation12 + $0xf0] sm:$0xff]
    %v3040 = vld [vmem:[#allocation12 + $0xf8] sm:$0xff]
    %v3041 = vld [vmem:[#allocation12 + $0x100] sm:$0xff]
    %v3042 = vld [vmem:[#allocation12 + $0x108] sm:$0xff]
    %v3043 = vld [vmem:[#allocation12 + $0x110] sm:$0xff]
    %v3044 = vld [vmem:[#allocation12 + $0x118] sm:$0xff]
    %v3045 = vld [vmem:[#allocation12 + $0x120] sm:$0xff]
    %v3046 = vld [vmem:[#allocation12 + $0x128] sm:$0xff]
    %v3047 = vld [vmem:[#allocation12 + $0x130] sm:$0xff]
    %v3048 = vld [vmem:[#allocation12 + $0x138] sm:$0xff]
    %v3049 = vld [vmem:[#allocation12 + $0x140] sm:$0xff]
    %v3050 = vld [vmem:[#allocation12 + $0x148] sm:$0xff]
    %v3051 = vld [vmem:[#allocation12 + $0x150] sm:$0xff]
    %v3052 = vld [vmem:[#allocation12 + $0x158] sm:$0xff]
    %v3053 = vld [vmem:[#allocation12 + $0x160] sm:$0xff]
    %v3054 = vld [vmem:[#allocation12 + $0x168] sm:$0xff]
    %v3055 = vld [vmem:[#allocation12 + $0x170] sm:$0xff]
    %v3056 = vld [vmem:[#allocation12 + $0x178] sm:$0xff]
    %v3057 = vld [vmem:[#allocation12 + $0x180] sm:$0xff]
    %v3058 = vld [vmem:[#allocation12 + $0x188] sm:$0xff]
    %v3059 = vld [vmem:[#allocation12 + $0x190] sm:$0xff]
    %v3060 = vld [vmem:[#allocation12 + $0x198] sm:$0xff]
    %v3061 = vld [vmem:[#allocation12 + $0x1a0] sm:$0xff]
    %v3062 = vld [vmem:[#allocation12 + $0x1a8] sm:$0xff]
    %v3063 = vld [vmem:[#allocation12 + $0x1b0] sm:$0xff]
    %v3064 = vld [vmem:[#allocation12 + $0x1b8] sm:$0xff]
    %v3065 = vld [vmem:[#allocation12 + $0x1c0] sm:$0xff]
    %v3066 = vld [vmem:[#allocation12 + $0x1c8] sm:$0xff]
    %v3067 = vld [vmem:[#allocation12 + $0x1d0] sm:$0xff]
    %v3068 = vld [vmem:[#allocation12 + $0x1d8] sm:$0xff]
    %v3069 = vld [vmem:[#allocation12 + $0x1e0] sm:$0xff]
    %v3070 = vld [vmem:[#allocation12 + $0x1e8] sm:$0xff]
    %v3071 = vld [vmem:[#allocation12 + $0x1f0] sm:$0xff]
    %v3072 = vld [vmem:[#allocation12 + $0x1f8] sm:$0xff]
    %3073 = vmatprep.subr.mxu0 %v3010
    %3074 = vmatpush1.msra.mxu0 %v3009
    %3075 = vmatprep.subr.mxu0 %v3014
    %3076 = vmatpush1.msra.mxu0 %v3013
    %3077 = vmatprep.subr.mxu0 %v3018
    %3078 = vmatpush1.msra.mxu0 %v3017
    %3079 = vmatprep.subr.mxu0 %v3022
    %3080 = vmatpush1.msra.mxu0 %v3021
    %3081 = vmatprep.subr.mxu0 %v3026
    %3082 = vmatpush1.msra.mxu0 %v3025
    %3083 = vmatprep.subr.mxu0 %v3030
    %3084 = vmatpush1.msra.mxu0 %v3029
    %3085 = vmatprep.subr.mxu0 %v3034
    %3086 = vmatpush1.msra.mxu0 %v3033
    %3087 = vmatprep.subr.mxu0 %v3038
    %3088 = vmatpush1.msra.mxu0 %v3037
    %3089 = vmatprep.subr.mxu0 %v3042
    %3090 = vmatpush1.msra.mxu0 %v3041
    %3091 = vmatprep.subr.mxu0 %v3046
    %3092 = vmatpush1.msra.mxu0 %v3045
    %3093 = vmatprep.subr.mxu0 %v3050
    %3094 = vmatpush1.msra.mxu0 %v3049
    %3095 = vmatprep.subr.mxu0 %v3054
    %3096 = vmatpush1.msra.mxu0 %v3053
    %3097 = vmatprep.subr.mxu0 %v3058
    %3098 = vmatpush1.msra.mxu0 %v3057
    %3099 = vmatprep.subr.mxu0 %v3062
    %3100 = vmatpush1.msra.mxu0 %v3061
    %3101 = vmatprep.subr.mxu0 %v3066
    %3102 = vmatpush1.msra.mxu0 %v3065
    %3103 = vmatprep.subr.mxu0 %v3070
    %3104 = vmatpush1.msra.mxu0 %v3069
    %3105 = vmatprep.subr.mxu0 0.0
    %3106 = vmatpush1.msra.mxu0 0.0
    %3107 = vmatprep.subr.mxu0 0.0
    %3108 = vmatpush1.msra.mxu0 0.0
    %3109 = vmatprep.subr.mxu0 0.0
    %3110 = vmatpush1.msra.mxu0 0.0
    %3111 = vmatprep.subr.mxu0 0.0
    %3112 = vmatpush1.msra.mxu0 0.0
    %3113 = vmatprep.subr.mxu0 0.0
    %3114 = vmatpush1.msra.mxu0 0.0
    %3115 = vmatprep.subr.mxu0 0.0
    %3116 = vmatpush1.msra.mxu0 0.0
    %3117 = vmatprep.subr.mxu0 0.0
    %3118 = vmatpush1.msra.mxu0 0.0
    %3119 = vmatprep.subr.mxu0 0.0
    %3120 = vmatpush1.msra.mxu0 0.0
    %3121 = vmatprep.subr.mxu0 0.0
    %3122 = vmatpush1.msra.mxu0 0.0
    %3123 = vmatprep.subr.mxu0 0.0
    %3124 = vmatpush1.msra.mxu0 0.0
    %3125 = vmatprep.subr.mxu0 0.0
    %3126 = vmatpush1.msra.mxu0 0.0
    %3127 = vmatprep.subr.mxu0 0.0
    %3128 = vmatpush1.msra.mxu0 0.0
    %3129 = vmatprep.subr.mxu0 0.0
    %3130 = vmatpush1.msra.mxu0 0.0
    %3131 = vmatprep.subr.mxu0 0.0
    %3132 = vmatpush1.msra.mxu0 0.0
    %3133 = vmatprep.subr.mxu0 0.0
    %3134 = vmatpush1.msra.mxu0 0.0
    %3135 = vmatprep.subr.mxu0 0.0
    %3136 = vmatpush1.msra.mxu0 0.0
    %3137 = vmatprep.mubr.f32.mxu0 0.0
    %3138 = vmatmul.mubr.f32.gmra.mrb[0].mxu0 %v3003
    %v3139 = vpop.f32.mrb[0].mxu0
    %v3140 = vadd.f32 0.0, %v3139
    %v3141 = vpop.f32.mrb[0].mxu0
    %v3142 = vadd.f32 0.0, %v3141
    %3143 = vdwg.mxu0
    %3144 = vmatprep.subr.mxu0 %v3012
    %3145 = vmatpush1.msra.mxu0 %v3011
    %3146 = vmatprep.subr.mxu0 %v3016
    %3147 = vmatpush1.msra.mxu0 %v3015
    %3148 = vmatprep.subr.mxu0 %v3020
    %3149 = vmatpush1.msra.mxu0 %v3019
    %3150 = vmatprep.subr.mxu0 %v3024
    %3151 = vmatpush1.msra.mxu0 %v3023
    %3152 = vmatprep.subr.mxu0 %v3028
    %3153 = vmatpush1.msra.mxu0 %v3027
    %3154 = vmatprep.subr.mxu0 %v3032
    %3155 = vmatpush1.msra.mxu0 %v3031
    %3156 = vmatprep.subr.mxu0 %v3036
    %3157 = vmatpush1.msra.mxu0 %v3035
    %3158 = vmatprep.subr.mxu0 %v3040
    %3159 = vmatpush1.msra.mxu0 %v3039
    %3160 = vmatprep.subr.mxu0 %v3044
    %3161 = vmatpush1.msra.mxu0 %v3043
    %3162 = vmatprep.subr.mxu0 %v3048
    %3163 = vmatpush1.msra.mxu0 %v3047
    %3164 = vmatprep.subr.mxu0 %v3052
    %3165 = vmatpush1.msra.mxu0 %v3051
    %3166 = vmatprep.subr.mxu0 %v3056
    %3167 = vmatpush1.msra.mxu0 %v3055
    %3168 = vmatprep.subr.mxu0 %v3060
    %3169 = vmatpush1.msra.mxu0 %v3059
    %3170 = vmatprep.subr.mxu0 %v3064
    %3171 = vmatpush1.msra.mxu0 %v3063
    %3172 = vmatprep.subr.mxu0 %v3068
    %3173 = vmatpush1.msra.mxu0 %v3067
    %3174 = vmatprep.subr.mxu0 %v3072
    %3175 = vmatpush1.msra.mxu0 %v3071
    %3176 = vmatprep.subr.mxu0 0.0
    %3177 = vmatpush1.msra.mxu0 0.0
    %3178 = vmatprep.subr.mxu0 0.0
    %3179 = vmatpush1.msra.mxu0 0.0
    %3180 = vmatprep.subr.mxu0 0.0
    %3181 = vmatpush1.msra.mxu0 0.0
    %3182 = vmatprep.subr.mxu0 0.0
    %3183 = vmatpush1.msra.mxu0 0.0
    %3184 = vmatprep.subr.mxu0 0.0
    %3185 = vmatpush1.msra.mxu0 0.0
    %3186 = vmatprep.subr.mxu0 0.0
    %3187 = vmatpush1.msra.mxu0 0.0
    %3188 = vmatprep.subr.mxu0 0.0
    %3189 = vmatpush1.msra.mxu0 0.0
    %3190 = vmatprep.subr.mxu0 0.0
    %3191 = vmatpush1.msra.mxu0 0.0
    %3192 = vmatprep.subr.mxu0 0.0
    %3193 = vmatpush1.msra.mxu0 0.0
    %3194 = vmatprep.subr.mxu0 0.0
    %3195 = vmatpush1.msra.mxu0 0.0
    %3196 = vmatprep.subr.mxu0 0.0
    %3197 = vmatpush1.msra.mxu0 0.0
    %3198 = vmatprep.subr.mxu0 0.0
    %3199 = vmatpush1.msra.mxu0 0.0
    %3200 = vmatprep.subr.mxu0 0.0
    %3201 = vmatpush1.msra.mxu0 0.0
    %3202 = vmatprep.subr.mxu0 0.0
    %3203 = vmatpush1.msra.mxu0 0.0
    %3204 = vmatprep.subr.mxu0 0.0
    %3205 = vmatpush1.msra.mxu0 0.0
    %3206 = vmatprep.subr.mxu0 0.0
    %3207 = vmatpush1.msra.mxu0 0.0
    %3208 = vmatprep.mubr.f32.mxu0 0.0
    %3209 = vmatmul.mubr.f32.gmra.mrb[0].mxu0 %v3003
    %v3210 = vpop.f32.mrb[0].mxu0
    %v3211 = vadd.f32 0.0, %v3210
    %v3212 = vpop.f32.mrb[0].mxu0
    %v3213 = vadd.f32 0.0, %v3212
    %3214 = vdwg.mxu0
    %v3215 = vadd.f32 %v3005, %v3140
    %v3216 = vadd.f32 %v3006, %v3142
    %v3217 = vadd.f32 %v3007, %v3211
    %v3218 = vadd.f32 %v3008, %v3213
    %v3219 = vxor.u32 %v3215, 2147483648
    %v3220 = vmul.f32 %v3219, 1.442695
    %v3221 = vpow.pop %v3220
    %v3222 = vadd.f32 %v3221, 1.0
    %v3223 = vrcp.pop %v3222
    %v3224 = vmul.f32 1.0, %v3223
    %v3225 = vxor.u32 %v3216, 2147483648
    %v3226 = vmul.f32 %v3225, 1.442695
    %v3227 = vpow.pop %v3226
    %v3228 = vadd.f32 %v3227, 1.0
    %v3229 = vrcp.pop %v3228
    %v3230 = vmul.f32 1.0, %v3229
    %v3231 = vtanh.pop %v3217
    %v3232 = vxor.u32 %v3218, 2147483648
    %v3233 = vmul.f32 %v3232, 1.442695
    %v3234 = vpow.pop %v3233
    %v3235 = vadd.f32 %v3234, 1.0
    %v3236 = vrcp.pop %v3235
    %v3237 = vmul.f32 1.0, %v3236
    %v3238 = vmul.f32 %v3230, %v3001
    %v3239 = vmul.f32 %v3224, %v3231
    %v3240 = vadd.f32 %v3238, %v3239
    %v3241 = vtanh.pop %v3240
    %v3242 = vmul.f32 %v3237, %v3241
    %3243 = vst [vmem:[%s954] sm:$0xff] %v3242
    %v3244 = vld [vmem:[%s958] sm:$0xff]
    %v3245 = vld [vmem:[%s958 + $0x8] sm:$0xff]
    %v3246 = vld [vmem:[%s958 + $0x10] sm:$0xff]
    %v3247 = vld [vmem:[%s958 + $0x18] sm:$0xff]
    %v3248 = vld [vmem:[#allocation12] sm:$0xff]
    %v3249 = vld [vmem:[#allocation12 + $0x8] sm:$0xff]
    %v3250 = vld [vmem:[#allocation12 + $0x10] sm:$0xff]
    %v3251 = vld [vmem:[#allocation12 + $0x18] sm:$0xff]
    %v3252 = vld [vmem:[#allocation12 + $0x20] sm:$0xff]
    %v3253 = vld [vmem:[#allocation12 + $0x28] sm:$0xff]
    %v3254 = vld [vmem:[#allocation12 + $0x30] sm:$0xff]
    %v3255 = vld [vmem:[#allocation12 + $0x38] sm:$0xff]
    %v3256 = vld [vmem:[#allocation12 + $0x40] sm:$0xff]
    %v3257 = vld [vmem:[#allocation12 + $0x48] sm:$0xff]
    %v3258 = vld [vmem:[#allocation12 + $0x50] sm:$0xff]
    %v3259 = vld [vmem:[#allocation12 + $0x58] sm:$0xff]
    %v3260 = vld [vmem:[#allocation12 + $0x60] sm:$0xff]
    %v3261 = vld [vmem:[#allocation12 + $0x68] sm:$0xff]
    %v3262 = vld [vmem:[#allocation12 + $0x70] sm:$0xff]
    %v3263 = vld [vmem:[#allocation12 + $0x78] sm:$0xff]
    %v3264 = vld [vmem:[#allocation12 + $0x80] sm:$0xff]
    %v3265 = vld [vmem:[#allocation12 + $0x88] sm:$0xff]
    %v3266 = vld [vmem:[#allocation12 + $0x90] sm:$0xff]
    %v3267 = vld [vmem:[#allocation12 + $0x98] sm:$0xff]
    %v3268 = vld [vmem:[#allocation12 + $0xa0] sm:$0xff]
    %v3269 = vld [vmem:[#allocation12 + $0xa8] sm:$0xff]
    %v3270 = vld [vmem:[#allocation12 + $0xb0] sm:$0xff]
    %v3271 = vld [vmem:[#allocation12 + $0xb8] sm:$0xff]
    %v3272 = vld [vmem:[#allocation12 + $0xc0] sm:$0xff]
    %v3273 = vld [vmem:[#allocation12 + $0xc8] sm:$0xff]
    %v3274 = vld [vmem:[#allocation12 + $0xd0] sm:$0xff]
    %v3275 = vld [vmem:[#allocation12 + $0xd8] sm:$0xff]
    %v3276 = vld [vmem:[#allocation12 + $0xe0] sm:$0xff]
    %v3277 = vld [vmem:[#allocation12 + $0xe8] sm:$0xff]
    %v3278 = vld [vmem:[#allocation12 + $0xf0] sm:$0xff]
    %v3279 = vld [vmem:[#allocation12 + $0xf8] sm:$0xff]
    %v3280 = vld [vmem:[#allocation12 + $0x100] sm:$0xff]
    %v3281 = vld [vmem:[#allocation12 + $0x108] sm:$0xff]
    %v3282 = vld [vmem:[#allocation12 + $0x110] sm:$0xff]
    %v3283 = vld [vmem:[#allocation12 + $0x118] sm:$0xff]
    %v3284 = vld [vmem:[#allocation12 + $0x120] sm:$0xff]
    %v3285 = vld [vmem:[#allocation12 + $0x128] sm:$0xff]
    %v3286 = vld [vmem:[#allocation12 + $0x130] sm:$0xff]
    %v3287 = vld [vmem:[#allocation12 + $0x138] sm:$0xff]
    %v3288 = vld [vmem:[#allocation12 + $0x140] sm:$0xff]
    %v3289 = vld [vmem:[#allocation12 + $0x148] sm:$0xff]
    %v3290 = vld [vmem:[#allocation12 + $0x150] sm:$0xff]
    %v3291 = vld [vmem:[#allocation12 + $0x158] sm:$0xff]
    %v3292 = vld [vmem:[#allocation12 + $0x160] sm:$0xff]
    %v3293 = vld [vmem:[#allocation12 + $0x168] sm:$0xff]
    %v3294 = vld [vmem:[#allocation12 + $0x170] sm:$0xff]
    %v3295 = vld [vmem:[#allocation12 + $0x178] sm:$0xff]
    %v3296 = vld [vmem:[#allocation12 + $0x180] sm:$0xff]
    %v3297 = vld [vmem:[#allocation12 + $0x188] sm:$0xff]
    %v3298 = vld [vmem:[#allocation12 + $0x190] sm:$0xff]
    %v3299 = vld [vmem:[#allocation12 + $0x198] sm:$0xff]
    %v3300 = vld [vmem:[#allocation12 + $0x1a0] sm:$0xff]
    %v3301 = vld [vmem:[#allocation12 + $0x1a8] sm:$0xff]
    %v3302 = vld [vmem:[#allocation12 + $0x1b0] sm:$0xff]
    %v3303 = vld [vmem:[#allocation12 + $0x1b8] sm:$0xff]
    %v3304 = vld [vmem:[#allocation12 + $0x1c0] sm:$0xff]
    %v3305 = vld [vmem:[#allocation12 + $0x1c8] sm:$0xff]
    %v3306 = vld [vmem:[#allocation12 + $0x1d0] sm:$0xff]
    %v3307 = vld [vmem:[#allocation12 + $0x1d8] sm:$0xff]
    %v3308 = vld [vmem:[#allocation12 + $0x1e0] sm:$0xff]
    %v3309 = vld [vmem:[#allocation12 + $0x1e8] sm:$0xff]
    %v3310 = vld [vmem:[#allocation12 + $0x1f0] sm:$0xff]
    %v3311 = vld [vmem:[#allocation12 + $0x1f8] sm:$0xff]
    %3312 = vmatprep.subr.mxu0 %v3249
    %3313 = vmatpush1.msra.mxu0 %v3248
    %3314 = vmatprep.subr.mxu0 %v3253
    %3315 = vmatpush1.msra.mxu0 %v3252
    %3316 = vmatprep.subr.mxu0 %v3257
    %3317 = vmatpush1.msra.mxu0 %v3256
    %3318 = vmatprep.subr.mxu0 %v3261
    %3319 = vmatpush1.msra.mxu0 %v3260
    %3320 = vmatprep.subr.mxu0 %v3265
    %3321 = vmatpush1.msra.mxu0 %v3264
    %3322 = vmatprep.subr.mxu0 %v3269
    %3323 = vmatpush1.msra.mxu0 %v3268
    %3324 = vmatprep.subr.mxu0 %v3273
    %3325 = vmatpush1.msra.mxu0 %v3272
    %3326 = vmatprep.subr.mxu0 %v3277
    %3327 = vmatpush1.msra.mxu0 %v3276
    %3328 = vmatprep.subr.mxu0 %v3281
    %3329 = vmatpush1.msra.mxu0 %v3280
    %3330 = vmatprep.subr.mxu0 %v3285
    %3331 = vmatpush1.msra.mxu0 %v3284
    %3332 = vmatprep.subr.mxu0 %v3289
    %3333 = vmatpush1.msra.mxu0 %v3288
    %3334 = vmatprep.subr.mxu0 %v3293
    %3335 = vmatpush1.msra.mxu0 %v3292
    %3336 = vmatprep.subr.mxu0 %v3297
    %3337 = vmatpush1.msra.mxu0 %v3296
    %3338 = vmatprep.subr.mxu0 %v3301
    %3339 = vmatpush1.msra.mxu0 %v3300
    %3340 = vmatprep.subr.mxu0 %v3305
    %3341 = vmatpush1.msra.mxu0 %v3304
    %3342 = vmatprep.subr.mxu0 %v3309
    %3343 = vmatpush1.msra.mxu0 %v3308
    %3344 = vmatprep.subr.mxu0 0.0
    %3345 = vmatpush1.msra.mxu0 0.0
    %3346 = vmatprep.subr.mxu0 0.0
    %3347 = vmatpush1.msra.mxu0 0.0
    %3348 = vmatprep.subr.mxu0 0.0
    %3349 = vmatpush1.msra.mxu0 0.0
    %3350 = vmatprep.subr.mxu0 0.0
    %3351 = vmatpush1.msra.mxu0 0.0
    %3352 = vmatprep.subr.mxu0 0.0
    %3353 = vmatpush1.msra.mxu0 0.0
    %3354 = vmatprep.subr.mxu0 0.0
    %3355 = vmatpush1.msra.mxu0 0.0
    %3356 = vmatprep.subr.mxu0 0.0
    %3357 = vmatpush1.msra.mxu0 0.0
    %3358 = vmatprep.subr.mxu0 0.0
    %3359 = vmatpush1.msra.mxu0 0.0
    %3360 = vmatprep.subr.mxu0 0.0
    %3361 = vmatpush1.msra.mxu0 0.0
    %3362 = vmatprep.subr.mxu0 0.0
    %3363 = vmatpush1.msra.mxu0 0.0
    %3364 = vmatprep.subr.mxu0 0.0
    %3365 = vmatpush1.msra.mxu0 0.0
    %3366 = vmatprep.subr.mxu0 0.0
    %3367 = vmatpush1.msra.mxu0 0.0
    %3368 = vmatprep.subr.mxu0 0.0
    %3369 = vmatpush1.msra.mxu0 0.0
    %3370 = vmatprep.subr.mxu0 0.0
    %3371 = vmatpush1.msra.mxu0 0.0
    %3372 = vmatprep.subr.mxu0 0.0
    %3373 = vmatpush1.msra.mxu0 0.0
    %3374 = vmatprep.subr.mxu0 0.0
    %3375 = vmatpush1.msra.mxu0 0.0
    %3376 = vmatprep.mubr.f32.mxu0 0.0
    %3377 = vmatmul.mubr.f32.gmra.mrb[0].mxu0 %v3242
    %v3378 = vpop.f32.mrb[0].mxu0
    %v3379 = vadd.f32 0.0, %v3378
    %v3380 = vpop.f32.mrb[0].mxu0
    %v3381 = vadd.f32 0.0, %v3380
    %3382 = vdwg.mxu0
    %3383 = vmatprep.subr.mxu0 %v3251
    %3384 = vmatpush1.msra.mxu0 %v3250
    %3385 = vmatprep.subr.mxu0 %v3255
    %3386 = vmatpush1.msra.mxu0 %v3254
    %3387 = vmatprep.subr.mxu0 %v3259
    %3388 = vmatpush1.msra.mxu0 %v3258
    %3389 = vmatprep.subr.mxu0 %v3263
    %3390 = vmatpush1.msra.mxu0 %v3262
    %3391 = vmatprep.subr.mxu0 %v3267
    %3392 = vmatpush1.msra.mxu0 %v3266
    %3393 = vmatprep.subr.mxu0 %v3271
    %3394 = vmatpush1.msra.mxu0 %v3270
    %3395 = vmatprep.subr.mxu0 %v3275
    %3396 = vmatpush1.msra.mxu0 %v3274
    %3397 = vmatprep.subr.mxu0 %v3279
    %3398 = vmatpush1.msra.mxu0 %v3278
    %3399 = vmatprep.subr.mxu0 %v3283
    %3400 = vmatpush1.msra.mxu0 %v3282
    %3401 = vmatprep.subr.mxu0 %v3287
    %3402 = vmatpush1.msra.mxu0 %v3286
    %3403 = vmatprep.subr.mxu0 %v3291
    %3404 = vmatpush1.msra.mxu0 %v3290
    %3405 = vmatprep.subr.mxu0 %v3295
    %3406 = vmatpush1.msra.mxu0 %v3294
    %3407 = vmatprep.subr.mxu0 %v3299
    %3408 = vmatpush1.msra.mxu0 %v3298
    %3409 = vmatprep.subr.mxu0 %v3303
    %3410 = vmatpush1.msra.mxu0 %v3302
    %3411 = vmatprep.subr.mxu0 %v3307
    %3412 = vmatpush1.msra.mxu0 %v3306
    %3413 = vmatprep.subr.mxu0 %v3311
    %3414 = vmatpush1.msra.mxu0 %v3310
    %3415 = vmatprep.subr.mxu0 0.0
    %3416 = vmatpush1.msra.mxu0 0.0
    %3417 = vmatprep.subr.mxu0 0.0
    %3418 = vmatpush1.msra.mxu0 0.0
    %3419 = vmatprep.subr.mxu0 0.0
    %3420 = vmatpush1.msra.mxu0 0.0
    %3421 = vmatprep.subr.mxu0 0.0
    %3422 = vmatpush1.msra.mxu0 0.0
    %3423 = vmatprep.subr.mxu0 0.0
    %3424 = vmatpush1.msra.mxu0 0.0
    %3425 = vmatprep.subr.mxu0 0.0
    %3426 = vmatpush1.msra.mxu0 0.0
    %3427 = vmatprep.subr.mxu0 0.0
    %3428 = vmatpush1.msra.mxu0 0.0
    %3429 = vmatprep.subr.mxu0 0.0
    %3430 = vmatpush1.msra.mxu0 0.0
    %3431 = vmatprep.subr.mxu0 0.0
    %3432 = vmatpush1.msra.mxu0 0.0
    %3433 = vmatprep.subr.mxu0 0.0
    %3434 = vmatpush1.msra.mxu0 0.0
    %3435 = vmatprep.subr.mxu0 0.0
    %3436 = vmatpush1.msra.mxu0 0.0
    %3437 = vmatprep.subr.mxu0 0.0
    %3438 = vmatpush1.msra.mxu0 0.0
    %3439 = vmatprep.subr.mxu0 0.0
    %3440 = vmatpush1.msra.mxu0 0.0
    %3441 = vmatprep.subr.mxu0 0.0
    %3442 = vmatpush1.msra.mxu0 0.0
    %3443 = vmatprep.subr.mxu0 0.0
    %3444 = vmatpush1.msra.mxu0 0.0
    %3445 = vmatprep.subr.mxu0 0.0
    %3446 = vmatpush1.msra.mxu0 0.0
    %3447 = vmatprep.mubr.f32.mxu0 0.0
    %3448 = vmatmul.mubr.f32.gmra.mrb[0].mxu0 %v3242
    %v3449 = vpop.f32.mrb[0].mxu0
    %v3450 = vadd.f32 0.0, %v3449
    %v3451 = vpop.f32.mrb[0].mxu0
    %v3452 = vadd.f32 0.0, %v3451
    %3453 = vdwg.mxu0
    %v3454 = vadd.f32 %v3244, %v3379
    %v3455 = vadd.f32 %v3245, %v3381
    %v3456 = vadd.f32 %v3246, %v3450
    %v3457 = vadd.f32 %v3247, %v3452
    %v3458 = vxor.u32 %v3454, 2147483648
    %v3459 = vmul.f32 %v3458, 1.442695
    %v3460 = vpow.pop %v3459
    %v3461 = vadd.f32 %v3460, 1.0
    %v3462 = vrcp.pop %v3461
    %v3463 = vmul.f32 1.0, %v3462
    %v3464 = vxor.u32 %v3455, 2147483648
    %v3465 = vmul.f32 %v3464, 1.442695
    %v3466 = vpow.pop %v3465
    %v3467 = vadd.f32 %v3466, 1.0
    %v3468 = vrcp.pop %v3467
    %v3469 = vmul.f32 1.0, %v3468
    %v3470 = vtanh.pop %v3456
    %v3471 = vxor.u32 %v3457, 2147483648
    %v3472 = vmul.f32 %v3471, 1.442695
    %v3473 = vpow.pop %v3472
    %v3474 = vadd.f32 %v3473, 1.0
    %v3475 = vrcp.pop %v3474
    %v3476 = vmul.f32 1.0, %v3475
    %v3477 = vmul.f32 %v3469, %v3240
    %v3478 = vmul.f32 %v3463, %v3470
    %v3479 = vadd.f32 %v3477, %v3478
    %v3480 = vtanh.pop %v3479
    %v3481 = vmul.f32 %v3476, %v3480
    %3482 = vst [vmem:[%s1197] sm:$0xff] %v3481
    %v3483 = vld [vmem:[%s1201] sm:$0xff]
    %v3484 = vld [vmem:[%s1201 + $0x8] sm:$0xff]
    %v3485 = vld [vmem:[%s1201 + $0x10] sm:$0xff]
    %v3486 = vld [vmem:[%s1201 + $0x18] sm:$0xff]
    %v3487 = vld [vmem:[#allocation12] sm:$0xff]
    %v3488 = vld [vmem:[#allocation12 + $0x8] sm:$0xff]
    %v3489 = vld [vmem:[#allocation12 + $0x10] sm:$0xff]
    %v3490 = vld [vmem:[#allocation12 + $0x18] sm:$0xff]
    %v3491 = vld [vmem:[#allocation12 + $0x20] sm:$0xff]
    %v3492 = vld [vmem:[#allocation12 + $0x28] sm:$0xff]
    %v3493 = vld [vmem:[#allocation12 + $0x30] sm:$0xff]
    %v3494 = vld [vmem:[#allocation12 + $0x38] sm:$0xff]
    %v3495 = vld [vmem:[#allocation12 + $0x40] sm:$0xff]
    %v3496 = vld [vmem:[#allocation12 + $0x48] sm:$0xff]
    %v3497 = vld [vmem:[#allocation12 + $0x50] sm:$0xff]
    %v3498 = vld [vmem:[#allocation12 + $0x58] sm:$0xff]
    %v3499 = vld [vmem:[#allocation12 + $0x60] sm:$0xff]
    %v3500 = vld [vmem:[#allocation12 + $0x68] sm:$0xff]
    %v3501 = vld [vmem:[#allocation12 + $0x70] sm:$0xff]
    %v3502 = vld [vmem:[#allocation12 + $0x78] sm:$0xff]
    %v3503 = vld [vmem:[#allocation12 + $0x80] sm:$0xff]
    %v3504 = vld [vmem:[#allocation12 + $0x88] sm:$0xff]
    %v3505 = vld [vmem:[#allocation12 + $0x90] sm:$0xff]
    %v3506 = vld [vmem:[#allocation12 + $0x98] sm:$0xff]
    %v3507 = vld [vmem:[#allocation12 + $0xa0] sm:$0xff]
    %v3508 = vld [vmem:[#allocation12 + $0xa8] sm:$0xff]
    %v3509 = vld [vmem:[#allocation12 + $0xb0] sm:$0xff]
    %v3510 = vld [vmem:[#allocation12 + $0xb8] sm:$0xff]
    %v3511 = vld [vmem:[#allocation12 + $0xc0] sm:$0xff]
    %v3512 = vld [vmem:[#allocation12 + $0xc8] sm:$0xff]
    %v3513 = vld [vmem:[#allocation12 + $0xd0] sm:$0xff]
    %v3514 = vld [vmem:[#allocation12 + $0xd8] sm:$0xff]
    %v3515 = vld [vmem:[#allocation12 + $0xe0] sm:$0xff]
    %v3516 = vld [vmem:[#allocation12 + $0xe8] sm:$0xff]
    %v3517 = vld [vmem:[#allocation12 + $0xf0] sm:$0xff]
    %v3518 = vld [vmem:[#allocation12 + $0xf8] sm:$0xff]
    %v3519 = vld [vmem:[#allocation12 + $0x100] sm:$0xff]
    %v3520 = vld [vmem:[#allocation12 + $0x108] sm:$0xff]
    %v3521 = vld [vmem:[#allocation12 + $0x110] sm:$0xff]
    %v3522 = vld [vmem:[#allocation12 + $0x118] sm:$0xff]
    %v3523 = vld [vmem:[#allocation12 + $0x120] sm:$0xff]
    %v3524 = vld [vmem:[#allocation12 + $0x128] sm:$0xff]
    %v3525 = vld [vmem:[#allocation12 + $0x130] sm:$0xff]
    %v3526 = vld [vmem:[#allocation12 + $0x138] sm:$0xff]
    %v3527 = vld [vmem:[#allocation12 + $0x140] sm:$0xff]
    %v3528 = vld [vmem:[#allocation12 + $0x148] sm:$0xff]
    %v3529 = vld [vmem:[#allocation12 + $0x150] sm:$0xff]
    %v3530 = vld [vmem:[#allocation12 + $0x158] sm:$0xff]
    %v3531 = vld [vmem:[#allocation12 + $0x160] sm:$0xff]
    %v3532 = vld [vmem:[#allocation12 + $0x168] sm:$0xff]
    %v3533 = vld [vmem:[#allocation12 + $0x170] sm:$0xff]
    %v3534 = vld [vmem:[#allocation12 + $0x178] sm:$0xff]
    %v3535 = vld [vmem:[#allocation12 + $0x180] sm:$0xff]
    %v3536 = vld [vmem:[#allocation12 + $0x188] sm:$0xff]
    %v3537 = vld [vmem:[#allocation12 + $0x190] sm:$0xff]
    %v3538 = vld [vmem:[#allocation12 + $0x198] sm:$0xff]
    %v3539 = vld [vmem:[#allocation12 + $0x1a0] sm:$0xff]
    %v3540 = vld [vmem:[#allocation12 + $0x1a8] sm:$0xff]
    %v3541 = vld [vmem:[#allocation12 + $0x1b0] sm:$0xff]
    %v3542 = vld [vmem:[#allocation12 + $0x1b8] sm:$0xff]
    %v3543 = vld [vmem:[#allocation12 + $0x1c0] sm:$0xff]
    %v3544 = vld [vmem:[#allocation12 + $0x1c8] sm:$0xff]
    %v3545 = vld [vmem:[#allocation12 + $0x1d0] sm:$0xff]
    %v3546 = vld [vmem:[#allocation12 + $0x1d8] sm:$0xff]
    %v3547 = vld [vmem:[#allocation12 + $0x1e0] sm:$0xff]
    %v3548 = vld [vmem:[#allocation12 + $0x1e8] sm:$0xff]
    %v3549 = vld [vmem:[#allocation12 + $0x1f0] sm:$0xff]
    %v3550 = vld [vmem:[#allocation12 + $0x1f8] sm:$0xff]
    %3551 = vmatprep.subr.mxu0 %v3488
    %3552 = vmatpush1.msra.mxu0 %v3487
    %3553 = vmatprep.subr.mxu0 %v3492
    %3554 = vmatpush1.msra.mxu0 %v3491
    %3555 = vmatprep.subr.mxu0 %v3496
    %3556 = vmatpush1.msra.mxu0 %v3495
    %3557 = vmatprep.subr.mxu0 %v3500
    %3558 = vmatpush1.msra.mxu0 %v3499
    %3559 = vmatprep.subr.mxu0 %v3504
    %3560 = vmatpush1.msra.mxu0 %v3503
    %3561 = vmatprep.subr.mxu0 %v3508
    %3562 = vmatpush1.msra.mxu0 %v3507
    %3563 = vmatprep.subr.mxu0 %v3512
    %3564 = vmatpush1.msra.mxu0 %v3511
    %3565 = vmatprep.subr.mxu0 %v3516
    %3566 = vmatpush1.msra.mxu0 %v3515
    %3567 = vmatprep.subr.mxu0 %v3520
    %3568 = vmatpush1.msra.mxu0 %v3519
    %3569 = vmatprep.subr.mxu0 %v3524
    %3570 = vmatpush1.msra.mxu0 %v3523
    %3571 = vmatprep.subr.mxu0 %v3528
    %3572 = vmatpush1.msra.mxu0 %v3527
    %3573 = vmatprep.subr.mxu0 %v3532
    %3574 = vmatpush1.msra.mxu0 %v3531
    %3575 = vmatprep.subr.mxu0 %v3536
    %3576 = vmatpush1.msra.mxu0 %v3535
    %3577 = vmatprep.subr.mxu0 %v3540
    %3578 = vmatpush1.msra.mxu0 %v3539
    %3579 = vmatprep.subr.mxu0 %v3544
    %3580 = vmatpush1.msra.mxu0 %v3543
    %3581 = vmatprep.subr.mxu0 %v3548
    %3582 = vmatpush1.msra.mxu0 %v3547
    %3583 = vmatprep.subr.mxu0 0.0
    %3584 = vmatpush1.msra.mxu0 0.0
    %3585 = vmatprep.subr.mxu0 0.0
    %3586 = vmatpush1.msra.mxu0 0.0
    %3587 = vmatprep.subr.mxu0 0.0
    %3588 = vmatpush1.msra.mxu0 0.0
    %3589 = vmatprep.subr.mxu0 0.0
    %3590 = vmatpush1.msra.mxu0 0.0
    %3591 = vmatprep.subr.mxu0 0.0
    %3592 = vmatpush1.msra.mxu0 0.0
    %3593 = vmatprep.subr.mxu0 0.0
    %3594 = vmatpush1.msra.mxu0 0.0
    %3595 = vmatprep.subr.mxu0 0.0
    %3596 = vmatpush1.msra.mxu0 0.0
    %3597 = vmatprep.subr.mxu0 0.0
    %3598 = vmatpush1.msra.mxu0 0.0
    %3599 = vmatprep.subr.mxu0 0.0
    %3600 = vmatpush1.msra.mxu0 0.0
    %3601 = vmatprep.subr.mxu0 0.0
    %3602 = vmatpush1.msra.mxu0 0.0
    %3603 = vmatprep.subr.mxu0 0.0
    %3604 = vmatpush1.msra.mxu0 0.0
    %3605 = vmatprep.subr.mxu0 0.0
    %3606 = vmatpush1.msra.mxu0 0.0
    %3607 = vmatprep.subr.mxu0 0.0
    %3608 = vmatpush1.msra.mxu0 0.0
    %3609 = vmatprep.subr.mxu0 0.0
    %3610 = vmatpush1.msra.mxu0 0.0
    %3611 = vmatprep.subr.mxu0 0.0
    %3612 = vmatpush1.msra.mxu0 0.0
    %3613 = vmatprep.subr.mxu0 0.0
    %3614 = vmatpush1.msra.mxu0 0.0
    %3615 = vmatprep.mubr.f32.mxu0 0.0
    %3616 = vmatmul.mubr.f32.gmra.mrb[0].mxu0 %v3481
    %v3617 = vpop.f32.mrb[0].mxu0
    %v3618 = vadd.f32 0.0, %v3617
    %v3619 = vpop.f32.mrb[0].mxu0
    %v3620 = vadd.f32 0.0, %v3619
    %3621 = vdwg.mxu0
    %3622 = vmatprep.subr.mxu0 %v3490
    %3623 = vmatpush1.msra.mxu0 %v3489
    %3624 = vmatprep.subr.mxu0 %v3494
    %3625 = vmatpush1.msra.mxu0 %v3493
    %3626 = vmatprep.subr.mxu0 %v3498
    %3627 = vmatpush1.msra.mxu0 %v3497
    %3628 = vmatprep.subr.mxu0 %v3502
    %3629 = vmatpush1.msra.mxu0 %v3501
    %3630 = vmatprep.subr.mxu0 %v3506
    %3631 = vmatpush1.msra.mxu0 %v3505
    %3632 = vmatprep.subr.mxu0 %v3510
    %3633 = vmatpush1.msra.mxu0 %v3509
    %3634 = vmatprep.subr.mxu0 %v3514
    %3635 = vmatpush1.msra.mxu0 %v3513
    %3636 = vmatprep.subr.mxu0 %v3518
    %3637 = vmatpush1.msra.mxu0 %v3517
    %3638 = vmatprep.subr.mxu0 %v3522
    %3639 = vmatpush1.msra.mxu0 %v3521
    %3640 = vmatprep.subr.mxu0 %v3526
    %3641 = vmatpush1.msra.mxu0 %v3525
    %3642 = vmatprep.subr.mxu0 %v3530
    %3643 = vmatpush1.msra.mxu0 %v3529
    %3644 = vmatprep.subr.mxu0 %v3534
    %3645 = vmatpush1.msra.mxu0 %v3533
    %3646 = vmatprep.subr.mxu0 %v3538
    %3647 = vmatpush1.msra.mxu0 %v3537
    %3648 = vmatprep.subr.mxu0 %v3542
    %3649 = vmatpush1.msra.mxu0 %v3541
    %3650 = vmatprep.subr.mxu0 %v3546
    %3651 = vmatpush1.msra.mxu0 %v3545
    %3652 = vmatprep.subr.mxu0 %v3550
    %3653 = vmatpush1.msra.mxu0 %v3549
    %3654 = vmatprep.subr.mxu0 0.0
    %3655 = vmatpush1.msra.mxu0 0.0
    %3656 = vmatprep.subr.mxu0 0.0
    %3657 = vmatpush1.msra.mxu0 0.0
    %3658 = vmatprep.subr.mxu0 0.0
    %3659 = vmatpush1.msra.mxu0 0.0
    %3660 = vmatprep.subr.mxu0 0.0
    %3661 = vmatpush1.msra.mxu0 0.0
    %3662 = vmatprep.subr.mxu0 0.0
    %3663 = vmatpush1.msra.mxu0 0.0
    %3664 = vmatprep.subr.mxu0 0.0
    %3665 = vmatpush1.msra.mxu0 0.0
    %3666 = vmatprep.subr.mxu0 0.0
    %3667 = vmatpush1.msra.mxu0 0.0
    %3668 = vmatprep.subr.mxu0 0.0
    %3669 = vmatpush1.msra.mxu0 0.0
    %3670 = vmatprep.subr.mxu0 0.0
    %3671 = vmatpush1.msra.mxu0 0.0
    %3672 = vmatprep.subr.mxu0 0.0
    %3673 = vmatpush1.msra.mxu0 0.0
    %3674 = vmatprep.subr.mxu0 0.0
    %3675 = vmatpush1.msra.mxu0 0.0
    %3676 = vmatprep.subr.mxu0 0.0
    %3677 = vmatpush1.msra.mxu0 0.0
    %3678 = vmatprep.subr.mxu0 0.0
    %3679 = vmatpush1.msra.mxu0 0.0
    %3680 = vmatprep.subr.mxu0 0.0
    %3681 = vmatpush1.msra.mxu0 0.0
    %3682 = vmatprep.subr.mxu0 0.0
    %3683 = vmatpush1.msra.mxu0 0.0
    %3684 = vmatprep.subr.mxu0 0.0
    %3685 = vmatpush1.msra.mxu0 0.0
    %3686 = vmatprep.mubr.f32.mxu0 0.0
    %3687 = vmatmul.mubr.f32.gmra.mrb[0].mxu0 %v3481
    %v3688 = vpop.f32.mrb[0].mxu0
    %v3689 = vadd.f32 0.0, %v3688
    %v3690 = vpop.f32.mrb[0].mxu0
    %v3691 = vadd.f32 0.0, %v3690
    %3692 = vdwg.mxu0
    %v3693 = vadd.f32 %v3483, %v3618
    %v3694 = vadd.f32 %v3484, %v3620
    %v3695 = vadd.f32 %v3485, %v3689
    %v3696 = vadd.f32 %v3486, %v3691
    %v3697 = vxor.u32 %v3693, 2147483648
    %v3698 = vmul.f32 %v3697, 1.442695
    %v3699 = vpow.pop %v3698
    %v3700 = vadd.f32 %v3699, 1.0
    %v3701 = vrcp.pop %v3700
    %v3702 = vmul.f32 1.0, %v3701
    %v3703 = vxor.u32 %v3694, 2147483648
    %v3704 = vmul.f32 %v3703, 1.442695
    %v3705 = vpow.pop %v3704
    %v3706 = vadd.f32 %v3705, 1.0
    %v3707 = vrcp.pop %v3706
    %v3708 = vmul.f32 1.0, %v3707
    %v3709 = vtanh.pop %v3695
    %v3710 = vxor.u32 %v3696, 2147483648
    %v3711 = vmul.f32 %v3710, 1.442695
    %v3712 = vpow.pop %v3711
    %v3713 = vadd.f32 %v3712, 1.0
    %v3714 = vrcp.pop %v3713
    %v3715 = vmul.f32 1.0, %v3714
    %v3716 = vmul.f32 %v3708, %v3479
    %v3717 = vmul.f32 %v3702, %v3709
    %v3718 = vadd.f32 %v3716, %v3717
    %v3719 = vtanh.pop %v3718
    %v3720 = vmul.f32 %v3715, %v3719
    %3721 = vst [vmem:[%s1440] sm:$0xff] %v3720
    %v3722 = vld [vmem:[%s1444] sm:$0xff]
    %v3723 = vld [vmem:[%s1444 + $0x8] sm:$0xff]
    %v3724 = vld [vmem:[%s1444 + $0x10] sm:$0xff]
    %v3725 = vld [vmem:[%s1444 + $0x18] sm:$0xff]
    %v3726 = vld [vmem:[#allocation12] sm:$0xff]
    %v3727 = vld [vmem:[#allocation12 + $0x8] sm:$0xff]
    %v3728 = vld [vmem:[#allocation12 + $0x10] sm:$0xff]
    %v3729 = vld [vmem:[#allocation12 + $0x18] sm:$0xff]
    %v3730 = vld [vmem:[#allocation12 + $0x20] sm:$0xff]
    %v3731 = vld [vmem:[#allocation12 + $0x28] sm:$0xff]
    %v3732 = vld [vmem:[#allocation12 + $0x30] sm:$0xff]
    %v3733 = vld [vmem:[#allocation12 + $0x38] sm:$0xff]
    %v3734 = vld [vmem:[#allocation12 + $0x40] sm:$0xff]
    %v3735 = vld [vmem:[#allocation12 + $0x48] sm:$0xff]
    %v3736 = vld [vmem:[#allocation12 + $0x50] sm:$0xff]
    %v3737 = vld [vmem:[#allocation12 + $0x58] sm:$0xff]
    %v3738 = vld [vmem:[#allocation12 + $0x60] sm:$0xff]
    %v3739 = vld [vmem:[#allocation12 + $0x68] sm:$0xff]
    %v3740 = vld [vmem:[#allocation12 + $0x70] sm:$0xff]
    %v3741 = vld [vmem:[#allocation12 + $0x78] sm:$0xff]
    %v3742 = vld [vmem:[#allocation12 + $0x80] sm:$0xff]
    %v3743 = vld [vmem:[#allocation12 + $0x88] sm:$0xff]
    %v3744 = vld [vmem:[#allocation12 + $0x90] sm:$0xff]
    %v3745 = vld [vmem:[#allocation12 + $0x98] sm:$0xff]
    %v3746 = vld [vmem:[#allocation12 + $0xa0] sm:$0xff]
    %v3747 = vld [vmem:[#allocation12 + $0xa8] sm:$0xff]
    %v3748 = vld [vmem:[#allocation12 + $0xb0] sm:$0xff]
    %v3749 = vld [vmem:[#allocation12 + $0xb8] sm:$0xff]
    %v3750 = vld [vmem:[#allocation12 + $0xc0] sm:$0xff]
    %v3751 = vld [vmem:[#allocation12 + $0xc8] sm:$0xff]
    %v3752 = vld [vmem:[#allocation12 + $0xd0] sm:$0xff]
    %v3753 = vld [vmem:[#allocation12 + $0xd8] sm:$0xff]
    %v3754 = vld [vmem:[#allocation12 + $0xe0] sm:$0xff]
    %v3755 = vld [vmem:[#allocation12 + $0xe8] sm:$0xff]
    %v3756 = vld [vmem:[#allocation12 + $0xf0] sm:$0xff]
    %v3757 = vld [vmem:[#allocation12 + $0xf8] sm:$0xff]
    %v3758 = vld [vmem:[#allocation12 + $0x100] sm:$0xff]
    %v3759 = vld [vmem:[#allocation12 + $0x108] sm:$0xff]
    %v3760 = vld [vmem:[#allocation12 + $0x110] sm:$0xff]
    %v3761 = vld [vmem:[#allocation12 + $0x118] sm:$0xff]
    %v3762 = vld [vmem:[#allocation12 + $0x120] sm:$0xff]
    %v3763 = vld [vmem:[#allocation12 + $0x128] sm:$0xff]
    %v3764 = vld [vmem:[#allocation12 + $0x130] sm:$0xff]
    %v3765 = vld [vmem:[#allocation12 + $0x138] sm:$0xff]
    %v3766 = vld [vmem:[#allocation12 + $0x140] sm:$0xff]
    %v3767 = vld [vmem:[#allocation12 + $0x148] sm:$0xff]
    %v3768 = vld [vmem:[#allocation12 + $0x150] sm:$0xff]
    %v3769 = vld [vmem:[#allocation12 + $0x158] sm:$0xff]
    %v3770 = vld [vmem:[#allocation12 + $0x160] sm:$0xff]
    %v3771 = vld [vmem:[#allocation12 + $0x168] sm:$0xff]
    %v3772 = vld [vmem:[#allocation12 + $0x170] sm:$0xff]
    %v3773 = vld [vmem:[#allocation12 + $0x178] sm:$0xff]
    %v3774 = vld [vmem:[#allocation12 + $0x180] sm:$0xff]
    %v3775 = vld [vmem:[#allocation12 + $0x188] sm:$0xff]
    %v3776 = vld [vmem:[#allocation12 + $0x190] sm:$0xff]
    %v3777 = vld [vmem:[#allocation12 + $0x198] sm:$0xff]
    %v3778 = vld [vmem:[#allocation12 + $0x1a0] sm:$0xff]
    %v3779 = vld [vmem:[#allocation12 + $0x1a8] sm:$0xff]
    %v3780 = vld [vmem:[#allocation12 + $0x1b0] sm:$0xff]
    %v3781 = vld [vmem:[#allocation12 + $0x1b8] sm:$0xff]
    %v3782 = vld [vmem:[#allocation12 + $0x1c0] sm:$0xff]
    %v3783 = vld [vmem:[#allocation12 + $0x1c8] sm:$0xff]
    %v3784 = vld [vmem:[#allocation12 + $0x1d0] sm:$0xff]
    %v3785 = vld [vmem:[#allocation12 + $0x1d8] sm:$0xff]
    %v3786 = vld [vmem:[#allocation12 + $0x1e0] sm:$0xff]
    %v3787 = vld [vmem:[#allocation12 + $0x1e8] sm:$0xff]
    %v3788 = vld [vmem:[#allocation12 + $0x1f0] sm:$0xff]
    %v3789 = vld [vmem:[#allocation12 + $0x1f8] sm:$0xff]
    %3790 = vmatprep.subr.mxu0 %v3727
    %3791 = vmatpush1.msra.mxu0 %v3726
    %3792 = vmatprep.subr.mxu0 %v3731
    %3793 = vmatpush1.msra.mxu0 %v3730
    %3794 = vmatprep.subr.mxu0 %v3735
    %3795 = vmatpush1.msra.mxu0 %v3734
    %3796 = vmatprep.subr.mxu0 %v3739
    %3797 = vmatpush1.msra.mxu0 %v3738
    %3798 = vmatprep.subr.mxu0 %v3743
    %3799 = vmatpush1.msra.mxu0 %v3742
    %3800 = vmatprep.subr.mxu0 %v3747
    %3801 = vmatpush1.msra.mxu0 %v3746
    %3802 = vmatprep.subr.mxu0 %v3751
    %3803 = vmatpush1.msra.mxu0 %v3750
    %3804 = vmatprep.subr.mxu0 %v3755
    %3805 = vmatpush1.msra.mxu0 %v3754
    %3806 = vmatprep.subr.mxu0 %v3759
    %3807 = vmatpush1.msra.mxu0 %v3758
    %3808 = vmatprep.subr.mxu0 %v3763
    %3809 = vmatpush1.msra.mxu0 %v3762
    %3810 = vmatprep.subr.mxu0 %v3767
    %3811 = vmatpush1.msra.mxu0 %v3766
    %3812 = vmatprep.subr.mxu0 %v3771
    %3813 = vmatpush1.msra.mxu0 %v3770
    %3814 = vmatprep.subr.mxu0 %v3775
    %3815 = vmatpush1.msra.mxu0 %v3774
    %3816 = vmatprep.subr.mxu0 %v3779
    %3817 = vmatpush1.msra.mxu0 %v3778
    %3818 = vmatprep.subr.mxu0 %v3783
    %3819 = vmatpush1.msra.mxu0 %v3782
    %3820 = vmatprep.subr.mxu0 %v3787
    %3821 = vmatpush1.msra.mxu0 %v3786
    %3822 = vmatprep.subr.mxu0 0.0
    %3823 = vmatpush1.msra.mxu0 0.0
    %3824 = vmatprep.subr.mxu0 0.0
    %3825 = vmatpush1.msra.mxu0 0.0
    %3826 = vmatprep.subr.mxu0 0.0
    %3827 = vmatpush1.msra.mxu0 0.0
    %3828 = vmatprep.subr.mxu0 0.0
    %3829 = vmatpush1.msra.mxu0 0.0
    %3830 = vmatprep.subr.mxu0 0.0
    %3831 = vmatpush1.msra.mxu0 0.0
    %3832 = vmatprep.subr.mxu0 0.0
    %3833 = vmatpush1.msra.mxu0 0.0
    %3834 = vmatprep.subr.mxu0 0.0
    %3835 = vmatpush1.msra.mxu0 0.0
    %3836 = vmatprep.subr.mxu0 0.0
    %3837 = vmatpush1.msra.mxu0 0.0
    %3838 = vmatprep.subr.mxu0 0.0
    %3839 = vmatpush1.msra.mxu0 0.0
    %3840 = vmatprep.subr.mxu0 0.0
    %3841 = vmatpush1.msra.mxu0 0.0
    %3842 = vmatprep.subr.mxu0 0.0
    %3843 = vmatpush1.msra.mxu0 0.0
    %3844 = vmatprep.subr.mxu0 0.0
    %3845 = vmatpush1.msra.mxu0 0.0
    %3846 = vmatprep.subr.mxu0 0.0
    %3847 = vmatpush1.msra.mxu0 0.0
    %3848 = vmatprep.subr.mxu0 0.0
    %3849 = vmatpush1.msra.mxu0 0.0
    %3850 = vmatprep.subr.mxu0 0.0
    %3851 = vmatpush1.msra.mxu0 0.0
    %3852 = vmatprep.subr.mxu0 0.0
    %3853 = vmatpush1.msra.mxu0 0.0
    %3854 = vmatprep.mubr.f32.mxu0 0.0
    %3855 = vmatmul.mubr.f32.gmra.mrb[0].mxu0 %v3720
    %v3856 = vpop.f32.mrb[0].mxu0
    %v3857 = vadd.f32 0.0, %v3856
    %v3858 = vpop.f32.mrb[0].mxu0
    %v3859 = vadd.f32 0.0, %v3858
    %3860 = vdwg.mxu0
    %3861 = vmatprep.subr.mxu0 %v3729
    %3862 = vmatpush1.msra.mxu0 %v3728
    %3863 = vmatprep.subr.mxu0 %v3733
    %3864 = vmatpush1.msra.mxu0 %v3732
    %3865 = vmatprep.subr.mxu0 %v3737
    %3866 = vmatpush1.msra.mxu0 %v3736
    %3867 = vmatprep.subr.mxu0 %v3741
    %3868 = vmatpush1.msra.mxu0 %v3740
    %3869 = vmatprep.subr.mxu0 %v3745
    %3870 = vmatpush1.msra.mxu0 %v3744
    %3871 = vmatprep.subr.mxu0 %v3749
    %3872 = vmatpush1.msra.mxu0 %v3748
    %3873 = vmatprep.subr.mxu0 %v3753
    %3874 = vmatpush1.msra.mxu0 %v3752
    %3875 = vmatprep.subr.mxu0 %v3757
    %3876 = vmatpush1.msra.mxu0 %v3756
    %3877 = vmatprep.subr.mxu0 %v3761
    %3878 = vmatpush1.msra.mxu0 %v3760
    %3879 = vmatprep.subr.mxu0 %v3765
    %3880 = vmatpush1.msra.mxu0 %v3764
    %3881 = vmatprep.subr.mxu0 %v3769
    %3882 = vmatpush1.msra.mxu0 %v3768
    %3883 = vmatprep.subr.mxu0 %v3773
    %3884 = vmatpush1.msra.mxu0 %v3772
    %3885 = vmatprep.subr.mxu0 %v3777
    %3886 = vmatpush1.msra.mxu0 %v3776
    %3887 = vmatprep.subr.mxu0 %v3781
    %3888 = vmatpush1.msra.mxu0 %v3780
    %3889 = vmatprep.subr.mxu0 %v3785
    %3890 = vmatpush1.msra.mxu0 %v3784
    %3891 = vmatprep.subr.mxu0 %v3789
    %3892 = vmatpush1.msra.mxu0 %v3788
    %3893 = vmatprep.subr.mxu0 0.0
    %3894 = vmatpush1.msra.mxu0 0.0
    %3895 = vmatprep.subr.mxu0 0.0
    %3896 = vmatpush1.msra.mxu0 0.0
    %3897 = vmatprep.subr.mxu0 0.0
    %3898 = vmatpush1.msra.mxu0 0.0
    %3899 = vmatprep.subr.mxu0 0.0
    %3900 = vmatpush1.msra.mxu0 0.0
    %3901 = vmatprep.subr.mxu0 0.0
    %3902 = vmatpush1.msra.mxu0 0.0
    %3903 = vmatprep.subr.mxu0 0.0
    %3904 = vmatpush1.msra.mxu0 0.0
    %3905 = vmatprep.subr.mxu0 0.0
    %3906 = vmatpush1.msra.mxu0 0.0
    %3907 = vmatprep.subr.mxu0 0.0
    %3908 = vmatpush1.msra.mxu0 0.0
    %3909 = vmatprep.subr.mxu0 0.0
    %3910 = vmatpush1.msra.mxu0 0.0
    %3911 = vmatprep.subr.mxu0 0.0
    %3912 = vmatpush1.msra.mxu0 0.0
    %3913 = vmatprep.subr.mxu0 0.0
    %3914 = vmatpush1.msra.mxu0 0.0
    %3915 = vmatprep.subr.mxu0 0.0
    %3916 = vmatpush1.msra.mxu0 0.0
    %3917 = vmatprep.subr.mxu0 0.0
    %3918 = vmatpush1.msra.mxu0 0.0
    %3919 = vmatprep.subr.mxu0 0.0
    %3920 = vmatpush1.msra.mxu0 0.0
    %3921 = vmatprep.subr.mxu0 0.0
    %3922 = vmatpush1.msra.mxu0 0.0
    %3923 = vmatprep.subr.mxu0 0.0
    %3924 = vmatpush1.msra.mxu0 0.0
    %3925 = vmatprep.mubr.f32.mxu0 0.0
    %3926 = vmatmul.mubr.f32.gmra.mrb[0].mxu0 %v3720
    %v3927 = vpop.f32.mrb[0].mxu0
    %v3928 = vadd.f32 0.0, %v3927
    %v3929 = vpop.f32.mrb[0].mxu0
    %v3930 = vadd.f32 0.0, %v3929
    %3931 = vdwg.mxu0
    %v3932 = vadd.f32 %v3722, %v3857
    %v3933 = vadd.f32 %v3723, %v3859
    %v3934 = vadd.f32 %v3724, %v3928
    %v3935 = vadd.f32 %v3725, %v3930
    %v3936 = vxor.u32 %v3932, 2147483648
    %v3937 = vmul.f32 %v3936, 1.442695
    %v3938 = vpow.pop %v3937
    %v3939 = vadd.f32 %v3938, 1.0
    %v3940 = vrcp.pop %v3939
    %v3941 = vmul.f32 1.0, %v3940
    %v3942 = vxor.u32 %v3933, 2147483648
    %v3943 = vmul.f32 %v3942, 1.442695
    %v3944 = vpow.pop %v3943
    %v3945 = vadd.f32 %v3944, 1.0
    %v3946 = vrcp.pop %v3945
    %v3947 = vmul.f32 1.0, %v3946
    %v3948 = vtanh.pop %v3934
    %v3949 = vxor.u32 %v3935, 2147483648
    %v3950 = vmul.f32 %v3949, 1.442695
    %v3951 = vpow.pop %v3950
    %v3952 = vadd.f32 %v3951, 1.0
    %v3953 = vrcp.pop %v3952
    %v3954 = vmul.f32 1.0, %v3953
    %v3955 = vmul.f32 %v3947, %v3718
    %v3956 = vmul.f32 %v3941, %v3948
    %v3957 = vadd.f32 %v3955, %v3956
    %v3958 = vtanh.pop %v3957
    %v3959 = vmul.f32 %v3954, %v3958
    %3960 = vst [vmem:[%s1683] sm:$0xff] %v3959
    %v3961 = vld [vmem:[%s1687] sm:$0xff]
    %v3962 = vld [vmem:[%s1687 + $0x8] sm:$0xff]
    %v3963 = vld [vmem:[%s1687 + $0x10] sm:$0xff]
    %v3964 = vld [vmem:[%s1687 + $0x18] sm:$0xff]
    %v3965 = vld [vmem:[#allocation12] sm:$0xff]
    %v3966 = vld [vmem:[#allocation12 + $0x8] sm:$0xff]
    %v3967 = vld [vmem:[#allocation12 + $0x10] sm:$0xff]
    %v3968 = vld [vmem:[#allocation12 + $0x18] sm:$0xff]
    %v3969 = vld [vmem:[#allocation12 + $0x20] sm:$0xff]
    %v3970 = vld [vmem:[#allocation12 + $0x28] sm:$0xff]
    %v3971 = vld [vmem:[#allocation12 + $0x30] sm:$0xff]
    %v3972 = vld [vmem:[#allocation12 + $0x38] sm:$0xff]
    %v3973 = vld [vmem:[#allocation12 + $0x40] sm:$0xff]
    %v3974 = vld [vmem:[#allocation12 + $0x48] sm:$0xff]
    %v3975 = vld [vmem:[#allocation12 + $0x50] sm:$0xff]
    %v3976 = vld [vmem:[#allocation12 + $0x58] sm:$0xff]
    %v3977 = vld [vmem:[#allocation12 + $0x60] sm:$0xff]
    %v3978 = vld [vmem:[#allocation12 + $0x68] sm:$0xff]
    %v3979 = vld [vmem:[#allocation12 + $0x70] sm:$0xff]
    %v3980 = vld [vmem:[#allocation12 + $0x78] sm:$0xff]
    %v3981 = vld [vmem:[#allocation12 + $0x80] sm:$0xff]
    %v3982 = vld [vmem:[#allocation12 + $0x88] sm:$0xff]
    %v3983 = vld [vmem:[#allocation12 + $0x90] sm:$0xff]
    %v3984 = vld [vmem:[#allocation12 + $0x98] sm:$0xff]
    %v3985 = vld [vmem:[#allocation12 + $0xa0] sm:$0xff]
    %v3986 = vld [vmem:[#allocation12 + $0xa8] sm:$0xff]
    %v3987 = vld [vmem:[#allocation12 + $0xb0] sm:$0xff]
    %v3988 = vld [vmem:[#allocation12 + $0xb8] sm:$0xff]
    %v3989 = vld [vmem:[#allocation12 + $0xc0] sm:$0xff]
    %v3990 = vld [vmem:[#allocation12 + $0xc8] sm:$0xff]
    %v3991 = vld [vmem:[#allocation12 + $0xd0] sm:$0xff]
    %v3992 = vld [vmem:[#allocation12 + $0xd8] sm:$0xff]
    %v3993 = vld [vmem:[#allocation12 + $0xe0] sm:$0xff]
    %v3994 = vld [vmem:[#allocation12 + $0xe8] sm:$0xff]
    %v3995 = vld [vmem:[#allocation12 + $0xf0] sm:$0xff]
    %v3996 = vld [vmem:[#allocation12 + $0xf8] sm:$0xff]
    %v3997 = vld [vmem:[#allocation12 + $0x100] sm:$0xff]
    %v3998 = vld [vmem:[#allocation12 + $0x108] sm:$0xff]
    %v3999 = vld [vmem:[#allocation12 + $0x110] sm:$0xff]
    %v4000 = vld [vmem:[#allocation12 + $0x118] sm:$0xff]
    %v4001 = vld [vmem:[#allocation12 + $0x120] sm:$0xff]
    %v4002 = vld [vmem:[#allocation12 + $0x128] sm:$0xff]
    %v4003 = vld [vmem:[#allocation12 + $0x130] sm:$0xff]
    %v4004 = vld [vmem:[#allocation12 + $0x138] sm:$0xff]
    %v4005 = vld [vmem:[#allocation12 + $0x140] sm:$0xff]
    %v4006 = vld [vmem:[#allocation12 + $0x148] sm:$0xff]
    %v4007 = vld [vmem:[#allocation12 + $0x150] sm:$0xff]
    %v4008 = vld [vmem:[#allocation12 + $0x158] sm:$0xff]
    %v4009 = vld [vmem:[#allocation12 + $0x160] sm:$0xff]
    %v4010 = vld [vmem:[#allocation12 + $0x168] sm:$0xff]
    %v4011 = vld [vmem:[#allocation12 + $0x170] sm:$0xff]
    %v4012 = vld [vmem:[#allocation12 + $0x178] sm:$0xff]
    %v4013 = vld [vmem:[#allocation12 + $0x180] sm:$0xff]
    %v4014 = vld [vmem:[#allocation12 + $0x188] sm:$0xff]
    %v4015 = vld [vmem:[#allocation12 + $0x190] sm:$0xff]
    %v4016 = vld [vmem:[#allocation12 + $0x198] sm:$0xff]
    %v4017 = vld [vmem:[#allocation12 + $0x1a0] sm:$0xff]
    %v4018 = vld [vmem:[#allocation12 + $0x1a8] sm:$0xff]
    %v4019 = vld [vmem:[#allocation12 + $0x1b0] sm:$0xff]
    %v4020 = vld [vmem:[#allocation12 + $0x1b8] sm:$0xff]
    %v4021 = vld [vmem:[#allocation12 + $0x1c0] sm:$0xff]
    %v4022 = vld [vmem:[#allocation12 + $0x1c8] sm:$0xff]
    %v4023 = vld [vmem:[#allocation12 + $0x1d0] sm:$0xff]
    %v4024 = vld [vmem:[#allocation12 + $0x1d8] sm:$0xff]
    %v4025 = vld [vmem:[#allocation12 + $0x1e0] sm:$0xff]
    %v4026 = vld [vmem:[#allocation12 + $0x1e8] sm:$0xff]
    %v4027 = vld [vmem:[#allocation12 + $0x1f0] sm:$0xff]
    %v4028 = vld [vmem:[#allocation12 + $0x1f8] sm:$0xff]
    %4029 = vmatprep.subr.mxu0 %v3966
    %4030 = vmatpush1.msra.mxu0 %v3965
    %4031 = vmatprep.subr.mxu0 %v3970
    %4032 = vmatpush1.msra.mxu0 %v3969
    %4033 = vmatprep.subr.mxu0 %v3974
    %4034 = vmatpush1.msra.mxu0 %v3973
    %4035 = vmatprep.subr.mxu0 %v3978
    %4036 = vmatpush1.msra.mxu0 %v3977
    %4037 = vmatprep.subr.mxu0 %v3982
    %4038 = vmatpush1.msra.mxu0 %v3981
    %4039 = vmatprep.subr.mxu0 %v3986
    %4040 = vmatpush1.msra.mxu0 %v3985
    %4041 = vmatprep.subr.mxu0 %v3990
    %4042 = vmatpush1.msra.mxu0 %v3989
    %4043 = vmatprep.subr.mxu0 %v3994
    %4044 = vmatpush1.msra.mxu0 %v3993
    %4045 = vmatprep.subr.mxu0 %v3998
    %4046 = vmatpush1.msra.mxu0 %v3997
    %4047 = vmatprep.subr.mxu0 %v4002
    %4048 = vmatpush1.msra.mxu0 %v4001
    %4049 = vmatprep.subr.mxu0 %v4006
    %4050 = vmatpush1.msra.mxu0 %v4005
    %4051 = vmatprep.subr.mxu0 %v4010
    %4052 = vmatpush1.msra.mxu0 %v4009
    %4053 = vmatprep.subr.mxu0 %v4014
    %4054 = vmatpush1.msra.mxu0 %v4013
    %4055 = vmatprep.subr.mxu0 %v4018
    %4056 = vmatpush1.msra.mxu0 %v4017
    %4057 = vmatprep.subr.mxu0 %v4022
    %4058 = vmatpush1.msra.mxu0 %v4021
    %4059 = vmatprep.subr.mxu0 %v4026
    %4060 = vmatpush1.msra.mxu0 %v4025
    %4061 = vmatprep.subr.mxu0 0.0
    %4062 = vmatpush1.msra.mxu0 0.0
    %4063 = vmatprep.subr.mxu0 0.0
    %4064 = vmatpush1.msra.mxu0 0.0
    %4065 = vmatprep.subr.mxu0 0.0
    %4066 = vmatpush1.msra.mxu0 0.0
    %4067 = vmatprep.subr.mxu0 0.0
    %4068 = vmatpush1.msra.mxu0 0.0
    %4069 = vmatprep.subr.mxu0 0.0
    %4070 = vmatpush1.msra.mxu0 0.0
    %4071 = vmatprep.subr.mxu0 0.0
    %4072 = vmatpush1.msra.mxu0 0.0
    %4073 = vmatprep.subr.mxu0 0.0
    %4074 = vmatpush1.msra.mxu0 0.0
    %4075 = vmatprep.subr.mxu0 0.0
    %4076 = vmatpush1.msra.mxu0 0.0
    %4077 = vmatprep.subr.mxu0 0.0
    %4078 = vmatpush1.msra.mxu0 0.0
    %4079 = vmatprep.subr.mxu0 0.0
    %4080 = vmatpush1.msra.mxu0 0.0
    %4081 = vmatprep.subr.mxu0 0.0
    %4082 = vmatpush1.msra.mxu0 0.0
    %4083 = vmatprep.subr.mxu0 0.0
    %4084 = vmatpush1.msra.mxu0 0.0
    %4085 = vmatprep.subr.mxu0 0.0
    %4086 = vmatpush1.msra.mxu0 0.0
    %4087 = vmatprep.subr.mxu0 0.0
    %4088 = vmatpush1.msra.mxu0 0.0
    %4089 = vmatprep.subr.mxu0 0.0
    %4090 = vmatpush1.msra.mxu0 0.0
    %4091 = vmatprep.subr.mxu0 0.0
    %4092 = vmatpush1.msra.mxu0 0.0
    %4093 = vmatprep.mubr.f32.mxu0 0.0
    %4094 = vmatmul.mubr.f32.gmra.mrb[0].mxu0 %v3959
    %v4095 = vpop.f32.mrb[0].mxu0
    %v4096 = vadd.f32 0.0, %v4095
    %v4097 = vpop.f32.mrb[0].mxu0
    %v4098 = vadd.f32 0.0, %v4097
    %4099 = vdwg.mxu0
    %4100 = vmatprep.subr.mxu0 %v3968
    %4101 = vmatpush1.msra.mxu0 %v3967
    %4102 = vmatprep.subr.mxu0 %v3972
    %4103 = vmatpush1.msra.mxu0 %v3971
    %4104 = vmatprep.subr.mxu0 %v3976
    %4105 = vmatpush1.msra.mxu0 %v3975
    %4106 = vmatprep.subr.mxu0 %v3980
    %4107 = vmatpush1.msra.mxu0 %v3979
    %4108 = vmatprep.subr.mxu0 %v3984
    %4109 = vmatpush1.msra.mxu0 %v3983
    %4110 = vmatprep.subr.mxu0 %v3988
    %4111 = vmatpush1.msra.mxu0 %v3987
    %4112 = vmatprep.subr.mxu0 %v3992
    %4113 = vmatpush1.msra.mxu0 %v3991
    %4114 = vmatprep.subr.mxu0 %v3996
    %4115 = vmatpush1.msra.mxu0 %v3995
    %4116 = vmatprep.subr.mxu0 %v4000
    %4117 = vmatpush1.msra.mxu0 %v3999
    %4118 = vmatprep.subr.mxu0 %v4004
    %4119 = vmatpush1.msra.mxu0 %v4003
    %4120 = vmatprep.subr.mxu0 %v4008
    %4121 = vmatpush1.msra.mxu0 %v4007
    %4122 = vmatprep.subr.mxu0 %v4012
    %4123 = vmatpush1.msra.mxu0 %v4011
    %4124 = vmatprep.subr.mxu0 %v4016
    %4125 = vmatpush1.msra.mxu0 %v4015
    %4126 = vmatprep.subr.mxu0 %v4020
    %4127 = vmatpush1.msra.mxu0 %v4019
    %4128 = vmatprep.subr.mxu0 %v4024
    %4129 = vmatpush1.msra.mxu0 %v4023
    %4130 = vmatprep.subr.mxu0 %v4028
    %4131 = vmatpush1.msra.mxu0 %v4027
    %4132 = vmatprep.subr.mxu0 0.0
    %4133 = vmatpush1.msra.mxu0 0.0
    %4134 = vmatprep.subr.mxu0 0.0
    %4135 = vmatpush1.msra.mxu0 0.0
    %4136 = vmatprep.subr.mxu0 0.0
    %4137 = vmatpush1.msra.mxu0 0.0
    %4138 = vmatprep.subr.mxu0 0.0
    %4139 = vmatpush1.msra.mxu0 0.0
    %4140 = vmatprep.subr.mxu0 0.0
    %4141 = vmatpush1.msra.mxu0 0.0
    %4142 = vmatprep.subr.mxu0 0.0
    %4143 = vmatpush1.msra.mxu0 0.0
    %4144 = vmatprep.subr.mxu0 0.0
    %4145 = vmatpush1.msra.mxu0 0.0
    %4146 = vmatprep.subr.mxu0 0.0
    %4147 = vmatpush1.msra.mxu0 0.0
    %4148 = vmatprep.subr.mxu0 0.0
    %4149 = vmatpush1.msra.mxu0 0.0
    %4150 = vmatprep.subr.mxu0 0.0
    %4151 = vmatpush1.msra.mxu0 0.0
    %4152 = vmatprep.subr.mxu0 0.0
    %4153 = vmatpush1.msra.mxu0 0.0
    %4154 = vmatprep.subr.mxu0 0.0
    %4155 = vmatpush1.msra.mxu0 0.0
    %4156 = vmatprep.subr.mxu0 0.0
    %4157 = vmatpush1.msra.mxu0 0.0
    %4158 = vmatprep.subr.mxu0 0.0
    %4159 = vmatpush1.msra.mxu0 0.0
    %4160 = vmatprep.subr.mxu0 0.0
    %4161 = vmatpush1.msra.mxu0 0.0
    %4162 = vmatprep.subr.mxu0 0.0
    %4163 = vmatpush1.msra.mxu0 0.0
    %4164 = vmatprep.mubr.f32.mxu0 0.0
    %4165 = vmatmul.mubr.f32.gmra.mrb[0].mxu0 %v3959
    %v4166 = vpop.f32.mrb[0].mxu0
    %v4167 = vadd.f32 0.0, %v4166
    %v4168 = vpop.f32.mrb[0].mxu0
    %v4169 = vadd.f32 0.0, %v4168
    %4170 = vdwg.mxu0
    %v4171 = vadd.f32 %v3961, %v4096
    %v4172 = vadd.f32 %v3962, %v4098
    %v4173 = vadd.f32 %v3963, %v4167
    %v4174 = vadd.f32 %v3964, %v4169
    %v4175 = vxor.u32 %v4171, 2147483648
    %v4176 = vmul.f32 %v4175, 1.442695
    %v4177 = vpow.pop %v4176
    %v4178 = vadd.f32 %v4177, 1.0
    %v4179 = vrcp.pop %v4178
    %v4180 = vmul.f32 1.0, %v4179
    %v4181 = vxor.u32 %v4172, 2147483648
    %v4182 = vmul.f32 %v4181, 1.442695
    %v4183 = vpow.pop %v4182
    %v4184 = vadd.f32 %v4183, 1.0
    %v4185 = vrcp.pop %v4184
    %v4186 = vmul.f32 1.0, %v4185
    %v4187 = vtanh.pop %v4173
    %v4188 = vxor.u32 %v4174, 2147483648
    %v4189 = vmul.f32 %v4188, 1.442695
    %v4190 = vpow.pop %v4189
    %v4191 = vadd.f32 %v4190, 1.0
    %v4192 = vrcp.pop %v4191
    %v4193 = vmul.f32 1.0, %v4192
    %v4194 = vmul.f32 %v4186, %v3957
    %v4195 = vmul.f32 %v4180, %v4187
    %v4196 = vadd.f32 %v4194, %v4195
    %v4197 = vtanh.pop %v4196
    %v4198 = vmul.f32 %v4193, %v4197
    %4199 = vst [vmem:[%s1926] sm:$0xff] %v4198
    %v4200 = vld [vmem:[%s1930] sm:$0xff]
    %v4201 = vld [vmem:[%s1930 + $0x8] sm:$0xff]
    %v4202 = vld [vmem:[%s1930 + $0x10] sm:$0xff]
    %v4203 = vld [vmem:[%s1930 + $0x18] sm:$0xff]
    %v4204 = vld [vmem:[#allocation12] sm:$0xff]
    %v4205 = vld [vmem:[#allocation12 + $0x8] sm:$0xff]
    %v4206 = vld [vmem:[#allocation12 + $0x10] sm:$0xff]
    %v4207 = vld [vmem:[#allocation12 + $0x18] sm:$0xff]
    %v4208 = vld [vmem:[#allocation12 + $0x20] sm:$0xff]
    %v4209 = vld [vmem:[#allocation12 + $0x28] sm:$0xff]
    %v4210 = vld [vmem:[#allocation12 + $0x30] sm:$0xff]
    %v4211 = vld [vmem:[#allocation12 + $0x38] sm:$0xff]
    %v4212 = vld [vmem:[#allocation12 + $0x40] sm:$0xff]
    %v4213 = vld [vmem:[#allocation12 + $0x48] sm:$0xff]
    %v4214 = vld [vmem:[#allocation12 + $0x50] sm:$0xff]
    %v4215 = vld [vmem:[#allocation12 + $0x58] sm:$0xff]
    %v4216 = vld [vmem:[#allocation12 + $0x60] sm:$0xff]
    %v4217 = vld [vmem:[#allocation12 + $0x68] sm:$0xff]
    %v4218 = vld [vmem:[#allocation12 + $0x70] sm:$0xff]
    %v4219 = vld [vmem:[#allocation12 + $0x78] sm:$0xff]
    %v4220 = vld [vmem:[#allocation12 + $0x80] sm:$0xff]
    %v4221 = vld [vmem:[#allocation12 + $0x88] sm:$0xff]
    %v4222 = vld [vmem:[#allocation12 + $0x90] sm:$0xff]
    %v4223 = vld [vmem:[#allocation12 + $0x98] sm:$0xff]
    %v4224 = vld [vmem:[#allocation12 + $0xa0] sm:$0xff]
    %v4225 = vld [vmem:[#allocation12 + $0xa8] sm:$0xff]
    %v4226 = vld [vmem:[#allocation12 + $0xb0] sm:$0xff]
    %v4227 = vld [vmem:[#allocation12 + $0xb8] sm:$0xff]
    %v4228 = vld [vmem:[#allocation12 + $0xc0] sm:$0xff]
    %v4229 = vld [vmem:[#allocation12 + $0xc8] sm:$0xff]
    %v4230 = vld [vmem:[#allocation12 + $0xd0] sm:$0xff]
    %v4231 = vld [vmem:[#allocation12 + $0xd8] sm:$0xff]
    %v4232 = vld [vmem:[#allocation12 + $0xe0] sm:$0xff]
    %v4233 = vld [vmem:[#allocation12 + $0xe8] sm:$0xff]
    %v4234 = vld [vmem:[#allocation12 + $0xf0] sm:$0xff]
    %v4235 = vld [vmem:[#allocation12 + $0xf8] sm:$0xff]
    %v4236 = vld [vmem:[#allocation12 + $0x100] sm:$0xff]
    %v4237 = vld [vmem:[#allocation12 + $0x108] sm:$0xff]
    %v4238 = vld [vmem:[#allocation12 + $0x110] sm:$0xff]
    %v4239 = vld [vmem:[#allocation12 + $0x118] sm:$0xff]
    %v4240 = vld [vmem:[#allocation12 + $0x120] sm:$0xff]
    %v4241 = vld [vmem:[#allocation12 + $0x128] sm:$0xff]
    %v4242 = vld [vmem:[#allocation12 + $0x130] sm:$0xff]
    %v4243 = vld [vmem:[#allocation12 + $0x138] sm:$0xff]
    %v4244 = vld [vmem:[#allocation12 + $0x140] sm:$0xff]
    %v4245 = vld [vmem:[#allocation12 + $0x148] sm:$0xff]
    %v4246 = vld [vmem:[#allocation12 + $0x150] sm:$0xff]
    %v4247 = vld [vmem:[#allocation12 + $0x158] sm:$0xff]
    %v4248 = vld [vmem:[#allocation12 + $0x160] sm:$0xff]
    %v4249 = vld [vmem:[#allocation12 + $0x168] sm:$0xff]
    %v4250 = vld [vmem:[#allocation12 + $0x170] sm:$0xff]
    %v4251 = vld [vmem:[#allocation12 + $0x178] sm:$0xff]
    %v4252 = vld [vmem:[#allocation12 + $0x180] sm:$0xff]
    %v4253 = vld [vmem:[#allocation12 + $0x188] sm:$0xff]
    %v4254 = vld [vmem:[#allocation12 + $0x190] sm:$0xff]
    %v4255 = vld [vmem:[#allocation12 + $0x198] sm:$0xff]
    %v4256 = vld [vmem:[#allocation12 + $0x1a0] sm:$0xff]
    %v4257 = vld [vmem:[#allocation12 + $0x1a8] sm:$0xff]
    %v4258 = vld [vmem:[#allocation12 + $0x1b0] sm:$0xff]
    %v4259 = vld [vmem:[#allocation12 + $0x1b8] sm:$0xff]
    %v4260 = vld [vmem:[#allocation12 + $0x1c0] sm:$0xff]
    %v4261 = vld [vmem:[#allocation12 + $0x1c8] sm:$0xff]
    %v4262 = vld [vmem:[#allocation12 + $0x1d0] sm:$0xff]
    %v4263 = vld [vmem:[#allocation12 + $0x1d8] sm:$0xff]
    %v4264 = vld [vmem:[#allocation12 + $0x1e0] sm:$0xff]
    %v4265 = vld [vmem:[#allocation12 + $0x1e8] sm:$0xff]
    %v4266 = vld [vmem:[#allocation12 + $0x1f0] sm:$0xff]
    %v4267 = vld [vmem:[#allocation12 + $0x1f8] sm:$0xff]
    %4268 = vmatprep.subr.mxu0 %v4205
    %4269 = vmatpush1.msra.mxu0 %v4204
    %4270 = vmatprep.subr.mxu0 %v4209
    %4271 = vmatpush1.msra.mxu0 %v4208
    %4272 = vmatprep.subr.mxu0 %v4213
    %4273 = vmatpush1.msra.mxu0 %v4212
    %4274 = vmatprep.subr.mxu0 %v4217
    %4275 = vmatpush1.msra.mxu0 %v4216
    %4276 = vmatprep.subr.mxu0 %v4221
    %4277 = vmatpush1.msra.mxu0 %v4220
    %4278 = vmatprep.subr.mxu0 %v4225
    %4279 = vmatpush1.msra.mxu0 %v4224
    %4280 = vmatprep.subr.mxu0 %v4229
    %4281 = vmatpush1.msra.mxu0 %v4228
    %4282 = vmatprep.subr.mxu0 %v4233
    %4283 = vmatpush1.msra.mxu0 %v4232
    %4284 = vmatprep.subr.mxu0 %v4237
    %4285 = vmatpush1.msra.mxu0 %v4236
    %4286 = vmatprep.subr.mxu0 %v4241
    %4287 = vmatpush1.msra.mxu0 %v4240
    %4288 = vmatprep.subr.mxu0 %v4245
    %4289 = vmatpush1.msra.mxu0 %v4244
    %4290 = vmatprep.subr.mxu0 %v4249
    %4291 = vmatpush1.msra.mxu0 %v4248
    %4292 = vmatprep.subr.mxu0 %v4253
    %4293 = vmatpush1.msra.mxu0 %v4252
    %4294 = vmatprep.subr.mxu0 %v4257
    %4295 = vmatpush1.msra.mxu0 %v4256
    %4296 = vmatprep.subr.mxu0 %v4261
    %4297 = vmatpush1.msra.mxu0 %v4260
    %4298 = vmatprep.subr.mxu0 %v4265
    %4299 = vmatpush1.msra.mxu0 %v4264
    %4300 = vmatprep.subr.mxu0 0.0
    %4301 = vmatpush1.msra.mxu0 0.0
    %4302 = vmatprep.subr.mxu0 0.0
    %4303 = vmatpush1.msra.mxu0 0.0
    %4304 = vmatprep.subr.mxu0 0.0
    %4305 = vmatpush1.msra.mxu0 0.0
    %4306 = vmatprep.subr.mxu0 0.0
    %4307 = vmatpush1.msra.mxu0 0.0
    %4308 = vmatprep.subr.mxu0 0.0
    %4309 = vmatpush1.msra.mxu0 0.0
    %4310 = vmatprep.subr.mxu0 0.0
    %4311 = vmatpush1.msra.mxu0 0.0
    %4312 = vmatprep.subr.mxu0 0.0
    %4313 = vmatpush1.msra.mxu0 0.0
    %4314 = vmatprep.subr.mxu0 0.0
    %4315 = vmatpush1.msra.mxu0 0.0
    %4316 = vmatprep.subr.mxu0 0.0
    %4317 = vmatpush1.msra.mxu0 0.0
    %4318 = vmatprep.subr.mxu0 0.0
    %4319 = vmatpush1.msra.mxu0 0.0
    %4320 = vmatprep.subr.mxu0 0.0
    %4321 = vmatpush1.msra.mxu0 0.0
    %4322 = vmatprep.subr.mxu0 0.0
    %4323 = vmatpush1.msra.mxu0 0.0
    %4324 = vmatprep.subr.mxu0 0.0
    %4325 = vmatpush1.msra.mxu0 0.0
    %4326 = vmatprep.subr.mxu0 0.0
    %4327 = vmatpush1.msra.mxu0 0.0
    %4328 = vmatprep.subr.mxu0 0.0
    %4329 = vmatpush1.msra.mxu0 0.0
    %4330 = vmatprep.subr.mxu0 0.0
    %4331 = vmatpush1.msra.mxu0 0.0
    %4332 = vmatprep.mubr.f32.mxu0 0.0
    %4333 = vmatmul.mubr.f32.gmra.mrb[0].mxu0 %v4198
    %v4334 = vpop.f32.mrb[0].mxu0
    %v4335 = vadd.f32 0.0, %v4334
    %v4336 = vpop.f32.mrb[0].mxu0
    %v4337 = vadd.f32 0.0, %v4336
    %4338 = vdwg.mxu0
    %4339 = vmatprep.subr.mxu0 %v4207
    %4340 = vmatpush1.msra.mxu0 %v4206
    %4341 = vmatprep.subr.mxu0 %v4211
    %4342 = vmatpush1.msra.mxu0 %v4210
    %4343 = vmatprep.subr.mxu0 %v4215
    %4344 = vmatpush1.msra.mxu0 %v4214
    %4345 = vmatprep.subr.mxu0 %v4219
    %4346 = vmatpush1.msra.mxu0 %v4218
    %4347 = vmatprep.subr.mxu0 %v4223
    %4348 = vmatpush1.msra.mxu0 %v4222
    %4349 = vmatprep.subr.mxu0 %v4227
    %4350 = vmatpush1.msra.mxu0 %v4226
    %4351 = vmatprep.subr.mxu0 %v4231
    %4352 = vmatpush1.msra.mxu0 %v4230
    %4353 = vmatprep.subr.mxu0 %v4235
    %4354 = vmatpush1.msra.mxu0 %v4234
    %4355 = vmatprep.subr.mxu0 %v4239
    %4356 = vmatpush1.msra.mxu0 %v4238
    %4357 = vmatprep.subr.mxu0 %v4243
    %4358 = vmatpush1.msra.mxu0 %v4242
    %4359 = vmatprep.subr.mxu0 %v4247
    %4360 = vmatpush1.msra.mxu0 %v4246
    %4361 = vmatprep.subr.mxu0 %v4251
    %4362 = vmatpush1.msra.mxu0 %v4250
    %4363 = vmatprep.subr.mxu0 %v4255
    %4364 = vmatpush1.msra.mxu0 %v4254
    %4365 = vmatprep.subr.mxu0 %v4259
    %4366 = vmatpush1.msra.mxu0 %v4258
    %4367 = vmatprep.subr.mxu0 %v4263
    %4368 = vmatpush1.msra.mxu0 %v4262
    %4369 = vmatprep.subr.mxu0 %v4267
    %4370 = vmatpush1.msra.mxu0 %v4266
    %4371 = vmatprep.subr.mxu0 0.0
    %4372 = vmatpush1.msra.mxu0 0.0
    %4373 = vmatprep.subr.mxu0 0.0
    %4374 = vmatpush1.msra.mxu0 0.0
    %4375 = vmatprep.subr.mxu0 0.0
    %4376 = vmatpush1.msra.mxu0 0.0
    %4377 = vmatprep.subr.mxu0 0.0
    %4378 = vmatpush1.msra.mxu0 0.0
    %4379 = vmatprep.subr.mxu0 0.0
    %4380 = vmatpush1.msra.mxu0 0.0
    %4381 = vmatprep.subr.mxu0 0.0
    %4382 = vmatpush1.msra.mxu0 0.0
    %4383 = vmatprep.subr.mxu0 0.0
    %4384 = vmatpush1.msra.mxu0 0.0
    %4385 = vmatprep.subr.mxu0 0.0
    %4386 = vmatpush1.msra.mxu0 0.0
    %4387 = vmatprep.subr.mxu0 0.0
    %4388 = vmatpush1.msra.mxu0 0.0
    %4389 = vmatprep.subr.mxu0 0.0
    %4390 = vmatpush1.msra.mxu0 0.0
    %4391 = vmatprep.subr.mxu0 0.0
    %4392 = vmatpush1.msra.mxu0 0.0
    %4393 = vmatprep.subr.mxu0 0.0
    %4394 = vmatpush1.msra.mxu0 0.0
    %4395 = vmatprep.subr.mxu0 0.0
    %4396 = vmatpush1.msra.mxu0 0.0
    %4397 = vmatprep.subr.mxu0 0.0
    %4398 = vmatpush1.msra.mxu0 0.0
    %4399 = vmatprep.subr.mxu0 0.0
    %4400 = vmatpush1.msra.mxu0 0.0
    %4401 = vmatprep.subr.mxu0 0.0
    %4402 = vmatpush1.msra.mxu0 0.0
    %4403 = vmatprep.mubr.f32.mxu0 0.0
    %4404 = vmatmul.mubr.f32.gmra.mrb[0].mxu0 %v4198
    %v4405 = vpop.f32.mrb[0].mxu0
    %v4406 = vadd.f32 0.0, %v4405
    %v4407 = vpop.f32.mrb[0].mxu0
    %v4408 = vadd.f32 0.0, %v4407
    %4409 = vdwg.mxu0
    %v4410 = vadd.f32 %v4200, %v4335
    %v4411 = vadd.f32 %v4201, %v4337
    %v4412 = vadd.f32 %v4202, %v4406
    %v4413 = vadd.f32 %v4203, %v4408
    %v4414 = vxor.u32 %v4410, 2147483648
    %v4415 = vmul.f32 %v4414, 1.442695
    %v4416 = vpow.pop %v4415
    %v4417 = vadd.f32 %v4416, 1.0
    %v4418 = vrcp.pop %v4417
    %v4419 = vmul.f32 1.0, %v4418
    %v4420 = vxor.u32 %v4411, 2147483648
    %v4421 = vmul.f32 %v4420, 1.442695
    %v4422 = vpow.pop %v4421
    %v4423 = vadd.f32 %v4422, 1.0
    %v4424 = vrcp.pop %v4423
    %v4425 = vmul.f32 1.0, %v4424
    %v4426 = vtanh.pop %v4412
    %v4427 = vxor.u32 %v4413, 2147483648
    %v4428 = vmul.f32 %v4427, 1.442695
    %v4429 = vpow.pop %v4428
    %v4430 = vadd.f32 %v4429, 1.0
    %v4431 = vrcp.pop %v4430
    %v4432 = vmul.f32 1.0, %v4431
    %v4433 = vmul.f32 %v4425, %v4196
    %v4434 = vmul.f32 %v4419, %v4426
    %v4435 = vadd.f32 %v4433, %v4434
    %v4436 = vtanh.pop %v4435
    %v4437 = vmul.f32 %v4432, %v4436
    %4438 = vst [vmem:[%s2169] sm:$0xff] %v4437
    %v4439 = vld [vmem:[%s2173] sm:$0xff]
    %v4440 = vld [vmem:[%s2173 + $0x8] sm:$0xff]
    %v4441 = vld [vmem:[%s2173 + $0x10] sm:$0xff]
    %v4442 = vld [vmem:[%s2173 + $0x18] sm:$0xff]
    %v4443 = vld [vmem:[#allocation12] sm:$0xff]
    %v4444 = vld [vmem:[#allocation12 + $0x8] sm:$0xff]
    %v4445 = vld [vmem:[#allocation12 + $0x10] sm:$0xff]
    %v4446 = vld [vmem:[#allocation12 + $0x18] sm:$0xff]
    %v4447 = vld [vmem:[#allocation12 + $0x20] sm:$0xff]
    %v4448 = vld [vmem:[#allocation12 + $0x28] sm:$0xff]
    %v4449 = vld [vmem:[#allocation12 + $0x30] sm:$0xff]
    %v4450 = vld [vmem:[#allocation12 + $0x38] sm:$0xff]
    %v4451 = vld [vmem:[#allocation12 + $0x40] sm:$0xff]
    %v4452 = vld [vmem:[#allocation12 + $0x48] sm:$0xff]
    %v4453 = vld [vmem:[#allocation12 + $0x50] sm:$0xff]
    %v4454 = vld [vmem:[#allocation12 + $0x58] sm:$0xff]
    %v4455 = vld [vmem:[#allocation12 + $0x60] sm:$0xff]
    %v4456 = vld [vmem:[#allocation12 + $0x68] sm:$0xff]
    %v4457 = vld [vmem:[#allocation12 + $0x70] sm:$0xff]
    %v4458 = vld [vmem:[#allocation12 + $0x78] sm:$0xff]
    %v4459 = vld [vmem:[#allocation12 + $0x80] sm:$0xff]
    %v4460 = vld [vmem:[#allocation12 + $0x88] sm:$0xff]
    %v4461 = vld [vmem:[#allocation12 + $0x90] sm:$0xff]
    %v4462 = vld [vmem:[#allocation12 + $0x98] sm:$0xff]
    %v4463 = vld [vmem:[#allocation12 + $0xa0] sm:$0xff]
    %v4464 = vld [vmem:[#allocation12 + $0xa8] sm:$0xff]
    %v4465 = vld [vmem:[#allocation12 + $0xb0] sm:$0xff]
    %v4466 = vld [vmem:[#allocation12 + $0xb8] sm:$0xff]
    %v4467 = vld [vmem:[#allocation12 + $0xc0] sm:$0xff]
    %v4468 = vld [vmem:[#allocation12 + $0xc8] sm:$0xff]
    %v4469 = vld [vmem:[#allocation12 + $0xd0] sm:$0xff]
    %v4470 = vld [vmem:[#allocation12 + $0xd8] sm:$0xff]
    %v4471 = vld [vmem:[#allocation12 + $0xe0] sm:$0xff]
    %v4472 = vld [vmem:[#allocation12 + $0xe8] sm:$0xff]
    %v4473 = vld [vmem:[#allocation12 + $0xf0] sm:$0xff]
    %v4474 = vld [vmem:[#allocation12 + $0xf8] sm:$0xff]
    %v4475 = vld [vmem:[#allocation12 + $0x100] sm:$0xff]
    %v4476 = vld [vmem:[#allocation12 + $0x108] sm:$0xff]
    %v4477 = vld [vmem:[#allocation12 + $0x110] sm:$0xff]
    %v4478 = vld [vmem:[#allocation12 + $0x118] sm:$0xff]
    %v4479 = vld [vmem:[#allocation12 + $0x120] sm:$0xff]
    %v4480 = vld [vmem:[#allocation12 + $0x128] sm:$0xff]
    %v4481 = vld [vmem:[#allocation12 + $0x130] sm:$0xff]
    %v4482 = vld [vmem:[#allocation12 + $0x138] sm:$0xff]
    %v4483 = vld [vmem:[#allocation12 + $0x140] sm:$0xff]
    %v4484 = vld [vmem:[#allocation12 + $0x148] sm:$0xff]
    %v4485 = vld [vmem:[#allocation12 + $0x150] sm:$0xff]
    %v4486 = vld [vmem:[#allocation12 + $0x158] sm:$0xff]
    %v4487 = vld [vmem:[#allocation12 + $0x160] sm:$0xff]
    %v4488 = vld [vmem:[#allocation12 + $0x168] sm:$0xff]
    %v4489 = vld [vmem:[#allocation12 + $0x170] sm:$0xff]
    %v4490 = vld [vmem:[#allocation12 + $0x178] sm:$0xff]
    %v4491 = vld [vmem:[#allocation12 + $0x180] sm:$0xff]
    %v4492 = vld [vmem:[#allocation12 + $0x188] sm:$0xff]
    %v4493 = vld [vmem:[#allocation12 + $0x190] sm:$0xff]
    %v4494 = vld [vmem:[#allocation12 + $0x198] sm:$0xff]
    %v4495 = vld [vmem:[#allocation12 + $0x1a0] sm:$0xff]
    %v4496 = vld [vmem:[#allocation12 + $0x1a8] sm:$0xff]
    %v4497 = vld [vmem:[#allocation12 + $0x1b0] sm:$0xff]
    %v4498 = vld [vmem:[#allocation12 + $0x1b8] sm:$0xff]
    %v4499 = vld [vmem:[#allocation12 + $0x1c0] sm:$0xff]
    %v4500 = vld [vmem:[#allocation12 + $0x1c8] sm:$0xff]
    %v4501 = vld [vmem:[#allocation12 + $0x1d0] sm:$0xff]
    %v4502 = vld [vmem:[#allocation12 + $0x1d8] sm:$0xff]
    %v4503 = vld [vmem:[#allocation12 + $0x1e0] sm:$0xff]
    %v4504 = vld [vmem:[#allocation12 + $0x1e8] sm:$0xff]
    %v4505 = vld [vmem:[#allocation12 + $0x1f0] sm:$0xff]
    %v4506 = vld [vmem:[#allocation12 + $0x1f8] sm:$0xff]
    %4507 = vmatprep.subr.mxu0 %v4444
    %4508 = vmatpush1.msra.mxu0 %v4443
    %4509 = vmatprep.subr.mxu0 %v4448
    %4510 = vmatpush1.msra.mxu0 %v4447
    %4511 = vmatprep.subr.mxu0 %v4452
    %4512 = vmatpush1.msra.mxu0 %v4451
    %4513 = vmatprep.subr.mxu0 %v4456
    %4514 = vmatpush1.msra.mxu0 %v4455
    %4515 = vmatprep.subr.mxu0 %v4460
    %4516 = vmatpush1.msra.mxu0 %v4459
    %4517 = vmatprep.subr.mxu0 %v4464
    %4518 = vmatpush1.msra.mxu0 %v4463
    %4519 = vmatprep.subr.mxu0 %v4468
    %4520 = vmatpush1.msra.mxu0 %v4467
    %4521 = vmatprep.subr.mxu0 %v4472
    %4522 = vmatpush1.msra.mxu0 %v4471
    %4523 = vmatprep.subr.mxu0 %v4476
    %4524 = vmatpush1.msra.mxu0 %v4475
    %4525 = vmatprep.subr.mxu0 %v4480
    %4526 = vmatpush1.msra.mxu0 %v4479
    %4527 = vmatprep.subr.mxu0 %v4484
    %4528 = vmatpush1.msra.mxu0 %v4483
    %4529 = vmatprep.subr.mxu0 %v4488
    %4530 = vmatpush1.msra.mxu0 %v4487
    %4531 = vmatprep.subr.mxu0 %v4492
    %4532 = vmatpush1.msra.mxu0 %v4491
    %4533 = vmatprep.subr.mxu0 %v4496
    %4534 = vmatpush1.msra.mxu0 %v4495
    %4535 = vmatprep.subr.mxu0 %v4500
    %4536 = vmatpush1.msra.mxu0 %v4499
    %4537 = vmatprep.subr.mxu0 %v4504
    %4538 = vmatpush1.msra.mxu0 %v4503
    %4539 = vmatprep.subr.mxu0 0.0
    %4540 = vmatpush1.msra.mxu0 0.0
    %4541 = vmatprep.subr.mxu0 0.0
    %4542 = vmatpush1.msra.mxu0 0.0
    %4543 = vmatprep.subr.mxu0 0.0
    %4544 = vmatpush1.msra.mxu0 0.0
    %4545 = vmatprep.subr.mxu0 0.0
    %4546 = vmatpush1.msra.mxu0 0.0
    %4547 = vmatprep.subr.mxu0 0.0
    %4548 = vmatpush1.msra.mxu0 0.0
    %4549 = vmatprep.subr.mxu0 0.0
    %4550 = vmatpush1.msra.mxu0 0.0
    %4551 = vmatprep.subr.mxu0 0.0
    %4552 = vmatpush1.msra.mxu0 0.0
    %4553 = vmatprep.subr.mxu0 0.0
    %4554 = vmatpush1.msra.mxu0 0.0
    %4555 = vmatprep.subr.mxu0 0.0
    %4556 = vmatpush1.msra.mxu0 0.0
    %4557 = vmatprep.subr.mxu0 0.0
    %4558 = vmatpush1.msra.mxu0 0.0
    %4559 = vmatprep.subr.mxu0 0.0
    %4560 = vmatpush1.msra.mxu0 0.0
    %4561 = vmatprep.subr.mxu0 0.0
    %4562 = vmatpush1.msra.mxu0 0.0
    %4563 = vmatprep.subr.mxu0 0.0
    %4564 = vmatpush1.msra.mxu0 0.0
    %4565 = vmatprep.subr.mxu0 0.0
    %4566 = vmatpush1.msra.mxu0 0.0
    %4567 = vmatprep.subr.mxu0 0.0
    %4568 = vmatpush1.msra.mxu0 0.0
    %4569 = vmatprep.subr.mxu0 0.0
    %4570 = vmatpush1.msra.mxu0 0.0
    %4571 = vmatprep.mubr.f32.mxu0 0.0
    %4572 = vmatmul.mubr.f32.gmra.mrb[0].mxu0 %v4437
    %v4573 = vpop.f32.mrb[0].mxu0
    %v4574 = vadd.f32 0.0, %v4573
    %v4575 = vpop.f32.mrb[0].mxu0
    %v4576 = vadd.f32 0.0, %v4575
    %4577 = vdwg.mxu0
    %4578 = vmatprep.subr.mxu0 %v4446
    %4579 = vmatpush1.msra.mxu0 %v4445
    %4580 = vmatprep.subr.mxu0 %v4450
    %4581 = vmatpush1.msra.mxu0 %v4449
    %4582 = vmatprep.subr.mxu0 %v4454
    %4583 = vmatpush1.msra.mxu0 %v4453
    %4584 = vmatprep.subr.mxu0 %v4458
    %4585 = vmatpush1.msra.mxu0 %v4457
    %4586 = vmatprep.subr.mxu0 %v4462
    %4587 = vmatpush1.msra.mxu0 %v4461
    %4588 = vmatprep.subr.mxu0 %v4466
    %4589 = vmatpush1.msra.mxu0 %v4465
    %4590 = vmatprep.subr.mxu0 %v4470
    %4591 = vmatpush1.msra.mxu0 %v4469
    %4592 = vmatprep.subr.mxu0 %v4474
    %4593 = vmatpush1.msra.mxu0 %v4473
    %4594 = vmatprep.subr.mxu0 %v4478
    %4595 = vmatpush1.msra.mxu0 %v4477
    %4596 = vmatprep.subr.mxu0 %v4482
    %4597 = vmatpush1.msra.mxu0 %v4481
    %4598 = vmatprep.subr.mxu0 %v4486
    %4599 = vmatpush1.msra.mxu0 %v4485
    %4600 = vmatprep.subr.mxu0 %v4490
    %4601 = vmatpush1.msra.mxu0 %v4489
    %4602 = vmatprep.subr.mxu0 %v4494
    %4603 = vmatpush1.msra.mxu0 %v4493
    %4604 = vmatprep.subr.mxu0 %v4498
    %4605 = vmatpush1.msra.mxu0 %v4497
    %4606 = vmatprep.subr.mxu0 %v4502
    %4607 = vmatpush1.msra.mxu0 %v4501
    %4608 = vmatprep.subr.mxu0 %v4506
    %4609 = vmatpush1.msra.mxu0 %v4505
    %4610 = vmatprep.subr.mxu0 0.0
    %4611 = vmatpush1.msra.mxu0 0.0
    %4612 = vmatprep.subr.mxu0 0.0
    %4613 = vmatpush1.msra.mxu0 0.0
    %4614 = vmatprep.subr.mxu0 0.0
    %4615 = vmatpush1.msra.mxu0 0.0
    %4616 = vmatprep.subr.mxu0 0.0
    %4617 = vmatpush1.msra.mxu0 0.0
    %4618 = vmatprep.subr.mxu0 0.0
    %4619 = vmatpush1.msra.mxu0 0.0
    %4620 = vmatprep.subr.mxu0 0.0
    %4621 = vmatpush1.msra.mxu0 0.0
    %4622 = vmatprep.subr.mxu0 0.0
    %4623 = vmatpush1.msra.mxu0 0.0
    %4624 = vmatprep.subr.mxu0 0.0
    %4625 = vmatpush1.msra.mxu0 0.0
    %4626 = vmatprep.subr.mxu0 0.0
    %4627 = vmatpush1.msra.mxu0 0.0
    %4628 = vmatprep.subr.mxu0 0.0
    %4629 = vmatpush1.msra.mxu0 0.0
    %4630 = vmatprep.subr.mxu0 0.0
    %4631 = vmatpush1.msra.mxu0 0.0
    %4632 = vmatprep.subr.mxu0 0.0
    %4633 = vmatpush1.msra.mxu0 0.0
    %4634 = vmatprep.subr.mxu0 0.0
    %4635 = vmatpush1.msra.mxu0 0.0
    %4636 = vmatprep.subr.mxu0 0.0
    %4637 = vmatpush1.msra.mxu0 0.0
    %4638 = vmatprep.subr.mxu0 0.0
    %4639 = vmatpush1.msra.mxu0 0.0
    %4640 = vmatprep.subr.mxu0 0.0
    %4641 = vmatpush1.msra.mxu0 0.0
    %4642 = vmatprep.mubr.f32.mxu0 0.0
    %4643 = vmatmul.mubr.f32.gmra.mrb[0].mxu0 %v4437
    %v4644 = vpop.f32.mrb[0].mxu0
    %v4645 = vadd.f32 0.0, %v4644
    %v4646 = vpop.f32.mrb[0].mxu0
    %v4647 = vadd.f32 0.0, %v4646
    %4648 = vdwg.mxu0
    %v4649 = vadd.f32 %v4439, %v4574
    %v4650 = vadd.f32 %v4440, %v4576
    %v4651 = vadd.f32 %v4441, %v4645
    %v4652 = vadd.f32 %v4442, %v4647
    %v4653 = vxor.u32 %v4649, 2147483648
    %v4654 = vmul.f32 %v4653, 1.442695
    %v4655 = vpow.pop %v4654
    %v4656 = vadd.f32 %v4655, 1.0
    %v4657 = vrcp.pop %v4656
    %v4658 = vmul.f32 1.0, %v4657
    %v4659 = vxor.u32 %v4650, 2147483648
    %v4660 = vmul.f32 %v4659, 1.442695
    %v4661 = vpow.pop %v4660
    %v4662 = vadd.f32 %v4661, 1.0
    %v4663 = vrcp.pop %v4662
    %v4664 = vmul.f32 1.0, %v4663
    %v4665 = vtanh.pop %v4651
    %v4666 = vxor.u32 %v4652, 2147483648
    %v4667 = vmul.f32 %v4666, 1.442695
    %v4668 = vpow.pop %v4667
    %v4669 = vadd.f32 %v4668, 1.0
    %v4670 = vrcp.pop %v4669
    %v4671 = vmul.f32 1.0, %v4670
    %v4672 = vmul.f32 %v4664, %v4435
    %v4673 = vmul.f32 %v4658, %v4665
    %v4674 = vadd.f32 %v4672, %v4673
    %v4675 = vtanh.pop %v4674
    %v4676 = vmul.f32 %v4671, %v4675
    %4677 = vst [vmem:[%s2412] sm:$0xff] %v4676
    %4678 = vst [vmem:[#allocation15] sm:$0xff] %v4676
    %4679 = vst [vmem:[#allocation17] sm:$0xff] %v4674
    // Predicated region
    $region62: #{tpu_custom_call.1} parent=1 // pred_check
      _
    $region63: #{tpu_custom_call.1} parent=1 // pred_check_branch
      %4681 = sbr.rel (0) target = $region65
    $region64: #{tpu_custom_call.1} parent=1 // pred_region
      %s4683 = ssub.s32 1024, 1024
      %4684 = vsyncadd [#allocation5], %s4683
      %s4685 = sshll.u32 [#allocation14], 4
      %s4686 = int_to_ptr.vmem [resolvable:$true] %s4685
      %4691 = dma.vmem_to_hbm [thread:$0]  %s4686, 1024, %s9, [#allocation5], 128, 128, 8
    $region65: #{tpu_custom_call.1} parent=1 // pred_fallthru
      _
    // Predicated region
    $region66: #{tpu_custom_call.1} parent=1 // pred_check
      _
    $region67: #{tpu_custom_call.1} parent=1 // pred_check_branch
      %4693 = sbr.rel (0) target = $region69
    $region68: #{tpu_custom_call.1} parent=1 // pred_region
      %s4695 = ssub.s32 128, 128
      %4696 = vsyncadd [#allocation16], %s4695
      %s4698 = sshll.u32 [#allocation15], 4
      %s4699 = int_to_ptr.vmem [resolvable:$true] %s4698
      %4701 = dma.vmem_to_hbm [thread:$0]  %s4699, 128, %s10, [#allocation16]
    $region69: #{tpu_custom_call.1} parent=1 // pred_fallthru
      _
    // Predicated region
    $region70: #{tpu_custom_call.1} parent=1 // pred_check
      _
    $region71: #{tpu_custom_call.1} parent=1 // pred_check_branch
      %4703 = sbr.rel (0) target = $region73
    $region72: #{tpu_custom_call.1} parent=1 // pred_region
      %s4705 = ssub.s32 128, 128
      %4706 = vsyncadd [#allocation16], %s4705
      %s4708 = sshll.u32 [#allocation17], 4
      %s4709 = int_to_ptr.vmem [resolvable:$true] %s4708
      %4711 = dma.vmem_to_hbm [thread:$0]  %s4709, 128, %s11, [#allocation16]
    $region73: #{tpu_custom_call.1} parent=1 // pred_fallthru
      _
    // Predicated region
    $region74: #{tpu_custom_call.1} parent=1 // pred_check
      _
    $region75: #{tpu_custom_call.1} parent=1 // pred_check_branch
      %4713 = sbr.rel (0) target = $region77
    $region76: #{tpu_custom_call.1} parent=1 // pred_region
      %4714 = dma.done [#allocation5], 1024
    $region77: #{tpu_custom_call.1} parent=1 // pred_fallthru
      _
    // Predicated region
    $region78: #{tpu_custom_call.1} parent=1 // pred_check
      _
    $region79: #{tpu_custom_call.1} parent=1 // pred_check_branch
      %4716 = sbr.rel (0) target = $region81
    $region80: #{tpu_custom_call.1} parent=1 // pred_region
      %4717 = dma.done [#allocation16], 128
    $region81: #{tpu_custom_call.1} parent=1 // pred_fallthru
      _
    // Predicated region
    $region82: #{tpu_custom_call.1} parent=1 // pred_check
      _
    $region83: #{tpu_custom_call.1} parent=1 // pred_check_branch
      %4719 = sbr.rel (0) target = $region85
    $region84: #{tpu_custom_call.1} parent=1 // pred_region
      %4720 = dma.done [#allocation16], 128
    $region85: #{tpu_custom_call.1} parent=1 // pred_fallthru
      _
    %4721 = vsyncpa [#allocation4], 1
    %4722 = vsyncpa [#allocation7], 1
    %4723 = vsyncpa [#allocation10], 1
    %4724 = vsyncpa [#allocation13], 1
    %4725 = vsyncpa [#allocation5], 1
    %4726 = vsyncpa [#allocation16], 1

</llo_original>
